<compile_context>
chip_gen: v7x
topology: tpu7x:2x2x1
jax: 0.10.0
libtpu: 0.0.40
codegen_flags: <defaults>
</compile_context>

<pallas_src>
import functools
import math

import jax
import jax.numpy as jnp
from jax import lax
from jax.experimental import pallas as pl
from jax.experimental.pallas import tpu as pltpu


# Contract the shared LAST dim of both operands (y = a @ b.T for nn.Linear
# layout weights) -- never feeds an explicit transpose to the MXU.
_CONTRACT_LAST = (((1,), (1,)), ((), ()))


def _dot_t(a, b, compute_dtype):
    """a @ b.T with MXU-friendly operand dtype and f32 accumulation."""
    return lax.dot_general(
        a.astype(compute_dtype),
        b.astype(compute_dtype),
        _CONTRACT_LAST,
        preferred_element_type=jnp.float32,
    )


# ----------------------------------------------------------------------------
# Fused kernel.
# ----------------------------------------------------------------------------
def _fused_mha_kernel(
    q_ref, k_ref, v_ref, wq_ref, wk_ref, wv_ref, wo_ref, o_ref,
    kp_ref, vp_ref,
    *, num_heads, head_dim, compute_dtype,
):
    cd = compute_dtype

    # --- K/V projection: once per batch element, cached in VMEM scratch and
    # --- reused by every q-tile of this batch element (q-tile axis is the
    # --- inner, "arbitrary" grid axis).
    @pl.when(pl.program_id(1) == 0)
    def _():
        k = k_ref[0]                                              # (Lk, E)
        v = v_ref[0]                                              # (Lk, E)
        kp_ref[...] = _dot_t(k, wk_ref[...], cd).astype(kp_ref.dtype)
        vp_ref[...] = _dot_t(v, wv_ref[...], cd).astype(vp_ref.dtype)

    # --- Full-width Q projection: one (TQ, E) x (E, E) MXU matmul; the
    # --- 1/sqrt(Dh) scale and per-head Dh x Dh projections are pre-folded.
    qp = _dot_t(q_ref[0], wq_ref[...], cd)                        # (TQ, E) f32
    kp = kp_ref[...]                                              # (Lk, E)
    vp = vp_ref[...]                                              # (Lk, E)

    # --- Per-head attention over the resident (Lk, E) projected K/V.
    # TODO(synk): add a KV grid axis with flash-style online softmax (m/l/acc
    # scratch) once Lk is large enough that (Lk, E) K/V blocks and the
    # (TQ, Lk) score matrices stress VMEM (bites first on v7x's 64 MiB).
    heads = []
    for h in range(num_heads):
        sl = slice(h * head_dim, (h + 1) * head_dim)
        qh = qp[:, sl].astype(cd)                                 # (TQ, Dh)
        kh = kp[:, sl]                                            # (Lk, Dh)
        vh = vp[:, sl]                                            # (Lk, Dh)

        s = lax.dot_general(qh, kh, _CONTRACT_LAST,
                            preferred_element_type=jnp.float32)  # (TQ, Lk)
        m = jnp.max(s, axis=-1, keepdims=True)
        e = jnp.exp(s - m)                                        # f32 stats
        denom = jnp.sum(e, axis=-1, keepdims=True)

        pv = jnp.dot(e.astype(cd), vh,
                     preferred_element_type=jnp.float32)          # (TQ, Dh)
        # Normalize AFTER the PV matmul: Dh-wide multiply, not Lk-wide.
        heads.append(pv * (1.0 / denom))

    attn = jnp.concatenate(heads, axis=-1)                        # (TQ, E)

    # --- Single full-width output projection (lane-dense Wo, contract last).
    o_ref[0] = _dot_t(attn, wo_ref[...], cd).astype(o_ref.dtype)


# ----------------------------------------------------------------------------
# Tiling / VMEM helpers.
# ----------------------------------------------------------------------------
def _round_up(x, m):
    return ((x + m - 1) // m) * m


def _choose_q_tiling(batch, length_q, max_tile=256):
    """Sublane-aligned q tile; >= 2 grid steps when batch == 1 (megacore)."""
    min_tiles = 2 if batch == 1 else 1
    n_tiles = max(min_tiles, pl.cdiv(length_q, max_tile))
    tile = _round_up(pl.cdiv(length_q, n_tiles), 8)
    tile = min(tile, _round_up(length_q, 8))
    padded = _round_up(length_q, tile)
    return tile, padded


def _vmem_limit_bytes():
    cap = 64 * 1024 * 1024                      # conservative (v7x per-TC)
    try:
        cap = int(getattr(pltpu.get_tpu_info(), "vmem_capacity_bytes", cap))
    except Exception:
        pass
    return max(32 * 1024 * 1024, (cap * 7) // 8)   # leave headroom


def _build_mha_call(*, B, TQ, padded_Lq, Lk, E, H, Dh, num_q_tiles,
                    compute_dtype, out_dtype, single_buffer_weights):
    w_kwargs = {}
    if single_buffer_weights:
        # Constant index_map: weights never re-DMA, one resident copy suffices.
        w_kwargs = dict(pipeline_mode=pl.Buffered(1))

    def w_spec():
        return pl.BlockSpec((E, E), lambda b, i: (0, 0), **w_kwargs)

    kernel = functools.partial(
        _fused_mha_kernel, num_heads=H, head_dim=Dh, compute_dtype=compute_dtype
    )

    return pl.pallas_call(
        kernel,
        out_shape=jax.ShapeDtypeStruct((B, padded_Lq, E), out_dtype),
        grid=(B, num_q_tiles),
        in_specs=[
            pl.BlockSpec((1, TQ, E), lambda b, i: (b, i, 0)),   # q tile
            pl.BlockSpec((1, Lk, E), lambda b, i: (b, 0, 0)),   # k (per batch)
            pl.BlockSpec((1, Lk, E), lambda b, i: (b, 0, 0)),   # v (per batch)
            w_spec(),                                           # Wq_eff (E, E)
            w_spec(),                                           # Wk_eff (E, E)
            w_spec(),                                           # Wv_eff (E, E)
            w_spec(),                                           # Wo     (E, E)
        ],
        out_specs=pl.BlockSpec((1, TQ, E), lambda b, i: (b, i, 0)),
        scratch_shapes=[
            pltpu.VMEM((Lk, E), compute_dtype),   # projected K cache
            pltpu.VMEM((Lk, E), compute_dtype),   # projected V cache
        ],
        compiler_params=pltpu.CompilerParams(
            # q-tile axis reuses the per-batch K/V scratch -> "arbitrary".
            dimension_semantics=("parallel", "arbitrary"),
            vmem_limit_bytes=_vmem_limit_bytes(),
        ),
    )


# ----------------------------------------------------------------------------
# Forward.
# ----------------------------------------------------------------------------
_WEIGHT_SINGLE_BUFFER_OK = None   # memoized: does this jax accept Buffered(1)?


def multi_head_attention_fwd(q, k, v, weights, *, num_heads,
                             compute_dtype=jnp.bfloat16):
    """weights = (wq_eff, wk_eff, wv_eff, wo) from precompose_params()."""
    global _WEIGHT_SINGLE_BUFFER_OK
    wq, wk, wv, wo = weights
    B, Lq, E = q.shape
    _, Lk, _ = k.shape
    Dh = E // num_heads
    out_dtype = q.dtype

    # Cast activations once at the boundary (halves HBM/DMA bytes in bf16
    # mode); accumulation and softmax stats stay f32 inside the kernel.
    if q.dtype != compute_dtype:
        q, k, v = (x.astype(compute_dtype) for x in (q, k, v))

    TQ, padded_Lq = _choose_q_tiling(B, Lq)
    if padded_Lq != Lq:
        q = jnp.pad(q, ((0, 0), (0, padded_Lq - Lq), (0, 0)))
    num_q_tiles = padded_Lq // TQ

    def run(single_buf):
        call = _build_mha_call(
            B=B, TQ=TQ, padded_Lq=padded_Lq, Lk=Lk, E=E, H=num_heads, Dh=Dh,
            num_q_tiles=num_q_tiles, compute_dtype=compute_dtype,
            out_dtype=out_dtype, single_buffer_weights=single_buf)
        return call(q, k, v, wq, wk, wv, wo)

    if _WEIGHT_SINGLE_BUFFER_OK is None:
        try:
            out = run(True)
            _WEIGHT_SINGLE_BUFFER_OK = True
        except Exception:
            _WEIGHT_SINGLE_BUFFER_OK = False
            out = run(False)
    else:
        out = run(_WEIGHT_SINGLE_BUFFER_OK)

    return out[:, :Lq] if padded_Lq != Lq else out


def precompose_params(params, num_heads, compute_dtype=jnp.bfloat16):
    """Fold the per-head Dh x Dh projections + 1/sqrt(Dh) scale into full-width
    (E, E) weights.  Do this ONCE per weight set (not per forward call)."""
    E = params["Wq"].shape[0]
    Dh = E // num_heads
    scale = 1.0 / math.sqrt(float(Dh))

    def fold(head_w, W):
        # Rows h*Dh:(h+1)*Dh of W feed head h; compose with its (Dh, Dh) proj.
        w = jnp.einsum("hoi,hie->hoe", head_w, W.reshape(num_heads, Dh, E))
        return w.reshape(E, E)

    wq = fold(params["head_wq"], params["Wq"]) * scale   # scale folded into Q
    wk = fold(params["head_wk"], params["Wk"])
    wv = fold(params["head_wv"], params["Wv"])
    wo = params["Wo"]                                    # y = x @ Wo.T
    return tuple(w.astype(compute_dtype) for w in (wq, wk, wv, wo))


def multi_head_attention(q, k, v, params, num_heads, compute_dtype=jnp.bfloat16):
    # NOTE: for inference, hoist precompose_params out of the per-step path and
    # reuse the returned weights (it is pure weight prep).
    weights = precompose_params(params, num_heads, compute_dtype)
    return multi_head_attention_fwd(q, k, v, weights, num_heads=num_heads,
                                    compute_dtype=compute_dtype)


# ----------------------------------------------------------------------------
# Pure-JAX reference (mirrors the PyTorch forward exactly).
# ----------------------------------------------------------------------------
def reference(q, k, v, params, num_heads):
    B, Lq, E = q.shape
    _, Lk, _ = k.shape
    Dh = E // num_heads
    Qp = q @ params["Wq"].T
    Kp = k @ params["Wk"].T
    Vp = v @ params["Wv"].T
    Qs = Qp.reshape(B, Lq, num_heads, Dh).transpose(0, 2, 1, 3)
    Ks = Kp.reshape(B, Lk, num_heads, Dh).transpose(0, 2, 1, 3)
    Vs = Vp.reshape(B, Lk, num_heads, Dh).transpose(0, 2, 1, 3)
    outs = []
    for h in range(num_heads):
        Qi = Qs[:, h] @ params["head_wq"][h].T
        Ki = Ks[:, h] @ params["head_wk"][h].T
        Vi = Vs[:, h] @ params["head_wv"][h].T
        scores = (Qi @ Ki.transpose(0, 2, 1)) / jnp.sqrt(jnp.float32(Dh))
        weights = jax.nn.softmax(scores, axis=-1)
        outs.append(weights @ Vi)
    out = jnp.concatenate(outs, axis=-1)
    return out @ params["Wo"].T


if __name__ == "__main__":
    # Small shapes consistent with the module: (B, L, embed_dim).
    B, Lq, Lk = 2, 8, 8
    embed_dim, num_heads = 32, 4
    head_dim = embed_dim // num_heads

    key = jax.random.PRNGKey(0)
    keys = jax.random.split(key, 10)

    params = {
        "Wq": jax.random.normal(keys[0], (embed_dim, embed_dim), jnp.float32) * 0.1,
        "Wk": jax.random.normal(keys[1], (embed_dim, embed_dim), jnp.float32) * 0.1,
        "Wv": jax.random.normal(keys[2], (embed_dim, embed_dim), jnp.float32) * 0.1,
        "Wo": jax.random.normal(keys[3], (embed_dim, embed_dim), jnp.float32) * 0.1,
        "head_wq": jax.random.normal(keys[4], (num_heads, head_dim, head_dim), jnp.float32) * 0.1,
        "head_wk": jax.random.normal(keys[5], (num_heads, head_dim, head_dim), jnp.float32) * 0.1,
        "head_wv": jax.random.normal(keys[6], (num_heads, head_dim, head_dim), jnp.float32) * 0.1,
    }

    q = jax.random.normal(keys[7], (B, Lq, embed_dim), jnp.float32)
    k = jax.random.normal(keys[8], (B, Lk, embed_dim), jnp.float32)
    v = jax.random.normal(keys[9], (B, Lk, embed_dim), jnp.float32)

    ref = reference(q, k, v, params, num_heads)

    # f32 compute path: tight check vs. the reference (exact softmax division).
    out_f32 = jax.block_until_ready(
        multi_head_attention(q, k, v, params, num_heads, compute_dtype=jnp.float32)
    )
    assert out_f32.shape == (B, Lq, embed_dim), out_f32.shape
    err = float(jnp.max(jnp.abs(out_f32 - ref)))
    assert jnp.allclose(out_f32, ref, atol=2e-3, rtol=2e-3), (
        "f32 mismatch vs reference: max abs err = %e" % err
    )

    # Default (bf16 MXU operands, f32 accumulation + softmax stats) perf path.
    out_bf16 = jax.block_until_ready(
        multi_head_attention(q, k, v, params, num_heads)
    )
    assert out_bf16.shape == (B, Lq, embed_dim), out_bf16.shape
    err_b = float(jnp.max(jnp.abs(out_bf16 - ref)))
    assert jnp.allclose(out_bf16, ref, atol=5e-2, rtol=5e-2), (
        "bf16 mismatch vs reference: max abs err = %e" % err_b
    )

    print("KERNEL_OK")
</pallas_src>

<mosaic_0001>
module attributes {stable_mosaic.version = 11 : i64} {
  func.func @_fused_mha_kernel(%arg0: i32, %arg1: i32, %arg2: memref<1x8x32xf32, #tpu.memory_space<vmem>>, %arg3: memref<1x8x32xf32, #tpu.memory_space<vmem>>, %arg4: memref<1x8x32xf32, #tpu.memory_space<vmem>>, %arg5: memref<32x32xf32, #tpu.memory_space<vmem>>, %arg6: memref<32x32xf32, #tpu.memory_space<vmem>>, %arg7: memref<32x32xf32, #tpu.memory_space<vmem>>, %arg8: memref<32x32xf32, #tpu.memory_space<vmem>>, %arg9: memref<1x8x32xf32, #tpu.memory_space<vmem>>, %arg10: memref<8x32xf32, #tpu.memory_space<vmem>>, %arg11: memref<8x32xf32, #tpu.memory_space<vmem>>) attributes {dimension_semantics = [#tpu.dimension_semantics<parallel>, #tpu.dimension_semantics<arbitrary>], iteration_bounds = array<i64: 2, 1>, scalar_prefetch = 0 : i64, scratch_operands = 2 : i64, tpu.core_type = #tpu.core_type<tc>, window_params = [{transform_indices = @transform_0, window_bounds = array<i64: 1, 8, 32>}, {transform_indices = @transform_1, window_bounds = array<i64: 1, 8, 32>}, {transform_indices = @transform_2, window_bounds = array<i64: 1, 8, 32>}, {pipeline_mode = #tpu.pipeline_mode<synchronous>, transform_indices = @transform_3, window_bounds = array<i64: 32, 32>}, {pipeline_mode = #tpu.pipeline_mode<synchronous>, transform_indices = @transform_4, window_bounds = array<i64: 32, 32>}, {pipeline_mode = #tpu.pipeline_mode<synchronous>, transform_indices = @transform_5, window_bounds = array<i64: 32, 32>}, {pipeline_mode = #tpu.pipeline_mode<synchronous>, transform_indices = @transform_6, window_bounds = array<i64: 32, 32>}, {transform_indices = @transform_7, window_bounds = array<i64: 1, 8, 32>}]} {
    %c0_i32 = arith.constant 0 : i32
    %0 = arith.cmpi eq, %arg1, %c0_i32 : i32
    %1 = arith.extui %0 : i1 to i32
    %c0_i32_0 = arith.constant 0 : i32
    %2 = arith.cmpi ne, %1, %c0_i32_0 : i32
    scf.if %2 {
      %c0_35 = arith.constant 0 : index
      %c0_36 = arith.constant 0 : index
      %c0_37 = arith.constant 0 : index
      %79 = vector.load %arg3[%c0_35, %c0_36, %c0_37] : memref<1x8x32xf32, #tpu.memory_space<vmem>>, vector<1x8x32xf32>
      %80 = vector.shape_cast %79 : vector<1x8x32xf32> to vector<8x32xf32>
      %c0_38 = arith.constant 0 : index
      %c0_39 = arith.constant 0 : index
      %c0_40 = arith.constant 0 : index
      %81 = vector.load %arg4[%c0_38, %c0_39, %c0_40] : memref<1x8x32xf32, #tpu.memory_space<vmem>>, vector<1x8x32xf32>
      %82 = vector.shape_cast %81 : vector<1x8x32xf32> to vector<8x32xf32>
      %c0_41 = arith.constant 0 : index
      %c0_42 = arith.constant 0 : index
      %83 = vector.load %arg6[%c0_41, %c0_42] : memref<32x32xf32, #tpu.memory_space<vmem>>, vector<32x32xf32>
      %cst_43 = arith.constant dense<0.000000e+00> : vector<8x32xf32>
      %84 = tpu.matmul %80, %83, %cst_43 {dimension_numbers = #tpu.dot_dimension_numbers<[1], [1], [0], [0], [0, 0, 1, 0], [], []>} : vector<8x32xf32>, vector<32x32xf32>, vector<8x32xf32> -> vector<8x32xf32>
      %c0_44 = arith.constant 0 : index
      %c0_45 = arith.constant 0 : index
      %85 = vector.load %arg10[%c0_44, %c0_45] : memref<8x32xf32, #tpu.memory_space<vmem>>, vector<8x32xf32>
      tpu.vector_store %arg10[%c0_44, %c0_45], %84 {strides = array<i32>} : memref<8x32xf32, #tpu.memory_space<vmem>>, vector<8x32xf32>,
      %c0_46 = arith.constant 0 : index
      %c0_47 = arith.constant 0 : index
      %86 = vector.load %arg7[%c0_46, %c0_47] : memref<32x32xf32, #tpu.memory_space<vmem>>, vector<32x32xf32>
      %cst_48 = arith.constant dense<0.000000e+00> : vector<8x32xf32>
      %87 = tpu.matmul %82, %86, %cst_48 {dimension_numbers = #tpu.dot_dimension_numbers<[1], [1], [0], [0], [0, 0, 1, 0], [], []>} : vector<8x32xf32>, vector<32x32xf32>, vector<8x32xf32> -> vector<8x32xf32>
      %c0_49 = arith.constant 0 : index
      %c0_50 = arith.constant 0 : index
      %88 = vector.load %arg11[%c0_49, %c0_50] : memref<8x32xf32, #tpu.memory_space<vmem>>, vector<8x32xf32>
      tpu.vector_store %arg11[%c0_49, %c0_50], %87 {strides = array<i32>} : memref<8x32xf32, #tpu.memory_space<vmem>>, vector<8x32xf32>,
    } else {
    }
    %c0 = arith.constant 0 : index
    %c0_1 = arith.constant 0 : index
    %c0_2 = arith.constant 0 : index
    %3 = vector.load %arg2[%c0, %c0_1, %c0_2] : memref<1x8x32xf32, #tpu.memory_space<vmem>>, vector<1x8x32xf32>
    %4 = vector.shape_cast %3 : vector<1x8x32xf32> to vector<8x32xf32>
    %c0_3 = arith.constant 0 : index
    %c0_4 = arith.constant 0 : index
    %5 = vector.load %arg5[%c0_3, %c0_4] : memref<32x32xf32, #tpu.memory_space<vmem>>, vector<32x32xf32>
    %cst = arith.constant dense<0.000000e+00> : vector<8x32xf32>
    %6 = tpu.matmul %4, %5, %cst {dimension_numbers = #tpu.dot_dimension_numbers<[1], [1], [0], [0], [0, 0, 1, 0], [], []>} : vector<8x32xf32>, vector<32x32xf32>, vector<8x32xf32> -> vector<8x32xf32>
    %c0_5 = arith.constant 0 : index
    %c0_6 = arith.constant 0 : index
    %7 = vector.load %arg10[%c0_5, %c0_6] : memref<8x32xf32, #tpu.memory_space<vmem>>, vector<8x32xf32>
    %c0_7 = arith.constant 0 : index
    %c0_8 = arith.constant 0 : index
    %8 = vector.load %arg11[%c0_7, %c0_8] : memref<8x32xf32, #tpu.memory_space<vmem>>, vector<8x32xf32>
    %9 = vector.extract_strided_slice %6 {offsets = [0, 0], sizes = [8, 8], strides = [1, 1]} : vector<8x32xf32> to vector<8x8xf32>
    %10 = vector.extract_strided_slice %7 {offsets = [0, 0], sizes = [8, 8], strides = [1, 1]} : vector<8x32xf32> to vector<8x8xf32>
    %11 = vector.extract_strided_slice %8 {offsets = [0, 0], sizes = [8, 8], strides = [1, 1]} : vector<8x32xf32> to vector<8x8xf32>
    %cst_9 = arith.constant dense<0.000000e+00> : vector<8x8xf32>
    %12 = tpu.matmul %9, %10, %cst_9 {dimension_numbers = #tpu.dot_dimension_numbers<[1], [1], [0], [0], [0, 0, 1, 0], [], []>} : vector<8x8xf32>, vector<8x8xf32>, vector<8x8xf32> -> vector<8x8xf32>
    %cst_10 = arith.constant dense<0xFF800000> : vector<8xf32>
    %13 = vector.multi_reduction <maximumf>, %12, %cst_10 [1] : vector<8x8xf32> to vector<8xf32>
    %14 = vector.shape_cast %13 : vector<8xf32> to vector<8x1xf32>
    %15 = vector.broadcast %14 : vector<8x1xf32> to vector<8x8xf32>
    %16 = arith.subf %12, %15 : vector<8x8xf32>
    %17 = math.exp %16 : vector<8x8xf32>
    %cst_11 = arith.constant dense<0.000000e+00> : vector<8xf32>
    %18 = vector.multi_reduction <add>, %17, %cst_11 [1] : vector<8x8xf32> to vector<8xf32>
    %19 = vector.shape_cast %18 : vector<8xf32> to vector<8x1xf32>
    %cst_12 = arith.constant dense<0.000000e+00> : vector<8x8xf32>
    %20 = tpu.matmul %17, %11, %cst_12 {dimension_numbers = #tpu.dot_dimension_numbers<[1], [0], [0], [1], [0, 0, 1, 1], [], []>} : vector<8x8xf32>, vector<8x8xf32>, vector<8x8xf32> -> vector<8x8xf32>
    %cst_13 = arith.constant 1.000000e+00 : f32
    %21 = vector.broadcast %cst_13 : f32 to vector<8x1xf32>
    %22 = arith.divf %21, %19 : vector<8x1xf32>
    %23 = vector.broadcast %22 : vector<8x1xf32> to vector<8x8xf32>
    %24 = arith.mulf %20, %23 : vector<8x8xf32>
    %25 = vector.extract_strided_slice %6 {offsets = [0, 8], sizes = [8, 8], strides = [1, 1]} : vector<8x32xf32> to vector<8x8xf32>
    %26 = vector.extract_strided_slice %7 {offsets = [0, 8], sizes = [8, 8], strides = [1, 1]} : vector<8x32xf32> to vector<8x8xf32>
    %27 = vector.extract_strided_slice %8 {offsets = [0, 8], sizes = [8, 8], strides = [1, 1]} : vector<8x32xf32> to vector<8x8xf32>
    %cst_14 = arith.constant dense<0.000000e+00> : vector<8x8xf32>
    %28 = tpu.matmul %25, %26, %cst_14 {dimension_numbers = #tpu.dot_dimension_numbers<[1], [1], [0], [0], [0, 0, 1, 0], [], []>} : vector<8x8xf32>, vector<8x8xf32>, vector<8x8xf32> -> vector<8x8xf32>
    %cst_15 = arith.constant dense<0xFF800000> : vector<8xf32>
    %29 = vector.multi_reduction <maximumf>, %28, %cst_15 [1] : vector<8x8xf32> to vector<8xf32>
    %30 = vector.shape_cast %29 : vector<8xf32> to vector<8x1xf32>
    %31 = vector.broadcast %30 : vector<8x1xf32> to vector<8x8xf32>
    %32 = arith.subf %28, %31 : vector<8x8xf32>
    %33 = math.exp %32 : vector<8x8xf32>
    %cst_16 = arith.constant dense<0.000000e+00> : vector<8xf32>
    %34 = vector.multi_reduction <add>, %33, %cst_16 [1] : vector<8x8xf32> to vector<8xf32>
    %35 = vector.shape_cast %34 : vector<8xf32> to vector<8x1xf32>
    %cst_17 = arith.constant dense<0.000000e+00> : vector<8x8xf32>
    %36 = tpu.matmul %33, %27, %cst_17 {dimension_numbers = #tpu.dot_dimension_numbers<[1], [0], [0], [1], [0, 0, 1, 1], [], []>} : vector<8x8xf32>, vector<8x8xf32>, vector<8x8xf32> -> vector<8x8xf32>
    %cst_18 = arith.constant 1.000000e+00 : f32
    %37 = vector.broadcast %cst_18 : f32 to vector<8x1xf32>
    %38 = arith.divf %37, %35 : vector<8x1xf32>
    %39 = vector.broadcast %38 : vector<8x1xf32> to vector<8x8xf32>
    %40 = arith.mulf %36, %39 : vector<8x8xf32>
    %41 = vector.extract_strided_slice %6 {offsets = [0, 16], sizes = [8, 8], strides = [1, 1]} : vector<8x32xf32> to vector<8x8xf32>
    %42 = vector.extract_strided_slice %7 {offsets = [0, 16], sizes = [8, 8], strides = [1, 1]} : vector<8x32xf32> to vector<8x8xf32>
    %43 = vector.extract_strided_slice %8 {offsets = [0, 16], sizes = [8, 8], strides = [1, 1]} : vector<8x32xf32> to vector<8x8xf32>
    %cst_19 = arith.constant dense<0.000000e+00> : vector<8x8xf32>
    %44 = tpu.matmul %41, %42, %cst_19 {dimension_numbers = #tpu.dot_dimension_numbers<[1], [1], [0], [0], [0, 0, 1, 0], [], []>} : vector<8x8xf32>, vector<8x8xf32>, vector<8x8xf32> -> vector<8x8xf32>
    %cst_20 = arith.constant dense<0xFF800000> : vector<8xf32>
    %45 = vector.multi_reduction <maximumf>, %44, %cst_20 [1] : vector<8x8xf32> to vector<8xf32>
    %46 = vector.shape_cast %45 : vector<8xf32> to vector<8x1xf32>
    %47 = vector.broadcast %46 : vector<8x1xf32> to vector<8x8xf32>
    %48 = arith.subf %44, %47 : vector<8x8xf32>
    %49 = math.exp %48 : vector<8x8xf32>
    %cst_21 = arith.constant dense<0.000000e+00> : vector<8xf32>
    %50 = vector.multi_reduction <add>, %49, %cst_21 [1] : vector<8x8xf32> to vector<8xf32>
    %51 = vector.shape_cast %50 : vector<8xf32> to vector<8x1xf32>
    %cst_22 = arith.constant dense<0.000000e+00> : vector<8x8xf32>
    %52 = tpu.matmul %49, %43, %cst_22 {dimension_numbers = #tpu.dot_dimension_numbers<[1], [0], [0], [1], [0, 0, 1, 1], [], []>} : vector<8x8xf32>, vector<8x8xf32>, vector<8x8xf32> -> vector<8x8xf32>
    %cst_23 = arith.constant 1.000000e+00 : f32
    %53 = vector.broadcast %cst_23 : f32 to vector<8x1xf32>
    %54 = arith.divf %53, %51 : vector<8x1xf32>
    %55 = vector.broadcast %54 : vector<8x1xf32> to vector<8x8xf32>
    %56 = arith.mulf %52, %55 : vector<8x8xf32>
    %57 = vector.extract_strided_slice %6 {offsets = [0, 24], sizes = [8, 8], strides = [1, 1]} : vector<8x32xf32> to vector<8x8xf32>
    %58 = vector.extract_strided_slice %7 {offsets = [0, 24], sizes = [8, 8], strides = [1, 1]} : vector<8x32xf32> to vector<8x8xf32>
    %59 = vector.extract_strided_slice %8 {offsets = [0, 24], sizes = [8, 8], strides = [1, 1]} : vector<8x32xf32> to vector<8x8xf32>
    %cst_24 = arith.constant dense<0.000000e+00> : vector<8x8xf32>
    %60 = tpu.matmul %57, %58, %cst_24 {dimension_numbers = #tpu.dot_dimension_numbers<[1], [1], [0], [0], [0, 0, 1, 0], [], []>} : vector<8x8xf32>, vector<8x8xf32>, vector<8x8xf32> -> vector<8x8xf32>
    %cst_25 = arith.constant dense<0xFF800000> : vector<8xf32>
    %61 = vector.multi_reduction <maximumf>, %60, %cst_25 [1] : vector<8x8xf32> to vector<8xf32>
    %62 = vector.shape_cast %61 : vector<8xf32> to vector<8x1xf32>
    %63 = vector.broadcast %62 : vector<8x1xf32> to vector<8x8xf32>
    %64 = arith.subf %60, %63 : vector<8x8xf32>
    %65 = math.exp %64 : vector<8x8xf32>
    %cst_26 = arith.constant dense<0.000000e+00> : vector<8xf32>
    %66 = vector.multi_reduction <add>, %65, %cst_26 [1] : vector<8x8xf32> to vector<8xf32>
    %67 = vector.shape_cast %66 : vector<8xf32> to vector<8x1xf32>
    %cst_27 = arith.constant dense<0.000000e+00> : vector<8x8xf32>
    %68 = tpu.matmul %65, %59, %cst_27 {dimension_numbers = #tpu.dot_dimension_numbers<[1], [0], [0], [1], [0, 0, 1, 1], [], []>} : vector<8x8xf32>, vector<8x8xf32>, vector<8x8xf32> -> vector<8x8xf32>
    %cst_28 = arith.constant 1.000000e+00 : f32
    %69 = vector.broadcast %cst_28 : f32 to vector<8x1xf32>
    %70 = arith.divf %69, %67 : vector<8x1xf32>
    %71 = vector.broadcast %70 : vector<8x1xf32> to vector<8x8xf32>
    %72 = arith.mulf %68, %71 : vector<8x8xf32>
    %73 = tpu.concatenate %24, %40, %56, %72 in 1 : vector<8x8xf32>, vector<8x8xf32>, vector<8x8xf32>, vector<8x8xf32> -> vector<8x32xf32>
    %c0_29 = arith.constant 0 : index
    %c0_30 = arith.constant 0 : index
    %74 = vector.load %arg8[%c0_29, %c0_30] : memref<32x32xf32, #tpu.memory_space<vmem>>, vector<32x32xf32>
    %cst_31 = arith.constant dense<0.000000e+00> : vector<8x32xf32>
    %75 = tpu.matmul %73, %74, %cst_31 {dimension_numbers = #tpu.dot_dimension_numbers<[1], [1], [0], [0], [0, 0, 1, 0], [], []>} : vector<8x32xf32>, vector<32x32xf32>, vector<8x32xf32> -> vector<8x32xf32>
    %c0_32 = arith.constant 0 : index
    %c0_33 = arith.constant 0 : index
    %c0_34 = arith.constant 0 : index
    %76 = vector.load %arg9[%c0_32, %c0_33, %c0_34] : memref<1x8x32xf32, #tpu.memory_space<vmem>>, vector<1x8x32xf32>
    %77 = vector.shape_cast %76 : vector<1x8x32xf32> to vector<8x32xf32>
    %78 = vector.shape_cast %75 : vector<8x32xf32> to vector<1x8x32xf32>
    tpu.vector_store %arg9[%c0_32, %c0_33, %c0_34], %78 {strides = array<i32>} : memref<1x8x32xf32, #tpu.memory_space<vmem>>, vector<1x8x32xf32>,
    return
  }
  func.func @transform_0(%arg0: i32, %arg1: i32) -> (i32, i32, i32) {
    %c0_i32 = arith.constant 0 : i32
    %c0_i32_0 = arith.constant 0 : i32
    return %arg0, %arg1, %c0_i32 : i32, i32, i32
  }
  func.func @transform_1(%arg0: i32, %arg1: i32) -> (i32, i32, i32) {
    %c0_i32 = arith.constant 0 : i32
    %c0_i32_0 = arith.constant 0 : i32
    %c0_i32_1 = arith.constant 0 : i32
    return %arg0, %c0_i32, %c0_i32_0 : i32, i32, i32
  }
  func.func @transform_2(%arg0: i32, %arg1: i32) -> (i32, i32, i32) {
    %c0_i32 = arith.constant 0 : i32
    %c0_i32_0 = arith.constant 0 : i32
    %c0_i32_1 = arith.constant 0 : i32
    return %arg0, %c0_i32, %c0_i32_0 : i32, i32, i32
  }
  func.func @transform_3(%arg0: i32, %arg1: i32) -> (i32, i32) {
    %c0_i32 = arith.constant 0 : i32
    %c0_i32_0 = arith.constant 0 : i32
    %c0_i32_1 = arith.constant 0 : i32
    return %c0_i32, %c0_i32_0 : i32, i32
  }
  func.func @transform_4(%arg0: i32, %arg1: i32) -> (i32, i32) {
    %c0_i32 = arith.constant 0 : i32
    %c0_i32_0 = arith.constant 0 : i32
    %c0_i32_1 = arith.constant 0 : i32
    return %c0_i32, %c0_i32_0 : i32, i32
  }
  func.func @transform_5(%arg0: i32, %arg1: i32) -> (i32, i32) {
    %c0_i32 = arith.constant 0 : i32
    %c0_i32_0 = arith.constant 0 : i32
    %c0_i32_1 = arith.constant 0 : i32
    return %c0_i32, %c0_i32_0 : i32, i32
  }
  func.func @transform_6(%arg0: i32, %arg1: i32) -> (i32, i32) {
    %c0_i32 = arith.constant 0 : i32
    %c0_i32_0 = arith.constant 0 : i32
    %c0_i32_1 = arith.constant 0 : i32
    return %c0_i32, %c0_i32_0 : i32, i32
  }
  func.func @transform_7(%arg0: i32, %arg1: i32) -> (i32, i32, i32) {
    %c0_i32 = arith.constant 0 : i32
    %c0_i32_0 = arith.constant 0 : i32
    return %arg0, %arg1, %c0_i32 : i32, i32, i32
  }
}

module attributes {stable_mosaic.version = 11 : i64} {
  func.func @_fused_mha_kernel(%arg0: i32, %arg1: i32, %arg2: memref<1x8x32xf32, #tpu.memory_space<vmem>>, %arg3: memref<1x8x32xf32, #tpu.memory_space<vmem>>, %arg4: memref<1x8x32xf32, #tpu.memory_space<vmem>>, %arg5: memref<32x32xf32, #tpu.memory_space<vmem>>, %arg6: memref<32x32xf32, #tpu.memory_space<vmem>>, %arg7: memref<32x32xf32, #tpu.memory_space<vmem>>, %arg8: memref<32x32xf32, #tpu.memory_space<vmem>>, %arg9: memref<1x8x32xf32, #tpu.memory_space<vmem>>, %arg10: memref<8x32xf32, #tpu.memory_space<vmem>>, %arg11: memref<8x32xf32, #tpu.memory_space<vmem>>) attributes {dimension_semantics = [#tpu.dimension_semantics<parallel>, #tpu.dimension_semantics<arbitrary>], iteration_bounds = array<i64: 2, 1>, scalar_prefetch = 0 : i64, scratch_operands = 2 : i64, tpu.core_type = #tpu.core_type<tc>, window_params = [{transform_indices = @transform_0, window_bounds = array<i64: 1, 8, 32>}, {transform_indices = @transform_1, window_bounds = array<i64: 1, 8, 32>}, {transform_indices = @transform_2, window_bounds = array<i64: 1, 8, 32>}, {pipeline_mode = #tpu.pipeline_mode<synchronous>, transform_indices = @transform_3, window_bounds = array<i64: 32, 32>}, {pipeline_mode = #tpu.pipeline_mode<synchronous>, transform_indices = @transform_4, window_bounds = array<i64: 32, 32>}, {pipeline_mode = #tpu.pipeline_mode<synchronous>, transform_indices = @transform_5, window_bounds = array<i64: 32, 32>}, {pipeline_mode = #tpu.pipeline_mode<synchronous>, transform_indices = @transform_6, window_bounds = array<i64: 32, 32>}, {transform_indices = @transform_7, window_bounds = array<i64: 1, 8, 32>}]} {
    %c0_i32 = arith.constant 0 : i32
    %0 = arith.cmpi eq, %arg1, %c0_i32 : i32
    %1 = arith.extui %0 : i1 to i32
    %c0_i32_0 = arith.constant 0 : i32
    %2 = arith.cmpi ne, %1, %c0_i32_0 : i32
    scf.if %2 {
      %c0_35 = arith.constant 0 : index
      %c0_36 = arith.constant 0 : index
      %c0_37 = arith.constant 0 : index
      %79 = vector.load %arg3[%c0_35, %c0_36, %c0_37] : memref<1x8x32xf32, #tpu.memory_space<vmem>>, vector<1x8x32xf32>
      %80 = vector.shape_cast %79 : vector<1x8x32xf32> to vector<8x32xf32>
      %c0_38 = arith.constant 0 : index
      %c0_39 = arith.constant 0 : index
      %c0_40 = arith.constant 0 : index
      %81 = vector.load %arg4[%c0_38, %c0_39, %c0_40] : memref<1x8x32xf32, #tpu.memory_space<vmem>>, vector<1x8x32xf32>
      %82 = vector.shape_cast %81 : vector<1x8x32xf32> to vector<8x32xf32>
      %c0_41 = arith.constant 0 : index
      %c0_42 = arith.constant 0 : index
      %83 = vector.load %arg6[%c0_41, %c0_42] : memref<32x32xf32, #tpu.memory_space<vmem>>, vector<32x32xf32>
      %cst_43 = arith.constant dense<0.000000e+00> : vector<8x32xf32>
      %84 = tpu.matmul %80, %83, %cst_43 {dimension_numbers = #tpu.dot_dimension_numbers<[1], [1], [0], [0], [0, 0, 1, 0], [], []>} : vector<8x32xf32>, vector<32x32xf32>, vector<8x32xf32> -> vector<8x32xf32>
      %c0_44 = arith.constant 0 : index
      %c0_45 = arith.constant 0 : index
      %85 = vector.load %arg10[%c0_44, %c0_45] : memref<8x32xf32, #tpu.memory_space<vmem>>, vector<8x32xf32>
      tpu.vector_store %arg10[%c0_44, %c0_45], %84 {strides = array<i32>} : memref<8x32xf32, #tpu.memory_space<vmem>>, vector<8x32xf32>,
      %c0_46 = arith.constant 0 : index
      %c0_47 = arith.constant 0 : index
      %86 = vector.load %arg7[%c0_46, %c0_47] : memref<32x32xf32, #tpu.memory_space<vmem>>, vector<32x32xf32>
      %cst_48 = arith.constant dense<0.000000e+00> : vector<8x32xf32>
      %87 = tpu.matmul %82, %86, %cst_48 {dimension_numbers = #tpu.dot_dimension_numbers<[1], [1], [0], [0], [0, 0, 1, 0], [], []>} : vector<8x32xf32>, vector<32x32xf32>, vector<8x32xf32> -> vector<8x32xf32>
      %c0_49 = arith.constant 0 : index
      %c0_50 = arith.constant 0 : index
      %88 = vector.load %arg11[%c0_49, %c0_50] : memref<8x32xf32, #tpu.memory_space<vmem>>, vector<8x32xf32>
      tpu.vector_store %arg11[%c0_49, %c0_50], %87 {strides = array<i32>} : memref<8x32xf32, #tpu.memory_space<vmem>>, vector<8x32xf32>,
    } else {
    }
    %c0 = arith.constant 0 : index
    %c0_1 = arith.constant 0 : index
    %c0_2 = arith.constant 0 : index
    %3 = vector.load %arg2[%c0, %c0_1, %c0_2] : memref<1x8x32xf32, #tpu.memory_space<vmem>>, vector<1x8x32xf32>
    %4 = vector.shape_cast %3 : vector<1x8x32xf32> to vector<8x32xf32>
    %c0_3 = arith.constant 0 : index
    %c0_4 = arith.constant 0 : index
    %5 = vector.load %arg5[%c0_3, %c0_4] : memref<32x32xf32, #tpu.memory_space<vmem>>, vector<32x32xf32>
    %cst = arith.constant dense<0.000000e+00> : vector<8x32xf32>
    %6 = tpu.matmul %4, %5, %cst {dimension_numbers = #tpu.dot_dimension_numbers<[1], [1], [0], [0], [0, 0, 1, 0], [], []>} : vector<8x32xf32>, vector<32x32xf32>, vector<8x32xf32> -> vector<8x32xf32>
    %c0_5 = arith.constant 0 : index
    %c0_6 = arith.constant 0 : index
    %7 = vector.load %arg10[%c0_5, %c0_6] : memref<8x32xf32, #tpu.memory_space<vmem>>, vector<8x32xf32>
    %c0_7 = arith.constant 0 : index
    %c0_8 = arith.constant 0 : index
    %8 = vector.load %arg11[%c0_7, %c0_8] : memref<8x32xf32, #tpu.memory_space<vmem>>, vector<8x32xf32>
    %9 = vector.extract_strided_slice %6 {offsets = [0, 0], sizes = [8, 8], strides = [1, 1]} : vector<8x32xf32> to vector<8x8xf32>
    %10 = vector.extract_strided_slice %7 {offsets = [0, 0], sizes = [8, 8], strides = [1, 1]} : vector<8x32xf32> to vector<8x8xf32>
    %11 = vector.extract_strided_slice %8 {offsets = [0, 0], sizes = [8, 8], strides = [1, 1]} : vector<8x32xf32> to vector<8x8xf32>
    %cst_9 = arith.constant dense<0.000000e+00> : vector<8x8xf32>
    %12 = tpu.matmul %9, %10, %cst_9 {dimension_numbers = #tpu.dot_dimension_numbers<[1], [1], [0], [0], [0, 0, 1, 0], [], []>} : vector<8x8xf32>, vector<8x8xf32>, vector<8x8xf32> -> vector<8x8xf32>
    %cst_10 = arith.constant dense<0xFF800000> : vector<8xf32>
    %13 = vector.multi_reduction <maximumf>, %12, %cst_10 [1] : vector<8x8xf32> to vector<8xf32>
    %14 = vector.shape_cast %13 : vector<8xf32> to vector<8x1xf32>
    %15 = vector.broadcast %14 : vector<8x1xf32> to vector<8x8xf32>
    %16 = arith.subf %12, %15 : vector<8x8xf32>
    %17 = math.exp %16 : vector<8x8xf32>
    %cst_11 = arith.constant dense<0.000000e+00> : vector<8xf32>
    %18 = vector.multi_reduction <add>, %17, %cst_11 [1] : vector<8x8xf32> to vector<8xf32>
    %19 = vector.shape_cast %18 : vector<8xf32> to vector<8x1xf32>
    %cst_12 = arith.constant dense<0.000000e+00> : vector<8x8xf32>
    %20 = tpu.matmul %17, %11, %cst_12 {dimension_numbers = #tpu.dot_dimension_numbers<[1], [0], [0], [1], [0, 0, 1, 1], [], []>} : vector<8x8xf32>, vector<8x8xf32>, vector<8x8xf32> -> vector<8x8xf32>
    %cst_13 = arith.constant 1.000000e+00 : f32
    %21 = vector.broadcast %cst_13 : f32 to vector<8x1xf32>
    %22 = arith.divf %21, %19 : vector<8x1xf32>
    %23 = vector.broadcast %22 : vector<8x1xf32> to vector<8x8xf32>
    %24 = arith.mulf %20, %23 : vector<8x8xf32>
    %25 = vector.extract_strided_slice %6 {offsets = [0, 8], sizes = [8, 8], strides = [1, 1]} : vector<8x32xf32> to vector<8x8xf32>
    %26 = vector.extract_strided_slice %7 {offsets = [0, 8], sizes = [8, 8], strides = [1, 1]} : vector<8x32xf32> to vector<8x8xf32>
    %27 = vector.extract_strided_slice %8 {offsets = [0, 8], sizes = [8, 8], strides = [1, 1]} : vector<8x32xf32> to vector<8x8xf32>
    %cst_14 = arith.constant dense<0.000000e+00> : vector<8x8xf32>
    %28 = tpu.matmul %25, %26, %cst_14 {dimension_numbers = #tpu.dot_dimension_numbers<[1], [1], [0], [0], [0, 0, 1, 0], [], []>} : vector<8x8xf32>, vector<8x8xf32>, vector<8x8xf32> -> vector<8x8xf32>
    %cst_15 = arith.constant dense<0xFF800000> : vector<8xf32>
    %29 = vector.multi_reduction <maximumf>, %28, %cst_15 [1] : vector<8x8xf32> to vector<8xf32>
    %30 = vector.shape_cast %29 : vector<8xf32> to vector<8x1xf32>
    %31 = vector.broadcast %30 : vector<8x1xf32> to vector<8x8xf32>
    %32 = arith.subf %28, %31 : vector<8x8xf32>
    %33 = math.exp %32 : vector<8x8xf32>
    %cst_16 = arith.constant dense<0.000000e+00> : vector<8xf32>
    %34 = vector.multi_reduction <add>, %33, %cst_16 [1] : vector<8x8xf32> to vector<8xf32>
    %35 = vector.shape_cast %34 : vector<8xf32> to vector<8x1xf32>
    %cst_17 = arith.constant dense<0.000000e+00> : vector<8x8xf32>
    %36 = tpu.matmul %33, %27, %cst_17 {dimension_numbers = #tpu.dot_dimension_numbers<[1], [0], [0], [1], [0, 0, 1, 1], [], []>} : vector<8x8xf32>, vector<8x8xf32>, vector<8x8xf32> -> vector<8x8xf32>
    %cst_18 = arith.constant 1.000000e+00 : f32
    %37 = vector.broadcast %cst_18 : f32 to vector<8x1xf32>
    %38 = arith.divf %37, %35 : vector<8x1xf32>
    %39 = vector.broadcast %38 : vector<8x1xf32> to vector<8x8xf32>
    %40 = arith.mulf %36, %39 : vector<8x8xf32>
    %41 = vector.extract_strided_slice %6 {offsets = [0, 16], sizes = [8, 8], strides = [1, 1]} : vector<8x32xf32> to vector<8x8xf32>
    %42 = vector.extract_strided_slice %7 {offsets = [0, 16], sizes = [8, 8], strides = [1, 1]} : vector<8x32xf32> to vector<8x8xf32>
    %43 = vector.extract_strided_slice %8 {offsets = [0, 16], sizes = [8, 8], strides = [1, 1]} : vector<8x32xf32> to vector<8x8xf32>
    %cst_19 = arith.constant dense<0.000000e+00> : vector<8x8xf32>
    %44 = tpu.matmul %41, %42, %cst_19 {dimension_numbers = #tpu.dot_dimension_numbers<[1], [1], [0], [0], [0, 0, 1, 0], [], []>} : vector<8x8xf32>, vector<8x8xf32>, vector<8x8xf32> -> vector<8x8xf32>
    %cst_20 = arith.constant dense<0xFF800000> : vector<8xf32>
    %45 = vector.multi_reduction <maximumf>, %44, %cst_20 [1] : vector<8x8xf32> to vector<8xf32>
    %46 = vector.shape_cast %45 : vector<8xf32> to vector<8x1xf32>
    %47 = vector.broadcast %46 : vector<8x1xf32> to vector<8x8xf32>
    %48 = arith.subf %44, %47 : vector<8x8xf32>
    %49 = math.exp %48 : vector<8x8xf32>
    %cst_21 = arith.constant dense<0.000000e+00> : vector<8xf32>
    %50 = vector.multi_reduction <add>, %49, %cst_21 [1] : vector<8x8xf32> to vector<8xf32>
    %51 = vector.shape_cast %50 : vector<8xf32> to vector<8x1xf32>
    %cst_22 = arith.constant dense<0.000000e+00> : vector<8x8xf32>
    %52 = tpu.matmul %49, %43, %cst_22 {dimension_numbers = #tpu.dot_dimension_numbers<[1], [0], [0], [1], [0, 0, 1, 1], [], []>} : vector<8x8xf32>, vector<8x8xf32>, vector<8x8xf32> -> vector<8x8xf32>
    %cst_23 = arith.constant 1.000000e+00 : f32
    %53 = vector.broadcast %cst_23 : f32 to vector<8x1xf32>
    %54 = arith.divf %53, %51 : vector<8x1xf32>
    %55 = vector.broadcast %54 : vector<8x1xf32> to vector<8x8xf32>
    %56 = arith.mulf %52, %55 : vector<8x8xf32>
    %57 = vector.extract_strided_slice %6 {offsets = [0, 24], sizes = [8, 8], strides = [1, 1]} : vector<8x32xf32> to vector<8x8xf32>
    %58 = vector.extract_strided_slice %7 {offsets = [0, 24], sizes = [8, 8], strides = [1, 1]} : vector<8x32xf32> to vector<8x8xf32>
    %59 = vector.extract_strided_slice %8 {offsets = [0, 24], sizes = [8, 8], strides = [1, 1]} : vector<8x32xf32> to vector<8x8xf32>
    %cst_24 = arith.constant dense<0.000000e+00> : vector<8x8xf32>
    %60 = tpu.matmul %57, %58, %cst_24 {dimension_numbers = #tpu.dot_dimension_numbers<[1], [1], [0], [0], [0, 0, 1, 0], [], []>} : vector<8x8xf32>, vector<8x8xf32>, vector<8x8xf32> -> vector<8x8xf32>
    %cst_25 = arith.constant dense<0xFF800000> : vector<8xf32>
    %61 = vector.multi_reduction <maximumf>, %60, %cst_25 [1] : vector<8x8xf32> to vector<8xf32>
    %62 = vector.shape_cast %61 : vector<8xf32> to vector<8x1xf32>
    %63 = vector.broadcast %62 : vector<8x1xf32> to vector<8x8xf32>
    %64 = arith.subf %60, %63 : vector<8x8xf32>
    %65 = math.exp %64 : vector<8x8xf32>
    %cst_26 = arith.constant dense<0.000000e+00> : vector<8xf32>
    %66 = vector.multi_reduction <add>, %65, %cst_26 [1] : vector<8x8xf32> to vector<8xf32>
    %67 = vector.shape_cast %66 : vector<8xf32> to vector<8x1xf32>
    %cst_27 = arith.constant dense<0.000000e+00> : vector<8x8xf32>
    %68 = tpu.matmul %65, %59, %cst_27 {dimension_numbers = #tpu.dot_dimension_numbers<[1], [0], [0], [1], [0, 0, 1, 1], [], []>} : vector<8x8xf32>, vector<8x8xf32>, vector<8x8xf32> -> vector<8x8xf32>
    %cst_28 = arith.constant 1.000000e+00 : f32
    %69 = vector.broadcast %cst_28 : f32 to vector<8x1xf32>
    %70 = arith.divf %69, %67 : vector<8x1xf32>
    %71 = vector.broadcast %70 : vector<8x1xf32> to vector<8x8xf32>
    %72 = arith.mulf %68, %71 : vector<8x8xf32>
    %73 = tpu.concatenate %24, %40, %56, %72 in 1 : vector<8x8xf32>, vector<8x8xf32>, vector<8x8xf32>, vector<8x8xf32> -> vector<8x32xf32>
    %c0_29 = arith.constant 0 : index
    %c0_30 = arith.constant 0 : index
    %74 = vector.load %arg8[%c0_29, %c0_30] : memref<32x32xf32, #tpu.memory_space<vmem>>, vector<32x32xf32>
    %cst_31 = arith.constant dense<0.000000e+00> : vector<8x32xf32>
    %75 = tpu.matmul %73, %74, %cst_31 {dimension_numbers = #tpu.dot_dimension_numbers<[1], [1], [0], [0], [0, 0, 1, 0], [], []>} : vector<8x32xf32>, vector<32x32xf32>, vector<8x32xf32> -> vector<8x32xf32>
    %c0_32 = arith.constant 0 : index
    %c0_33 = arith.constant 0 : index
    %c0_34 = arith.constant 0 : index
    %76 = vector.load %arg9[%c0_32, %c0_33, %c0_34] : memref<1x8x32xf32, #tpu.memory_space<vmem>>, vector<1x8x32xf32>
    %77 = vector.shape_cast %76 : vector<1x8x32xf32> to vector<8x32xf32>
    %78 = vector.shape_cast %75 : vector<8x32xf32> to vector<1x8x32xf32>
    tpu.vector_store %arg9[%c0_32, %c0_33, %c0_34], %78 {strides = array<i32>} : memref<1x8x32xf32, #tpu.memory_space<vmem>>, vector<1x8x32xf32>,
    return
  }
  func.func @transform_0(%arg0: i32, %arg1: i32) -> (i32, i32, i32) {
    %c0_i32 = arith.constant 0 : i32
    %c0_i32_0 = arith.constant 0 : i32
    return %arg0, %arg1, %c0_i32 : i32, i32, i32
  }
  func.func @transform_1(%arg0: i32, %arg1: i32) -> (i32, i32, i32) {
    %c0_i32 = arith.constant 0 : i32
    %c0_i32_0 = arith.constant 0 : i32
    %c0_i32_1 = arith.constant 0 : i32
    return %arg0, %c0_i32, %c0_i32_0 : i32, i32, i32
  }
  func.func @transform_2(%arg0: i32, %arg1: i32) -> (i32, i32, i32) {
    %c0_i32 = arith.constant 0 : i32
    %c0_i32_0 = arith.constant 0 : i32
    %c0_i32_1 = arith.constant 0 : i32
    return %arg0, %c0_i32, %c0_i32_0 : i32, i32, i32
  }
  func.func @transform_3(%arg0: i32, %arg1: i32) -> (i32, i32) {
    %c0_i32 = arith.constant 0 : i32
    %c0_i32_0 = arith.constant 0 : i32
    %c0_i32_1 = arith.constant 0 : i32
    return %c0_i32, %c0_i32_0 : i32, i32
  }
  func.func @transform_4(%arg0: i32, %arg1: i32) -> (i32, i32) {
    %c0_i32 = arith.constant 0 : i32
    %c0_i32_0 = arith.constant 0 : i32
    %c0_i32_1 = arith.constant 0 : i32
    return %c0_i32, %c0_i32_0 : i32, i32
  }
  func.func @transform_5(%arg0: i32, %arg1: i32) -> (i32, i32) {
    %c0_i32 = arith.constant 0 : i32
    %c0_i32_0 = arith.constant 0 : i32
    %c0_i32_1 = arith.constant 0 : i32
    return %c0_i32, %c0_i32_0 : i32, i32
  }
  func.func @transform_6(%arg0: i32, %arg1: i32) -> (i32, i32) {
    %c0_i32 = arith.constant 0 : i32
    %c0_i32_0 = arith.constant 0 : i32
    %c0_i32_1 = arith.constant 0 : i32
    return %c0_i32, %c0_i32_0 : i32, i32
  }
  func.func @transform_7(%arg0: i32, %arg1: i32) -> (i32, i32, i32) {
    %c0_i32 = arith.constant 0 : i32
    %c0_i32_0 = arith.constant 0 : i32
    return %arg0, %arg1, %c0_i32 : i32, i32, i32
  }
}

</mosaic_0001>

<llo_original>
// kernel: tpu_custom_call.1
$region0: #{tpu_custom_call.1}
  #allocation0 [shape = 'u32[]', space=smem, size = 0x4, offset = 0x4, fixed_abs, tag = 'smem constant byte address 0x4 - core index']
  #allocation1 [shape = 'u32[144,128]{1,0:T(1,128)}', space=vmem, size = 0x12000, scoped, tag = 'internal scratch']
  #allocation2 [shape = 'f32[8,32]{1,0:T(8,128)}', space=vmem, size = 0x1000, scoped, tag = 'scratch operand']
  #allocation3 [shape = 'f32[8,32]{1,0:T(8,128)}', space=vmem, size = 0x1000, scoped, tag = 'scratch operand']
  %s0 = inlined_call_operand.hbm [shape: f32[2,8,32], index: 0, kind: input, shape index: {}]
  %s1 = inlined_call_operand.hbm [shape: f32[2,8,32], index: 1, kind: input, shape index: {}]
  %s2 = inlined_call_operand.hbm [shape: f32[2,8,32], index: 2, kind: input, shape index: {}]
  %s3 = inlined_call_operand.hbm [shape: f32[32,32], index: 3, kind: input, shape index: {}]
  %s4 = inlined_call_operand.hbm [shape: f32[32,32], index: 4, kind: input, shape index: {}]
  %s5 = inlined_call_operand.hbm [shape: f32[32,32], index: 5, kind: input, shape index: {}]
  %s6 = inlined_call_operand.hbm [shape: f32[32,32], index: 6, kind: input, shape index: {}]
  %s7 = inlined_call_operand.hbm [shape: f32[2,8,32], index: 7, kind: output, shape index: {}]
  %s8 = sld [smem:[#allocation0]]
  $region93: #{tpu_custom_call.1} parent=0
    _
  %s10 = ssub.s32 1, %s8
  %s11 = scalar_select 0, %s10, %s8
  $region1: #{tpu_custom_call.1} parent=0
    #allocation4 [shape = 'u8[8192]{0}', space=vmem, size = 0x2000, scoped, tag = 'input window, operand 0']
    #allocation5 [shape = 's32[2]{0}', space=sflag, size = 0x8, scoped, tag = 'scoped memory for tpu_custom_call.1']
    #allocation6 [shape = 's32[2]{0}', space=sflag, size = 0x8, scoped, tag = 'scoped memory for tpu_custom_call.1']
    #allocation7 [shape = 'u8[8192]{0}', space=vmem, size = 0x2000, scoped, tag = 'input window, operand 1']
    #allocation8 [shape = 's32[2]{0}', space=sflag, size = 0x8, scoped, tag = 'scoped memory for tpu_custom_call.1']
    #allocation9 [shape = 'u8[8192]{0}', space=vmem, size = 0x2000, scoped, tag = 'input window, operand 2']
    #allocation10 [shape = 'u8[16384]{0}', space=vmem, size = 0x4000, scoped, tag = 'input window, operand 3, single buffered']
    #allocation11 [shape = 's32[1]{0}', space=sflag, size = 0x4, scoped, tag = 'scoped memory for tpu_custom_call.1']
    #allocation12 [shape = 'u8[16384]{0}', space=vmem, size = 0x4000, scoped, tag = 'input window, operand 4, single buffered']
    #allocation13 [shape = 'u8[16384]{0}', space=vmem, size = 0x4000, scoped, tag = 'input window, operand 5, single buffered']
    #allocation14 [shape = 's32[1]{0}', space=sflag, size = 0x4, scoped, tag = 'scoped memory for tpu_custom_call.1']
    #allocation15 [shape = 'u8[16384]{0}', space=vmem, size = 0x4000, scoped, tag = 'input window, operand 6, single buffered']
    #allocation16 [shape = 'u8[8192]{0}', space=vmem, size = 0x2000, scoped, tag = 'output window, operand 0']
    %12 = vsyncpa [#allocation5], 0
    %s13 = scalar_lea.sflag [#allocation5], 1
    %14 = vsyncpa %s13, 0
    %15 = vsyncpa [#allocation8], 0
    %s16 = scalar_lea.sflag [#allocation8], 1
    %17 = vsyncpa %s16, 0
    %18 = vsyncpa [#allocation11], 0
    %19 = vsyncpa [#allocation14], 0
    %20 = vsyncpa [#allocation6], 0
    %s21 = scalar_lea.sflag [#allocation6], 1
    %22 = vsyncpa %s21, 0
    loop: start=0, step=1, limit=4
    $region2: #{tpu_custom_call.1} parent=1 // loop_pre_header
      _
    $region3: #{tpu_custom_call.1} parent=1 // loop_header
      %s24 = sphi 0, %s28
      %p25 = scmp.ge.s32.totalorder %s24, 4
      %s31 = sphi 0, %s43
      %s32 = sphi 0, %s39
      %s33 = sphi 0, %s31
      %s34 = sphi 0, %s32
      %s35 = sphi 0, %s33
      %s36 = sphi 0, %s34
      %s48 = sphi 0, %s50
      %s51 = sphi 0, %s48
      %s52 = sphi 0, %s51
      %s68 = sphi 0, %s52
      %s74 = sphi 0, %s76
      %s77 = sphi 0, %s74
      %s78 = sphi 0, %s77
      %s94 = sphi 0, %s78
      %s100 = sphi 0, %s102
      %s103 = sphi 0, %s100
      %s104 = sphi 0, %s103
      %s120 = sphi 0, %s104
      %s124 = sphi 0, %s124
      %s126 = sphi 0, %s124
      %s127 = sphi 0, %s126
      %s141 = sphi 0, %s127
      %s145 = sphi 0, %s145
      %s147 = sphi 0, %s145
      %s148 = sphi 0, %s147
      %s162 = sphi 0, %s148
      %s166 = sphi 0, %s166
      %s168 = sphi 0, %s166
      %s169 = sphi 0, %s168
      %s183 = sphi 0, %s169
      %s187 = sphi 0, %s187
      %s189 = sphi 0, %s187
      %s190 = sphi 0, %s189
      %s204 = sphi 0, %s190
      %s212 = sphi 0, %s214
      %s215 = sphi 0, %s212
      %s216 = sphi 0, %s215
      %s232 = sphi 0, %s216
    $region4: #{tpu_custom_call.1} parent=1 // loop_header_branch
      %27 = sbr.rel (%p25) target = $region8
    $region5: #{tpu_custom_call.1} parent=1 // loop_body
      %s29 = ssub.s32 %s24, 1
      %s30 = ssub.s32 %s24, 2
      %s37 = sadd.s32 1, %s32
      %p38 = scmp.ge.s32.totalorder %s37, 1
      %s39 = scalar_select %p38, 0, %s37
      %s40 = sadd.s32 1, %s31
      %s41 = scalar_select %p38, %s40, %s31
      %p42 = scmp.ge.s32.totalorder %s41, 2
      %s43 = scalar_select %p42, 0, %s41
      %s44 = ssub.s32 %s31, %s43
      %s45 = ssub.s32 %s32, %s39
      %s46 = sor.u32 %s44, %s45
      %p47 = scmp.eq.s32.totalorder %s46, 0
      %s49 = sadd.s32 %s48, 1
      %s50 = scalar_select %p47, %s48, %s49
      %p53 = pneg %p47
      %p54 = scmp.eq.s32.totalorder %s24, 1
      %p55 = por %p53, %p54
      %p56 = scmp.ne.s32.totalorder %s48, %s51
      %p57 = scmp.eq.s32.totalorder %s24, 0
      %p58 = por %p56, %p57
      %p59 = scmp.ne.s32.totalorder %s48, %s51
      %p60 = scmp.eq.s32.totalorder %s29, 1
      %p61 = por %p59, %p60
      %p62 = scmp.ne.s32.totalorder %s51, %s52
      %p63 = scmp.eq.s32.totalorder %s29, 0
      %p64 = por %p62, %p63
      %p65 = scmp.ne.s32.totalorder %s51, %s52
      %p66 = scmp.eq.s32.totalorder %s30, 1
      %p67 = por %p65, %p66
      %p69 = scmp.ne.s32.totalorder %s52, %s68
      %p70 = scmp.eq.s32.totalorder %s30, 0
      %p71 = por %p69, %p70
      %s72 = ssub.s32 %s31, %s43
      %p73 = scmp.eq.s32.totalorder %s72, 0
      %s75 = sadd.s32 %s74, 1
      %s76 = scalar_select %p73, %s74, %s75
      %p79 = pneg %p73
      %p80 = scmp.eq.s32.totalorder %s24, 1
      %p81 = por %p79, %p80
      %p82 = scmp.ne.s32.totalorder %s74, %s77
      %p83 = scmp.eq.s32.totalorder %s24, 0
      %p84 = por %p82, %p83
      %p85 = scmp.ne.s32.totalorder %s74, %s77
      %p86 = scmp.eq.s32.totalorder %s29, 1
      %p87 = por %p85, %p86
      %p88 = scmp.ne.s32.totalorder %s77, %s78
      %p89 = scmp.eq.s32.totalorder %s29, 0
      %p90 = por %p88, %p89
      %p91 = scmp.ne.s32.totalorder %s77, %s78
      %p92 = scmp.eq.s32.totalorder %s30, 1
      %p93 = por %p91, %p92
      %p95 = scmp.ne.s32.totalorder %s78, %s94
      %p96 = scmp.eq.s32.totalorder %s30, 0
      %p97 = por %p95, %p96
      %s98 = ssub.s32 %s31, %s43
      %p99 = scmp.eq.s32.totalorder %s98, 0
      %s101 = sadd.s32 %s100, 1
      %s102 = scalar_select %p99, %s100, %s101
      %p105 = pneg %p99
      %p106 = scmp.eq.s32.totalorder %s24, 1
      %p107 = por %p105, %p106
      %p108 = scmp.ne.s32.totalorder %s100, %s103
      %p109 = scmp.eq.s32.totalorder %s24, 0
      %p110 = por %p108, %p109
      %p111 = scmp.ne.s32.totalorder %s100, %s103
      %p112 = scmp.eq.s32.totalorder %s29, 1
      %p113 = por %p111, %p112
      %p114 = scmp.ne.s32.totalorder %s103, %s104
      %p115 = scmp.eq.s32.totalorder %s29, 0
      %p116 = por %p114, %p115
      %p117 = scmp.ne.s32.totalorder %s103, %s104
      %p118 = scmp.eq.s32.totalorder %s30, 1
      %p119 = por %p117, %p118
      %p121 = scmp.ne.s32.totalorder %s104, %s120
      %p122 = scmp.eq.s32.totalorder %s30, 0
      %p123 = por %p121, %p122
      %s125 = sadd.s32 %s124, 1
      %p128 = scmp.eq.s32.totalorder %s24, 1
      %p129 = scmp.ne.s32.totalorder %s124, %s126
      %p130 = scmp.eq.s32.totalorder %s24, 0
      %p131 = por %p129, %p130
      %p132 = scmp.ne.s32.totalorder %s124, %s126
      %p133 = scmp.eq.s32.totalorder %s29, 1
      %p134 = por %p132, %p133
      %p135 = scmp.ne.s32.totalorder %s126, %s127
      %p136 = scmp.eq.s32.totalorder %s29, 0
      %p137 = por %p135, %p136
      %p138 = scmp.ne.s32.totalorder %s126, %s127
      %p139 = scmp.eq.s32.totalorder %s30, 1
      %p140 = por %p138, %p139
      %p142 = scmp.ne.s32.totalorder %s127, %s141
      %p143 = scmp.eq.s32.totalorder %s30, 0
      %p144 = por %p142, %p143
      %s146 = sadd.s32 %s145, 1
      %p149 = scmp.eq.s32.totalorder %s24, 1
      %p150 = scmp.ne.s32.totalorder %s145, %s147
      %p151 = scmp.eq.s32.totalorder %s24, 0
      %p152 = por %p150, %p151
      %p153 = scmp.ne.s32.totalorder %s145, %s147
      %p154 = scmp.eq.s32.totalorder %s29, 1
      %p155 = por %p153, %p154
      %p156 = scmp.ne.s32.totalorder %s147, %s148
      %p157 = scmp.eq.s32.totalorder %s29, 0
      %p158 = por %p156, %p157
      %p159 = scmp.ne.s32.totalorder %s147, %s148
      %p160 = scmp.eq.s32.totalorder %s30, 1
      %p161 = por %p159, %p160
      %p163 = scmp.ne.s32.totalorder %s148, %s162
      %p164 = scmp.eq.s32.totalorder %s30, 0
      %p165 = por %p163, %p164
      %s167 = sadd.s32 %s166, 1
      %p170 = scmp.eq.s32.totalorder %s24, 1
      %p171 = scmp.ne.s32.totalorder %s166, %s168
      %p172 = scmp.eq.s32.totalorder %s24, 0
      %p173 = por %p171, %p172
      %p174 = scmp.ne.s32.totalorder %s166, %s168
      %p175 = scmp.eq.s32.totalorder %s29, 1
      %p176 = por %p174, %p175
      %p177 = scmp.ne.s32.totalorder %s168, %s169
      %p178 = scmp.eq.s32.totalorder %s29, 0
      %p179 = por %p177, %p178
      %p180 = scmp.ne.s32.totalorder %s168, %s169
      %p181 = scmp.eq.s32.totalorder %s30, 1
      %p182 = por %p180, %p181
      %p184 = scmp.ne.s32.totalorder %s169, %s183
      %p185 = scmp.eq.s32.totalorder %s30, 0
      %p186 = por %p184, %p185
      %s188 = sadd.s32 %s187, 1
      %p191 = scmp.eq.s32.totalorder %s24, 1
      %p192 = scmp.ne.s32.totalorder %s187, %s189
      %p193 = scmp.eq.s32.totalorder %s24, 0
      %p194 = por %p192, %p193
      %p195 = scmp.ne.s32.totalorder %s187, %s189
      %p196 = scmp.eq.s32.totalorder %s29, 1
      %p197 = por %p195, %p196
      %p198 = scmp.ne.s32.totalorder %s189, %s190
      %p199 = scmp.eq.s32.totalorder %s29, 0
      %p200 = por %p198, %p199
      %p201 = scmp.ne.s32.totalorder %s189, %s190
      %p202 = scmp.eq.s32.totalorder %s30, 1
      %p203 = por %p201, %p202
      %p205 = scmp.ne.s32.totalorder %s190, %s204
      %p206 = scmp.eq.s32.totalorder %s30, 0
      %p207 = por %p205, %p206
      %s208 = ssub.s32 %s31, %s43
      %s209 = ssub.s32 %s32, %s39
      %s210 = sor.u32 %s208, %s209
      %p211 = scmp.eq.s32.totalorder %s210, 0
      %s213 = sadd.s32 %s212, 1
      %s214 = scalar_select %p211, %s212, %s213
      %p217 = pneg %p211
      %p218 = scmp.eq.s32.totalorder %s24, 1
      %p219 = por %p217, %p218
      %p220 = scmp.ne.s32.totalorder %s212, %s215
      %p221 = scmp.eq.s32.totalorder %s24, 0
      %p222 = por %p220, %p221
      %p223 = scmp.ne.s32.totalorder %s212, %s215
      %p224 = scmp.eq.s32.totalorder %s29, 1
      %p225 = por %p223, %p224
      %p226 = scmp.ne.s32.totalorder %s215, %s216
      %p227 = scmp.eq.s32.totalorder %s29, 0
      %p228 = por %p226, %p227
      %p229 = scmp.ne.s32.totalorder %s215, %s216
      %p230 = scmp.eq.s32.totalorder %s30, 1
      %p231 = por %p229, %p230
      %p233 = scmp.ne.s32.totalorder %s216, %s232
      %p234 = scmp.eq.s32.totalorder %s30, 0
      %p235 = por %p233, %p234
      %p236 = scmp.le.s32.totalorder 1, %s24
      %p237 = scmp.lt.s32.totalorder %s24, 3
      %p238 = pnand %p236, %p237
      %p239 = pneg %p238
      // Predicated region
      $region9: #{tpu_custom_call.1} parent=5 // pred_check
        _
      $region10: #{tpu_custom_call.1} parent=5 // pred_check_branch
        %241 = sbr.rel (%p238) target = $region12
      $region11: #{tpu_custom_call.1} parent=5 // pred_region
        %s242 = ssub.s32 %s24, 1
        // Predicated region
        $region13: #{tpu_custom_call.1} parent=11 // pred_check
          %p243 = pneg %p137
        $region14: #{tpu_custom_call.1} parent=11 // pred_check_branch
          %245 = sbr.rel (%p243) target = $region16
        $region15: #{tpu_custom_call.1} parent=11 // pred_region
          %s247 = ssub.s32 512, 512
          %248 = vsyncadd [#allocation11], %s247
          %s249 = sshll.u32 [#allocation10], 4
          %s250 = int_to_ptr.vmem [resolvable:$true] %s249
          %255 = dma.hbm_to_vmem [thread:$0]  %s3, 512, %s250, [#allocation11], 128, 128, 8
        $region16: #{tpu_custom_call.1} parent=11 // pred_fallthru
          _
        // Predicated region
        $region17: #{tpu_custom_call.1} parent=11 // pred_check
          %p256 = pneg %p158
        $region18: #{tpu_custom_call.1} parent=11 // pred_check_branch
          %258 = sbr.rel (%p256) target = $region20
        $region19: #{tpu_custom_call.1} parent=11 // pred_region
          %s260 = ssub.s32 512, 512
          %261 = vsyncadd [#allocation11], %s260
          %s262 = sshll.u32 [#allocation12], 4
          %s263 = int_to_ptr.vmem [resolvable:$true] %s262
          %268 = dma.hbm_to_vmem [thread:$0]  %s4, 512, %s263, [#allocation11], 128, 128, 8
        $region20: #{tpu_custom_call.1} parent=11 // pred_fallthru
          _
        // Predicated region
        $region21: #{tpu_custom_call.1} parent=11 // pred_check
          %p269 = pneg %p179
        $region22: #{tpu_custom_call.1} parent=11 // pred_check_branch
          %271 = sbr.rel (%p269) target = $region24
        $region23: #{tpu_custom_call.1} parent=11 // pred_region
          %s273 = ssub.s32 512, 512
          %274 = vsyncadd [#allocation14], %s273
          %s275 = sshll.u32 [#allocation13], 4
          %s276 = int_to_ptr.vmem [resolvable:$true] %s275
          %281 = dma.hbm_to_vmem [thread:$0]  %s5, 512, %s276, [#allocation14], 128, 128, 8
        $region24: #{tpu_custom_call.1} parent=11 // pred_fallthru
          _
        // Predicated region
        $region25: #{tpu_custom_call.1} parent=11 // pred_check
          %p282 = pneg %p200
        $region26: #{tpu_custom_call.1} parent=11 // pred_check_branch
          %284 = sbr.rel (%p282) target = $region28
        $region27: #{tpu_custom_call.1} parent=11 // pred_region
          %s286 = ssub.s32 512, 512
          %287 = vsyncadd [#allocation14], %s286
          %s288 = sshll.u32 [#allocation15], 4
          %s289 = int_to_ptr.vmem [resolvable:$true] %s288
          %294 = dma.hbm_to_vmem [thread:$0]  %s6, 512, %s289, [#allocation14], 128, 128, 8
        $region28: #{tpu_custom_call.1} parent=11 // pred_fallthru
          _
      $region12: #{tpu_custom_call.1} parent=5 // pred_fallthru
        _
      %p295 = scmp.lt.s32.totalorder %s24, 2
      // Predicated region
      $region29: #{tpu_custom_call.1} parent=5 // pred_check
        %p296 = pneg %p295
      $region30: #{tpu_custom_call.1} parent=5 // pred_check_branch
        %298 = sbr.rel (%p296) target = $region32
      $region31: #{tpu_custom_call.1} parent=5 // pred_region
        // Predicated region
        $region33: #{tpu_custom_call.1} parent=31 // pred_check
          %p299 = pneg %p58
        $region34: #{tpu_custom_call.1} parent=31 // pred_check_branch
          %301 = sbr.rel (%p299) target = $region36
        $region35: #{tpu_custom_call.1} parent=31 // pred_region
          %s302 = sand.u32 %s48, 1
          %s303 = scalar_lea.sflag [#allocation5], %s302
          %s304 = sand.u32 %s48, 1
          %s305 = smul.addr %s304, 8
          %s306 = scalar_lea.vmem [#allocation4], %s305
          %s308 = ssub.s32 128, 128
          %309 = vsyncadd %s303, %s308
          %s310 = sadd.s32 %s32, %s31
          %s311 = smul.addr %s310, 128
          %s312 = scalar_lea.hbm %s0, %s311
          %s314 = sshll.u32 %s306, 4
          %s315 = int_to_ptr.vmem [resolvable:$true] %s314
          %317 = dma.hbm_to_vmem [thread:$0]  %s312, 128, %s315, %s303
        $region36: #{tpu_custom_call.1} parent=31 // pred_fallthru
          _
        // Predicated region
        $region37: #{tpu_custom_call.1} parent=31 // pred_check
          %p318 = pneg %p84
        $region38: #{tpu_custom_call.1} parent=31 // pred_check_branch
          %320 = sbr.rel (%p318) target = $region40
        $region39: #{tpu_custom_call.1} parent=31 // pred_region
          %s321 = sand.u32 %s24, 1
          %s322 = scalar_lea.sflag [#allocation8], %s321
          %s323 = sand.u32 %s74, 1
          %s324 = smul.addr %s323, 8
          %s325 = scalar_lea.vmem [#allocation7], %s324
          %s327 = ssub.s32 128, 128
          %328 = vsyncadd %s322, %s327
          %s329 = smul.addr %s31, 128
          %s330 = scalar_lea.hbm %s1, %s329
          %s332 = sshll.u32 %s325, 4
          %s333 = int_to_ptr.vmem [resolvable:$true] %s332
          %335 = dma.hbm_to_vmem [thread:$0]  %s330, 128, %s333, %s322
        $region40: #{tpu_custom_call.1} parent=31 // pred_fallthru
          _
        // Predicated region
        $region41: #{tpu_custom_call.1} parent=31 // pred_check
          %p336 = pneg %p110
        $region42: #{tpu_custom_call.1} parent=31 // pred_check_branch
          %338 = sbr.rel (%p336) target = $region44
        $region43: #{tpu_custom_call.1} parent=31 // pred_region
          %s339 = sand.u32 %s24, 1
          %s340 = scalar_lea.sflag [#allocation8], %s339
          %s341 = sand.u32 %s100, 1
          %s342 = smul.addr %s341, 8
          %s343 = scalar_lea.vmem [#allocation9], %s342
          %s345 = ssub.s32 128, 128
          %346 = vsyncadd %s340, %s345
          %s347 = smul.addr %s31, 128
          %s348 = scalar_lea.hbm %s2, %s347
          %s350 = sshll.u32 %s343, 4
          %s351 = int_to_ptr.vmem [resolvable:$true] %s350
          %353 = dma.hbm_to_vmem [thread:$0]  %s348, 128, %s351, %s340
        $region44: #{tpu_custom_call.1} parent=31 // pred_fallthru
          _
      $region32: #{tpu_custom_call.1} parent=5 // pred_fallthru
        _
      %p354 = scmp.le.s32.totalorder 1, %s24
      %p355 = scmp.lt.s32.totalorder %s24, 3
      %p356 = pnand %p354, %p355
      %p357 = pneg %p356
      // Predicated region
      $region45: #{tpu_custom_call.1} parent=5 // pred_check
        _
      $region46: #{tpu_custom_call.1} parent=5 // pred_check_branch
        %359 = sbr.rel (%p356) target = $region48
      $region47: #{tpu_custom_call.1} parent=5 // pred_region
        %s360 = ssub.s32 %s24, 1
        %s361 = sand.u32 %s51, 1
        %s362 = scalar_lea.sflag [#allocation5], %s361
        %s363 = sand.u32 %s51, 1
        %s364 = smul.addr %s363, 8
        %s365 = scalar_lea.vmem [#allocation4], %s364
        // Predicated region
        $region49: #{tpu_custom_call.1} parent=47 // pred_check
          %p366 = pneg %p64
        $region50: #{tpu_custom_call.1} parent=47 // pred_check_branch
          %368 = sbr.rel (%p366) target = $region52
        $region51: #{tpu_custom_call.1} parent=47 // pred_region
          %369 = dma.done %s362, 128
        $region52: #{tpu_custom_call.1} parent=47 // pred_fallthru
          _
        %s370 = sand.u32 %s29, 1
        %s371 = scalar_lea.sflag [#allocation8], %s370
        %s372 = sand.u32 %s77, 1
        %s373 = smul.addr %s372, 8
        %s374 = scalar_lea.vmem [#allocation7], %s373
        // Predicated region
        $region53: #{tpu_custom_call.1} parent=47 // pred_check
          %p375 = pneg %p90
        $region54: #{tpu_custom_call.1} parent=47 // pred_check_branch
          %377 = sbr.rel (%p375) target = $region56
        $region55: #{tpu_custom_call.1} parent=47 // pred_region
          %378 = dma.done %s371, 128
        $region56: #{tpu_custom_call.1} parent=47 // pred_fallthru
          _
        %s379 = sand.u32 %s29, 1
        %s380 = scalar_lea.sflag [#allocation8], %s379
        %s381 = sand.u32 %s103, 1
        %s382 = smul.addr %s381, 8
        %s383 = scalar_lea.vmem [#allocation9], %s382
        // Predicated region
        $region57: #{tpu_custom_call.1} parent=47 // pred_check
          %p384 = pneg %p116
        $region58: #{tpu_custom_call.1} parent=47 // pred_check_branch
          %386 = sbr.rel (%p384) target = $region60
        $region59: #{tpu_custom_call.1} parent=47 // pred_region
          %387 = dma.done %s380, 128
        $region60: #{tpu_custom_call.1} parent=47 // pred_fallthru
          _
        // Predicated region
        $region61: #{tpu_custom_call.1} parent=47 // pred_check
          %p388 = pneg %p137
        $region62: #{tpu_custom_call.1} parent=47 // pred_check_branch
          %390 = sbr.rel (%p388) target = $region64
        $region63: #{tpu_custom_call.1} parent=47 // pred_region
          %391 = dma.done [#allocation11], 512
        $region64: #{tpu_custom_call.1} parent=47 // pred_fallthru
          _
        // Predicated region
        $region65: #{tpu_custom_call.1} parent=47 // pred_check
          %p392 = pneg %p158
        $region66: #{tpu_custom_call.1} parent=47 // pred_check_branch
          %394 = sbr.rel (%p392) target = $region68
        $region67: #{tpu_custom_call.1} parent=47 // pred_region
          %395 = dma.done [#allocation11], 512
        $region68: #{tpu_custom_call.1} parent=47 // pred_fallthru
          _
        // Predicated region
        $region69: #{tpu_custom_call.1} parent=47 // pred_check
          %p396 = pneg %p179
        $region70: #{tpu_custom_call.1} parent=47 // pred_check_branch
          %398 = sbr.rel (%p396) target = $region72
        $region71: #{tpu_custom_call.1} parent=47 // pred_region
          %399 = dma.done [#allocation14], 512
        $region72: #{tpu_custom_call.1} parent=47 // pred_fallthru
          _
        // Predicated region
        $region73: #{tpu_custom_call.1} parent=47 // pred_check
          %p400 = pneg %p200
        $region74: #{tpu_custom_call.1} parent=47 // pred_check_branch
          %402 = sbr.rel (%p400) target = $region76
        $region75: #{tpu_custom_call.1} parent=47 // pred_region
          %403 = dma.done [#allocation14], 512
        $region76: #{tpu_custom_call.1} parent=47 // pred_fallthru
          _
        %s404 = sand.u32 %s51, 1
        %s405 = scalar_lea.sflag [#allocation5], %s404
        %s406 = sand.u32 %s51, 1
        %s407 = smul.addr %s406, 8
        %s408 = scalar_lea.vmem [#allocation4], %s407
        %p409 = pneg %p64
        %p410 = pneg %p61
        %s411 = sand.u32 %s29, 1
        %s412 = scalar_lea.sflag [#allocation8], %s411
        %s413 = sand.u32 %s77, 1
        %s414 = smul.addr %s413, 8
        %s415 = scalar_lea.vmem [#allocation7], %s414
        %p416 = pneg %p90
        %p417 = pneg %p87
        %s418 = sand.u32 %s29, 1
        %s419 = scalar_lea.sflag [#allocation8], %s418
        %s420 = sand.u32 %s103, 1
        %s421 = smul.addr %s420, 8
        %s422 = scalar_lea.vmem [#allocation9], %s421
        %p423 = pneg %p116
        %p424 = pneg %p113
        %p425 = pneg %p137
        %p426 = pneg %p134
        %p427 = pneg %p158
        %p428 = pneg %p155
        %p429 = pneg %p179
        %p430 = pneg %p176
        %p431 = pneg %p200
        %p432 = pneg %p197
        %p433 = pneg %p228
        %p434 = pneg %p225
        %s435 = sand.u32 %s215, 1
        %s436 = scalar_lea.sflag [#allocation6], %s435
        %s437 = sand.u32 %s215, 1
        %s438 = smul.addr %s437, 8
        %s439 = scalar_lea.vmem [#allocation16], %s438
        %p440 = scmp.eq.s32.totalorder %s34, 0
        // Predicated region
        $region77: #{tpu_custom_call.1} parent=47 // pred_check
          %p441 = pneg %p440
        $region78: #{tpu_custom_call.1} parent=47 // pred_check_branch
          %443 = sbr.rel (%p441) target = $region80
        $region79: #{tpu_custom_call.1} parent=47 // pred_region
          %v444 = vld [vmem:[%s374] sm:$0xff]
          %v445 = vld [vmem:[%s383] sm:$0xff]
          %v446 = vld [vmem:[#allocation12] sm:$0xff]
          %v447 = vld [vmem:[#allocation12 + $0x8] sm:$0xff]
          %v448 = vld [vmem:[#allocation12 + $0x10] sm:$0xff]
          %v449 = vld [vmem:[#allocation12 + $0x18] sm:$0xff]
          %vm450 = vcmask 261120
          %v452 = vsel %vm450, %v444, 0
          %v455 = vsel %vm450, %v446, 0
          %v458 = vsel %vm450, %v447, 0
          %v461 = vsel %vm450, %v448, 0
          %v464 = vsel %vm450, %v449, 0
          %466 = vmatprep.subr.mxu0 0.0
          %467 = vmatpush1.xpose.msra.mxu0 %v455
          %468 = vmatprep.subr.mxu0 0.0
          %469 = vmatpush1.xpose.msra.mxu0 %v458
          %470 = vmatprep.subr.mxu0 0.0
          %471 = vmatpush1.xpose.msra.mxu0 %v461
          %472 = vmatprep.subr.mxu0 0.0
          %473 = vmatpush1.xpose.msra.mxu0 %v464
          %474 = vmatprep.subr.mxu0 0.0
          %475 = vmatpush1.xpose.msra.mxu0 0.0
          %476 = vmatprep.subr.mxu0 0.0
          %477 = vmatpush1.xpose.msra.mxu0 0.0
          %478 = vmatprep.subr.mxu0 0.0
          %479 = vmatpush1.xpose.msra.mxu0 0.0
          %480 = vmatprep.subr.mxu0 0.0
          %481 = vmatpush1.xpose.msra.mxu0 0.0
          %482 = vmatprep.subr.mxu0 0.0
          %483 = vmatpush1.xpose.msra.mxu0 0.0
          %484 = vmatprep.subr.mxu0 0.0
          %485 = vmatpush1.xpose.msra.mxu0 0.0
          %486 = vmatprep.subr.mxu0 0.0
          %487 = vmatpush1.xpose.msra.mxu0 0.0
          %488 = vmatprep.subr.mxu0 0.0
          %489 = vmatpush1.xpose.msra.mxu0 0.0
          %490 = vmatprep.subr.mxu0 0.0
          %491 = vmatpush1.xpose.msra.mxu0 0.0
          %492 = vmatprep.subr.mxu0 0.0
          %493 = vmatpush1.xpose.msra.mxu0 0.0
          %494 = vmatprep.subr.mxu0 0.0
          %495 = vmatpush1.xpose.msra.mxu0 0.0
          %496 = vmatprep.subr.mxu0 0.0
          %497 = vmatpush1.xpose.msra.mxu0 0.0
          %498 = vmatprep.subr.mxu0 0.0
          %499 = vmatpush1.xpose.msra.mxu0 0.0
          %500 = vmatprep.subr.mxu0 0.0
          %501 = vmatpush1.xpose.msra.mxu0 0.0
          %502 = vmatprep.subr.mxu0 0.0
          %503 = vmatpush1.xpose.msra.mxu0 0.0
          %504 = vmatprep.subr.mxu0 0.0
          %505 = vmatpush1.xpose.msra.mxu0 0.0
          %506 = vmatprep.subr.mxu0 0.0
          %507 = vmatpush1.xpose.msra.mxu0 0.0
          %508 = vmatprep.subr.mxu0 0.0
          %509 = vmatpush1.xpose.msra.mxu0 0.0
          %510 = vmatprep.subr.mxu0 0.0
          %511 = vmatpush1.xpose.msra.mxu0 0.0
          %512 = vmatprep.subr.mxu0 0.0
          %513 = vmatpush1.xpose.msra.mxu0 0.0
          %514 = vmatprep.subr.mxu0 0.0
          %515 = vmatpush1.xpose.msra.mxu0 0.0
          %516 = vmatprep.subr.mxu0 0.0
          %517 = vmatpush1.xpose.msra.mxu0 0.0
          %518 = vmatprep.subr.mxu0 0.0
          %519 = vmatpush1.xpose.msra.mxu0 0.0
          %520 = vmatprep.subr.mxu0 0.0
          %521 = vmatpush1.xpose.msra.mxu0 0.0
          %522 = vmatprep.subr.mxu0 0.0
          %523 = vmatpush1.xpose.msra.mxu0 0.0
          %524 = vmatprep.subr.mxu0 0.0
          %525 = vmatpush1.xpose.msra.mxu0 0.0
          %526 = vmatprep.subr.mxu0 0.0
          %527 = vmatpush1.xpose.msra.mxu0 0.0
          %528 = vmatprep.subr.mxu0 0.0
          %529 = vmatpush1.xpose.msra.mxu0 0.0
          %530 = vmatprep.mubr.f32.mxu0 0.0
          %531 = vmatmul.mubr.f32.gmra.mrb[0].mxu0 %v452
          %v532 = vpop.f32.mrb[0].mxu0
          %v533 = vadd.f32 0.0, %v532
          %v534 = vpop.f32.mrb[0].mxu0
          %535 = vdwg.mxu0
          %536 = vst.msk [vmem:[#allocation2] sm:$0xff] %vm450, %v533
          %v537 = vld [vmem:[#allocation13] sm:$0xff]
          %v538 = vld [vmem:[#allocation13 + $0x8] sm:$0xff]
          %v539 = vld [vmem:[#allocation13 + $0x10] sm:$0xff]
          %v540 = vld [vmem:[#allocation13 + $0x18] sm:$0xff]
          %v542 = vsel %vm450, %v445, 0
          %v545 = vsel %vm450, %v537, 0
          %v548 = vsel %vm450, %v538, 0
          %v551 = vsel %vm450, %v539, 0
          %v554 = vsel %vm450, %v540, 0
          %556 = vmatprep.subr.mxu0 0.0
          %557 = vmatpush1.xpose.msra.mxu0 %v545
          %558 = vmatprep.subr.mxu0 0.0
          %559 = vmatpush1.xpose.msra.mxu0 %v548
          %560 = vmatprep.subr.mxu0 0.0
          %561 = vmatpush1.xpose.msra.mxu0 %v551
          %562 = vmatprep.subr.mxu0 0.0
          %563 = vmatpush1.xpose.msra.mxu0 %v554
          %564 = vmatprep.subr.mxu0 0.0
          %565 = vmatpush1.xpose.msra.mxu0 0.0
          %566 = vmatprep.subr.mxu0 0.0
          %567 = vmatpush1.xpose.msra.mxu0 0.0
          %568 = vmatprep.subr.mxu0 0.0
          %569 = vmatpush1.xpose.msra.mxu0 0.0
          %570 = vmatprep.subr.mxu0 0.0
          %571 = vmatpush1.xpose.msra.mxu0 0.0
          %572 = vmatprep.subr.mxu0 0.0
          %573 = vmatpush1.xpose.msra.mxu0 0.0
          %574 = vmatprep.subr.mxu0 0.0
          %575 = vmatpush1.xpose.msra.mxu0 0.0
          %576 = vmatprep.subr.mxu0 0.0
          %577 = vmatpush1.xpose.msra.mxu0 0.0
          %578 = vmatprep.subr.mxu0 0.0
          %579 = vmatpush1.xpose.msra.mxu0 0.0
          %580 = vmatprep.subr.mxu0 0.0
          %581 = vmatpush1.xpose.msra.mxu0 0.0
          %582 = vmatprep.subr.mxu0 0.0
          %583 = vmatpush1.xpose.msra.mxu0 0.0
          %584 = vmatprep.subr.mxu0 0.0
          %585 = vmatpush1.xpose.msra.mxu0 0.0
          %586 = vmatprep.subr.mxu0 0.0
          %587 = vmatpush1.xpose.msra.mxu0 0.0
          %588 = vmatprep.subr.mxu0 0.0
          %589 = vmatpush1.xpose.msra.mxu0 0.0
          %590 = vmatprep.subr.mxu0 0.0
          %591 = vmatpush1.xpose.msra.mxu0 0.0
          %592 = vmatprep.subr.mxu0 0.0
          %593 = vmatpush1.xpose.msra.mxu0 0.0
          %594 = vmatprep.subr.mxu0 0.0
          %595 = vmatpush1.xpose.msra.mxu0 0.0
          %596 = vmatprep.subr.mxu0 0.0
          %597 = vmatpush1.xpose.msra.mxu0 0.0
          %598 = vmatprep.subr.mxu0 0.0
          %599 = vmatpush1.xpose.msra.mxu0 0.0
          %600 = vmatprep.subr.mxu0 0.0
          %601 = vmatpush1.xpose.msra.mxu0 0.0
          %602 = vmatprep.subr.mxu0 0.0
          %603 = vmatpush1.xpose.msra.mxu0 0.0
          %604 = vmatprep.subr.mxu0 0.0
          %605 = vmatpush1.xpose.msra.mxu0 0.0
          %606 = vmatprep.subr.mxu0 0.0
          %607 = vmatpush1.xpose.msra.mxu0 0.0
          %608 = vmatprep.subr.mxu0 0.0
          %609 = vmatpush1.xpose.msra.mxu0 0.0
          %610 = vmatprep.subr.mxu0 0.0
          %611 = vmatpush1.xpose.msra.mxu0 0.0
          %612 = vmatprep.subr.mxu0 0.0
          %613 = vmatpush1.xpose.msra.mxu0 0.0
          %614 = vmatprep.subr.mxu0 0.0
          %615 = vmatpush1.xpose.msra.mxu0 0.0
          %616 = vmatprep.subr.mxu0 0.0
          %617 = vmatpush1.xpose.msra.mxu0 0.0
          %618 = vmatprep.subr.mxu0 0.0
          %619 = vmatpush1.xpose.msra.mxu0 0.0
          %620 = vmatprep.mubr.f32.mxu0 0.0
          %621 = vmatmul.mubr.f32.gmra.mrb[0].mxu0 %v542
          %v622 = vpop.f32.mrb[0].mxu0
          %v623 = vadd.f32 0.0, %v622
          %v624 = vpop.f32.mrb[0].mxu0
          %625 = vdwg.mxu0
          %626 = vst.msk [vmem:[#allocation3] sm:$0xff] %vm450, %v623
        $region80: #{tpu_custom_call.1} parent=47 // pred_fallthru
          _
        %v627 = vld [vmem:[%s365] sm:$0xff]
        %v628 = vld [vmem:[#allocation10] sm:$0xff]
        %v629 = vld [vmem:[#allocation10 + $0x8] sm:$0xff]
        %v630 = vld [vmem:[#allocation10 + $0x10] sm:$0xff]
        %v631 = vld [vmem:[#allocation10 + $0x18] sm:$0xff]
        %vm632 = vcmask 261120
        %v634 = vsel %vm632, %v627, 0
        %v637 = vsel %vm632, %v628, 0
        %v640 = vsel %vm632, %v629, 0
        %v643 = vsel %vm632, %v630, 0
        %v646 = vsel %vm632, %v631, 0
        %648 = vmatprep.subr.mxu0 0.0
        %649 = vmatpush1.xpose.msra.mxu0 %v637
        %650 = vmatprep.subr.mxu0 0.0
        %651 = vmatpush1.xpose.msra.mxu0 %v640
        %652 = vmatprep.subr.mxu0 0.0
        %653 = vmatpush1.xpose.msra.mxu0 %v643
        %654 = vmatprep.subr.mxu0 0.0
        %655 = vmatpush1.xpose.msra.mxu0 %v646
        %656 = vmatprep.subr.mxu0 0.0
        %657 = vmatpush1.xpose.msra.mxu0 0.0
        %658 = vmatprep.subr.mxu0 0.0
        %659 = vmatpush1.xpose.msra.mxu0 0.0
        %660 = vmatprep.subr.mxu0 0.0
        %661 = vmatpush1.xpose.msra.mxu0 0.0
        %662 = vmatprep.subr.mxu0 0.0
        %663 = vmatpush1.xpose.msra.mxu0 0.0
        %664 = vmatprep.subr.mxu0 0.0
        %665 = vmatpush1.xpose.msra.mxu0 0.0
        %666 = vmatprep.subr.mxu0 0.0
        %667 = vmatpush1.xpose.msra.mxu0 0.0
        %668 = vmatprep.subr.mxu0 0.0
        %669 = vmatpush1.xpose.msra.mxu0 0.0
        %670 = vmatprep.subr.mxu0 0.0
        %671 = vmatpush1.xpose.msra.mxu0 0.0
        %672 = vmatprep.subr.mxu0 0.0
        %673 = vmatpush1.xpose.msra.mxu0 0.0
        %674 = vmatprep.subr.mxu0 0.0
        %675 = vmatpush1.xpose.msra.mxu0 0.0
        %676 = vmatprep.subr.mxu0 0.0
        %677 = vmatpush1.xpose.msra.mxu0 0.0
        %678 = vmatprep.subr.mxu0 0.0
        %679 = vmatpush1.xpose.msra.mxu0 0.0
        %680 = vmatprep.subr.mxu0 0.0
        %681 = vmatpush1.xpose.msra.mxu0 0.0
        %682 = vmatprep.subr.mxu0 0.0
        %683 = vmatpush1.xpose.msra.mxu0 0.0
        %684 = vmatprep.subr.mxu0 0.0
        %685 = vmatpush1.xpose.msra.mxu0 0.0
        %686 = vmatprep.subr.mxu0 0.0
        %687 = vmatpush1.xpose.msra.mxu0 0.0
        %688 = vmatprep.subr.mxu0 0.0
        %689 = vmatpush1.xpose.msra.mxu0 0.0
        %690 = vmatprep.subr.mxu0 0.0
        %691 = vmatpush1.xpose.msra.mxu0 0.0
        %692 = vmatprep.subr.mxu0 0.0
        %693 = vmatpush1.xpose.msra.mxu0 0.0
        %694 = vmatprep.subr.mxu0 0.0
        %695 = vmatpush1.xpose.msra.mxu0 0.0
        %696 = vmatprep.subr.mxu0 0.0
        %697 = vmatpush1.xpose.msra.mxu0 0.0
        %698 = vmatprep.subr.mxu0 0.0
        %699 = vmatpush1.xpose.msra.mxu0 0.0
        %700 = vmatprep.subr.mxu0 0.0
        %701 = vmatpush1.xpose.msra.mxu0 0.0
        %702 = vmatprep.subr.mxu0 0.0
        %703 = vmatpush1.xpose.msra.mxu0 0.0
        %704 = vmatprep.subr.mxu0 0.0
        %705 = vmatpush1.xpose.msra.mxu0 0.0
        %706 = vmatprep.subr.mxu0 0.0
        %707 = vmatpush1.xpose.msra.mxu0 0.0
        %708 = vmatprep.subr.mxu0 0.0
        %709 = vmatpush1.xpose.msra.mxu0 0.0
        %710 = vmatprep.subr.mxu0 0.0
        %711 = vmatpush1.xpose.msra.mxu0 0.0
        %712 = vmatprep.mubr.f32.mxu0 0.0
        %713 = vmatmul.mubr.f32.gmra.mrb[0].mxu0 %v634
        %v714 = vpop.f32.mrb[0].mxu0
        %v715 = vadd.f32 0.0, %v714
        %v716 = vpop.f32.mrb[0].mxu0
        %717 = vdwg.mxu0
        %v718 = vld [vmem:[#allocation2] sm:$0xff]
        %v719 = vld [vmem:[#allocation3] sm:$0xff]
        %vm720 = vcmask 64512
        %v722 = vsel %vm720, %v715, 0
        %v725 = vsel %vm720, %v718, 0
        %727 = vmatprep.subr.mxu0 0.0
        %728 = vmatpush1.xpose.msra.mxu0 %v725
        %729 = vmatprep.subr.mxu0 0.0
        %730 = vmatpush1.xpose.msra.mxu0 0.0
        %731 = vmatprep.subr.mxu0 0.0
        %732 = vmatpush1.xpose.msra.mxu0 0.0
        %733 = vmatprep.subr.mxu0 0.0
        %734 = vmatpush1.xpose.msra.mxu0 0.0
        %735 = vmatprep.subr.mxu0 0.0
        %736 = vmatpush1.xpose.msra.mxu0 0.0
        %737 = vmatprep.subr.mxu0 0.0
        %738 = vmatpush1.xpose.msra.mxu0 0.0
        %739 = vmatprep.subr.mxu0 0.0
        %740 = vmatpush1.xpose.msra.mxu0 0.0
        %741 = vmatprep.subr.mxu0 0.0
        %742 = vmatpush1.xpose.msra.mxu0 0.0
        %743 = vmatprep.subr.mxu0 0.0
        %744 = vmatpush1.xpose.msra.mxu0 0.0
        %745 = vmatprep.subr.mxu0 0.0
        %746 = vmatpush1.xpose.msra.mxu0 0.0
        %747 = vmatprep.subr.mxu0 0.0
        %748 = vmatpush1.xpose.msra.mxu0 0.0
        %749 = vmatprep.subr.mxu0 0.0
        %750 = vmatpush1.xpose.msra.mxu0 0.0
        %751 = vmatprep.subr.mxu0 0.0
        %752 = vmatpush1.xpose.msra.mxu0 0.0
        %753 = vmatprep.subr.mxu0 0.0
        %754 = vmatpush1.xpose.msra.mxu0 0.0
        %755 = vmatprep.subr.mxu0 0.0
        %756 = vmatpush1.xpose.msra.mxu0 0.0
        %757 = vmatprep.subr.mxu0 0.0
        %758 = vmatpush1.xpose.msra.mxu0 0.0
        %759 = vmatprep.subr.mxu0 0.0
        %760 = vmatpush1.xpose.msra.mxu0 0.0
        %761 = vmatprep.subr.mxu0 0.0
        %762 = vmatpush1.xpose.msra.mxu0 0.0
        %763 = vmatprep.subr.mxu0 0.0
        %764 = vmatpush1.xpose.msra.mxu0 0.0
        %765 = vmatprep.subr.mxu0 0.0
        %766 = vmatpush1.xpose.msra.mxu0 0.0
        %767 = vmatprep.subr.mxu0 0.0
        %768 = vmatpush1.xpose.msra.mxu0 0.0
        %769 = vmatprep.subr.mxu0 0.0
        %770 = vmatpush1.xpose.msra.mxu0 0.0
        %771 = vmatprep.subr.mxu0 0.0
        %772 = vmatpush1.xpose.msra.mxu0 0.0
        %773 = vmatprep.subr.mxu0 0.0
        %774 = vmatpush1.xpose.msra.mxu0 0.0
        %775 = vmatprep.subr.mxu0 0.0
        %776 = vmatpush1.xpose.msra.mxu0 0.0
        %777 = vmatprep.subr.mxu0 0.0
        %778 = vmatpush1.xpose.msra.mxu0 0.0
        %779 = vmatprep.subr.mxu0 0.0
        %780 = vmatpush1.xpose.msra.mxu0 0.0
        %781 = vmatprep.subr.mxu0 0.0
        %782 = vmatpush1.xpose.msra.mxu0 0.0
        %783 = vmatprep.subr.mxu0 0.0
        %784 = vmatpush1.xpose.msra.mxu0 0.0
        %785 = vmatprep.subr.mxu0 0.0
        %786 = vmatpush1.xpose.msra.mxu0 0.0
        %787 = vmatprep.subr.mxu0 0.0
        %788 = vmatpush1.xpose.msra.mxu0 0.0
        %789 = vmatprep.subr.mxu0 0.0
        %790 = vmatpush1.xpose.msra.mxu0 0.0
        %791 = vmatprep.mubr.f32.mxu0 0.0
        %792 = vmatmul.mubr.f32.gmra.mrb[0].mxu0 %v722
        %v793 = vpop.f32.mrb[0].mxu0
        %v794 = vadd.f32 0.0, %v793
        %v795 = vpop.f32.mrb[0].mxu0
        %796 = vdwg.mxu0
        %v797 = vsel %vm720, %v794, -inf
        %798 = vmax.xlane.f32.xlu0 %v797
        %v799 = vpop.xlane.xlu0 %798
        %v800 = vsub.f32 %v794, %v799
        %v801 = vmul.f32 %v800, 1.442695
        %v802 = vpow.pop %v801
        %v803 = vsel %vm720, %v802, 0.0
        %804 = vadd.xlane.f32.xlu0 %v803
        %v805 = vpop.xlane.xlu0 %804
        %v807 = vsel %vm720, %v802, 0
        %809 = vmatprep.subr.mxu0 0.0
        %810 = vmatpush1.msra.mxu0 %v719
        %811 = vmatprep.subr.mxu0 0.0
        %812 = vmatpush1.msra.mxu0 0.0
        %813 = vmatprep.subr.mxu0 0.0
        %814 = vmatpush1.msra.mxu0 0.0
        %815 = vmatprep.subr.mxu0 0.0
        %816 = vmatpush1.msra.mxu0 0.0
        %817 = vmatprep.subr.mxu0 0.0
        %818 = vmatpush1.msra.mxu0 0.0
        %819 = vmatprep.subr.mxu0 0.0
        %820 = vmatpush1.msra.mxu0 0.0
        %821 = vmatprep.subr.mxu0 0.0
        %822 = vmatpush1.msra.mxu0 0.0
        %823 = vmatprep.subr.mxu0 0.0
        %824 = vmatpush1.msra.mxu0 0.0
        %825 = vmatprep.subr.mxu0 0.0
        %826 = vmatpush1.msra.mxu0 0.0
        %827 = vmatprep.subr.mxu0 0.0
        %828 = vmatpush1.msra.mxu0 0.0
        %829 = vmatprep.subr.mxu0 0.0
        %830 = vmatpush1.msra.mxu0 0.0
        %831 = vmatprep.subr.mxu0 0.0
        %832 = vmatpush1.msra.mxu0 0.0
        %833 = vmatprep.subr.mxu0 0.0
        %834 = vmatpush1.msra.mxu0 0.0
        %835 = vmatprep.subr.mxu0 0.0
        %836 = vmatpush1.msra.mxu0 0.0
        %837 = vmatprep.subr.mxu0 0.0
        %838 = vmatpush1.msra.mxu0 0.0
        %839 = vmatprep.subr.mxu0 0.0
        %840 = vmatpush1.msra.mxu0 0.0
        %841 = vmatprep.subr.mxu0 0.0
        %842 = vmatpush1.msra.mxu0 0.0
        %843 = vmatprep.subr.mxu0 0.0
        %844 = vmatpush1.msra.mxu0 0.0
        %845 = vmatprep.subr.mxu0 0.0
        %846 = vmatpush1.msra.mxu0 0.0
        %847 = vmatprep.subr.mxu0 0.0
        %848 = vmatpush1.msra.mxu0 0.0
        %849 = vmatprep.subr.mxu0 0.0
        %850 = vmatpush1.msra.mxu0 0.0
        %851 = vmatprep.subr.mxu0 0.0
        %852 = vmatpush1.msra.mxu0 0.0
        %853 = vmatprep.subr.mxu0 0.0
        %854 = vmatpush1.msra.mxu0 0.0
        %855 = vmatprep.subr.mxu0 0.0
        %856 = vmatpush1.msra.mxu0 0.0
        %857 = vmatprep.subr.mxu0 0.0
        %858 = vmatpush1.msra.mxu0 0.0
        %859 = vmatprep.subr.mxu0 0.0
        %860 = vmatpush1.msra.mxu0 0.0
        %861 = vmatprep.subr.mxu0 0.0
        %862 = vmatpush1.msra.mxu0 0.0
        %863 = vmatprep.subr.mxu0 0.0
        %864 = vmatpush1.msra.mxu0 0.0
        %865 = vmatprep.subr.mxu0 0.0
        %866 = vmatpush1.msra.mxu0 0.0
        %867 = vmatprep.subr.mxu0 0.0
        %868 = vmatpush1.msra.mxu0 0.0
        %869 = vmatprep.subr.mxu0 0.0
        %870 = vmatpush1.msra.mxu0 0.0
        %871 = vmatprep.subr.mxu0 0.0
        %872 = vmatpush1.msra.mxu0 0.0
        %873 = vmatprep.mubr.f32.mxu0 0.0
        %874 = vmatmul.mubr.f32.gmra.mrb[0].mxu0 %v807
        %v875 = vpop.f32.mrb[0].mxu0
        %v876 = vadd.f32 0.0, %v875
        %v877 = vpop.f32.mrb[0].mxu0
        %878 = vdwg.mxu0
        %v879 = vrcp.pop %v805
        %v880 = vmul.f32 1.0, %v879
        %v881 = vmul.f32 %v876, %v880
        %882 = vrot.lane.b32.xlu0 %v715, 120
        %v883 = vpop.permute.xlu0 %882
        %884 = vrot.lane.b32.xlu0 %v718, 120
        %v885 = vpop.permute.xlu0 %884
        %v886 = vsel %vm720, %v883, 0
        %v888 = vsel %vm720, %v885, 0
        %890 = vmatprep.subr.mxu0 0.0
        %891 = vmatpush1.xpose.msra.mxu0 %v888
        %892 = vmatprep.subr.mxu0 0.0
        %893 = vmatpush1.xpose.msra.mxu0 0.0
        %894 = vmatprep.subr.mxu0 0.0
        %895 = vmatpush1.xpose.msra.mxu0 0.0
        %896 = vmatprep.subr.mxu0 0.0
        %897 = vmatpush1.xpose.msra.mxu0 0.0
        %898 = vmatprep.subr.mxu0 0.0
        %899 = vmatpush1.xpose.msra.mxu0 0.0
        %900 = vmatprep.subr.mxu0 0.0
        %901 = vmatpush1.xpose.msra.mxu0 0.0
        %902 = vmatprep.subr.mxu0 0.0
        %903 = vmatpush1.xpose.msra.mxu0 0.0
        %904 = vmatprep.subr.mxu0 0.0
        %905 = vmatpush1.xpose.msra.mxu0 0.0
        %906 = vmatprep.subr.mxu0 0.0
        %907 = vmatpush1.xpose.msra.mxu0 0.0
        %908 = vmatprep.subr.mxu0 0.0
        %909 = vmatpush1.xpose.msra.mxu0 0.0
        %910 = vmatprep.subr.mxu0 0.0
        %911 = vmatpush1.xpose.msra.mxu0 0.0
        %912 = vmatprep.subr.mxu0 0.0
        %913 = vmatpush1.xpose.msra.mxu0 0.0
        %914 = vmatprep.subr.mxu0 0.0
        %915 = vmatpush1.xpose.msra.mxu0 0.0
        %916 = vmatprep.subr.mxu0 0.0
        %917 = vmatpush1.xpose.msra.mxu0 0.0
        %918 = vmatprep.subr.mxu0 0.0
        %919 = vmatpush1.xpose.msra.mxu0 0.0
        %920 = vmatprep.subr.mxu0 0.0
        %921 = vmatpush1.xpose.msra.mxu0 0.0
        %922 = vmatprep.subr.mxu0 0.0
        %923 = vmatpush1.xpose.msra.mxu0 0.0
        %924 = vmatprep.subr.mxu0 0.0
        %925 = vmatpush1.xpose.msra.mxu0 0.0
        %926 = vmatprep.subr.mxu0 0.0
        %927 = vmatpush1.xpose.msra.mxu0 0.0
        %928 = vmatprep.subr.mxu0 0.0
        %929 = vmatpush1.xpose.msra.mxu0 0.0
        %930 = vmatprep.subr.mxu0 0.0
        %931 = vmatpush1.xpose.msra.mxu0 0.0
        %932 = vmatprep.subr.mxu0 0.0
        %933 = vmatpush1.xpose.msra.mxu0 0.0
        %934 = vmatprep.subr.mxu0 0.0
        %935 = vmatpush1.xpose.msra.mxu0 0.0
        %936 = vmatprep.subr.mxu0 0.0
        %937 = vmatpush1.xpose.msra.mxu0 0.0
        %938 = vmatprep.subr.mxu0 0.0
        %939 = vmatpush1.xpose.msra.mxu0 0.0
        %940 = vmatprep.subr.mxu0 0.0
        %941 = vmatpush1.xpose.msra.mxu0 0.0
        %942 = vmatprep.subr.mxu0 0.0
        %943 = vmatpush1.xpose.msra.mxu0 0.0
        %944 = vmatprep.subr.mxu0 0.0
        %945 = vmatpush1.xpose.msra.mxu0 0.0
        %946 = vmatprep.subr.mxu0 0.0
        %947 = vmatpush1.xpose.msra.mxu0 0.0
        %948 = vmatprep.subr.mxu0 0.0
        %949 = vmatpush1.xpose.msra.mxu0 0.0
        %950 = vmatprep.subr.mxu0 0.0
        %951 = vmatpush1.xpose.msra.mxu0 0.0
        %952 = vmatprep.subr.mxu0 0.0
        %953 = vmatpush1.xpose.msra.mxu0 0.0
        %954 = vmatprep.mubr.f32.mxu0 0.0
        %955 = vmatmul.mubr.f32.gmra.mrb[0].mxu0 %v886
        %v956 = vpop.f32.mrb[0].mxu0
        %v957 = vadd.f32 0.0, %v956
        %v958 = vpop.f32.mrb[0].mxu0
        %959 = vdwg.mxu0
        %v960 = vsel %vm720, %v957, -inf
        %961 = vmax.xlane.f32.xlu0 %v960
        %v962 = vpop.xlane.xlu0 %961
        %v963 = vsub.f32 %v957, %v962
        %v964 = vmul.f32 %v963, 1.442695
        %v965 = vpow.pop %v964
        %v966 = vsel %vm720, %v965, 0.0
        %967 = vadd.xlane.f32.xlu0 %v966
        %v968 = vpop.xlane.xlu0 %967
        %970 = vrot.lane.b32.xlu0 %v719, 120
        %v971 = vpop.permute.xlu0 %970
        %v974 = vsel %vm720, %v965, 0
        %976 = vmatprep.subr.mxu0 0.0
        %977 = vmatpush1.msra.mxu0 %v971
        %978 = vmatprep.subr.mxu0 0.0
        %979 = vmatpush1.msra.mxu0 0.0
        %980 = vmatprep.subr.mxu0 0.0
        %981 = vmatpush1.msra.mxu0 0.0
        %982 = vmatprep.subr.mxu0 0.0
        %983 = vmatpush1.msra.mxu0 0.0
        %984 = vmatprep.subr.mxu0 0.0
        %985 = vmatpush1.msra.mxu0 0.0
        %986 = vmatprep.subr.mxu0 0.0
        %987 = vmatpush1.msra.mxu0 0.0
        %988 = vmatprep.subr.mxu0 0.0
        %989 = vmatpush1.msra.mxu0 0.0
        %990 = vmatprep.subr.mxu0 0.0
        %991 = vmatpush1.msra.mxu0 0.0
        %992 = vmatprep.subr.mxu0 0.0
        %993 = vmatpush1.msra.mxu0 0.0
        %994 = vmatprep.subr.mxu0 0.0
        %995 = vmatpush1.msra.mxu0 0.0
        %996 = vmatprep.subr.mxu0 0.0
        %997 = vmatpush1.msra.mxu0 0.0
        %998 = vmatprep.subr.mxu0 0.0
        %999 = vmatpush1.msra.mxu0 0.0
        %1000 = vmatprep.subr.mxu0 0.0
        %1001 = vmatpush1.msra.mxu0 0.0
        %1002 = vmatprep.subr.mxu0 0.0
        %1003 = vmatpush1.msra.mxu0 0.0
        %1004 = vmatprep.subr.mxu0 0.0
        %1005 = vmatpush1.msra.mxu0 0.0
        %1006 = vmatprep.subr.mxu0 0.0
        %1007 = vmatpush1.msra.mxu0 0.0
        %1008 = vmatprep.subr.mxu0 0.0
        %1009 = vmatpush1.msra.mxu0 0.0
        %1010 = vmatprep.subr.mxu0 0.0
        %1011 = vmatpush1.msra.mxu0 0.0
        %1012 = vmatprep.subr.mxu0 0.0
        %1013 = vmatpush1.msra.mxu0 0.0
        %1014 = vmatprep.subr.mxu0 0.0
        %1015 = vmatpush1.msra.mxu0 0.0
        %1016 = vmatprep.subr.mxu0 0.0
        %1017 = vmatpush1.msra.mxu0 0.0
        %1018 = vmatprep.subr.mxu0 0.0
        %1019 = vmatpush1.msra.mxu0 0.0
        %1020 = vmatprep.subr.mxu0 0.0
        %1021 = vmatpush1.msra.mxu0 0.0
        %1022 = vmatprep.subr.mxu0 0.0
        %1023 = vmatpush1.msra.mxu0 0.0
        %1024 = vmatprep.subr.mxu0 0.0
        %1025 = vmatpush1.msra.mxu0 0.0
        %1026 = vmatprep.subr.mxu0 0.0
        %1027 = vmatpush1.msra.mxu0 0.0
        %1028 = vmatprep.subr.mxu0 0.0
        %1029 = vmatpush1.msra.mxu0 0.0
        %1030 = vmatprep.subr.mxu0 0.0
        %1031 = vmatpush1.msra.mxu0 0.0
        %1032 = vmatprep.subr.mxu0 0.0
        %1033 = vmatpush1.msra.mxu0 0.0
        %1034 = vmatprep.subr.mxu0 0.0
        %1035 = vmatpush1.msra.mxu0 0.0
        %1036 = vmatprep.subr.mxu0 0.0
        %1037 = vmatpush1.msra.mxu0 0.0
        %1038 = vmatprep.subr.mxu0 0.0
        %1039 = vmatpush1.msra.mxu0 0.0
        %1040 = vmatprep.mubr.f32.mxu0 0.0
        %1041 = vmatmul.mubr.f32.gmra.mrb[0].mxu0 %v974
        %v1042 = vpop.f32.mrb[0].mxu0
        %v1043 = vadd.f32 0.0, %v1042
        %v1044 = vpop.f32.mrb[0].mxu0
        %1045 = vdwg.mxu0
        %v1046 = vrcp.pop %v968
        %v1047 = vmul.f32 1.0, %v1046
        %v1048 = vmul.f32 %v1043, %v1047
        %1049 = vrot.lane.b32.xlu0 %v715, 112
        %v1050 = vpop.permute.xlu0 %1049
        %1051 = vrot.lane.b32.xlu0 %v718, 112
        %v1052 = vpop.permute.xlu0 %1051
        %v1053 = vsel %vm720, %v1050, 0
        %v1055 = vsel %vm720, %v1052, 0
        %1057 = vmatprep.subr.mxu0 0.0
        %1058 = vmatpush1.xpose.msra.mxu0 %v1055
        %1059 = vmatprep.subr.mxu0 0.0
        %1060 = vmatpush1.xpose.msra.mxu0 0.0
        %1061 = vmatprep.subr.mxu0 0.0
        %1062 = vmatpush1.xpose.msra.mxu0 0.0
        %1063 = vmatprep.subr.mxu0 0.0
        %1064 = vmatpush1.xpose.msra.mxu0 0.0
        %1065 = vmatprep.subr.mxu0 0.0
        %1066 = vmatpush1.xpose.msra.mxu0 0.0
        %1067 = vmatprep.subr.mxu0 0.0
        %1068 = vmatpush1.xpose.msra.mxu0 0.0
        %1069 = vmatprep.subr.mxu0 0.0
        %1070 = vmatpush1.xpose.msra.mxu0 0.0
        %1071 = vmatprep.subr.mxu0 0.0
        %1072 = vmatpush1.xpose.msra.mxu0 0.0
        %1073 = vmatprep.subr.mxu0 0.0
        %1074 = vmatpush1.xpose.msra.mxu0 0.0
        %1075 = vmatprep.subr.mxu0 0.0
        %1076 = vmatpush1.xpose.msra.mxu0 0.0
        %1077 = vmatprep.subr.mxu0 0.0
        %1078 = vmatpush1.xpose.msra.mxu0 0.0
        %1079 = vmatprep.subr.mxu0 0.0
        %1080 = vmatpush1.xpose.msra.mxu0 0.0
        %1081 = vmatprep.subr.mxu0 0.0
        %1082 = vmatpush1.xpose.msra.mxu0 0.0
        %1083 = vmatprep.subr.mxu0 0.0
        %1084 = vmatpush1.xpose.msra.mxu0 0.0
        %1085 = vmatprep.subr.mxu0 0.0
        %1086 = vmatpush1.xpose.msra.mxu0 0.0
        %1087 = vmatprep.subr.mxu0 0.0
        %1088 = vmatpush1.xpose.msra.mxu0 0.0
        %1089 = vmatprep.subr.mxu0 0.0
        %1090 = vmatpush1.xpose.msra.mxu0 0.0
        %1091 = vmatprep.subr.mxu0 0.0
        %1092 = vmatpush1.xpose.msra.mxu0 0.0
        %1093 = vmatprep.subr.mxu0 0.0
        %1094 = vmatpush1.xpose.msra.mxu0 0.0
        %1095 = vmatprep.subr.mxu0 0.0
        %1096 = vmatpush1.xpose.msra.mxu0 0.0
        %1097 = vmatprep.subr.mxu0 0.0
        %1098 = vmatpush1.xpose.msra.mxu0 0.0
        %1099 = vmatprep.subr.mxu0 0.0
        %1100 = vmatpush1.xpose.msra.mxu0 0.0
        %1101 = vmatprep.subr.mxu0 0.0
        %1102 = vmatpush1.xpose.msra.mxu0 0.0
        %1103 = vmatprep.subr.mxu0 0.0
        %1104 = vmatpush1.xpose.msra.mxu0 0.0
        %1105 = vmatprep.subr.mxu0 0.0
        %1106 = vmatpush1.xpose.msra.mxu0 0.0
        %1107 = vmatprep.subr.mxu0 0.0
        %1108 = vmatpush1.xpose.msra.mxu0 0.0
        %1109 = vmatprep.subr.mxu0 0.0
        %1110 = vmatpush1.xpose.msra.mxu0 0.0
        %1111 = vmatprep.subr.mxu0 0.0
        %1112 = vmatpush1.xpose.msra.mxu0 0.0
        %1113 = vmatprep.subr.mxu0 0.0
        %1114 = vmatpush1.xpose.msra.mxu0 0.0
        %1115 = vmatprep.subr.mxu0 0.0
        %1116 = vmatpush1.xpose.msra.mxu0 0.0
        %1117 = vmatprep.subr.mxu0 0.0
        %1118 = vmatpush1.xpose.msra.mxu0 0.0
        %1119 = vmatprep.subr.mxu0 0.0
        %1120 = vmatpush1.xpose.msra.mxu0 0.0
        %1121 = vmatprep.mubr.f32.mxu0 0.0
        %1122 = vmatmul.mubr.f32.gmra.mrb[0].mxu0 %v1053
        %v1123 = vpop.f32.mrb[0].mxu0
        %v1124 = vadd.f32 0.0, %v1123
        %v1125 = vpop.f32.mrb[0].mxu0
        %1126 = vdwg.mxu0
        %v1127 = vsel %vm720, %v1124, -inf
        %1128 = vmax.xlane.f32.xlu0 %v1127
        %v1129 = vpop.xlane.xlu0 %1128
        %v1130 = vsub.f32 %v1124, %v1129
        %v1131 = vmul.f32 %v1130, 1.442695
        %v1132 = vpow.pop %v1131
        %v1133 = vsel %vm720, %v1132, 0.0
        %1134 = vadd.xlane.f32.xlu0 %v1133
        %v1135 = vpop.xlane.xlu0 %1134
        %1136 = vrot.lane.b32.xlu0 %v719, 112
        %v1137 = vpop.permute.xlu0 %1136
        %v1140 = vsel %vm720, %v1132, 0
        %1142 = vmatprep.subr.mxu0 0.0
        %1143 = vmatpush1.msra.mxu0 %v1137
        %1144 = vmatprep.subr.mxu0 0.0
        %1145 = vmatpush1.msra.mxu0 0.0
        %1146 = vmatprep.subr.mxu0 0.0
        %1147 = vmatpush1.msra.mxu0 0.0
        %1148 = vmatprep.subr.mxu0 0.0
        %1149 = vmatpush1.msra.mxu0 0.0
        %1150 = vmatprep.subr.mxu0 0.0
        %1151 = vmatpush1.msra.mxu0 0.0
        %1152 = vmatprep.subr.mxu0 0.0
        %1153 = vmatpush1.msra.mxu0 0.0
        %1154 = vmatprep.subr.mxu0 0.0
        %1155 = vmatpush1.msra.mxu0 0.0
        %1156 = vmatprep.subr.mxu0 0.0
        %1157 = vmatpush1.msra.mxu0 0.0
        %1158 = vmatprep.subr.mxu0 0.0
        %1159 = vmatpush1.msra.mxu0 0.0
        %1160 = vmatprep.subr.mxu0 0.0
        %1161 = vmatpush1.msra.mxu0 0.0
        %1162 = vmatprep.subr.mxu0 0.0
        %1163 = vmatpush1.msra.mxu0 0.0
        %1164 = vmatprep.subr.mxu0 0.0
        %1165 = vmatpush1.msra.mxu0 0.0
        %1166 = vmatprep.subr.mxu0 0.0
        %1167 = vmatpush1.msra.mxu0 0.0
        %1168 = vmatprep.subr.mxu0 0.0
        %1169 = vmatpush1.msra.mxu0 0.0
        %1170 = vmatprep.subr.mxu0 0.0
        %1171 = vmatpush1.msra.mxu0 0.0
        %1172 = vmatprep.subr.mxu0 0.0
        %1173 = vmatpush1.msra.mxu0 0.0
        %1174 = vmatprep.subr.mxu0 0.0
        %1175 = vmatpush1.msra.mxu0 0.0
        %1176 = vmatprep.subr.mxu0 0.0
        %1177 = vmatpush1.msra.mxu0 0.0
        %1178 = vmatprep.subr.mxu0 0.0
        %1179 = vmatpush1.msra.mxu0 0.0
        %1180 = vmatprep.subr.mxu0 0.0
        %1181 = vmatpush1.msra.mxu0 0.0
        %1182 = vmatprep.subr.mxu0 0.0
        %1183 = vmatpush1.msra.mxu0 0.0
        %1184 = vmatprep.subr.mxu0 0.0
        %1185 = vmatpush1.msra.mxu0 0.0
        %1186 = vmatprep.subr.mxu0 0.0
        %1187 = vmatpush1.msra.mxu0 0.0
        %1188 = vmatprep.subr.mxu0 0.0
        %1189 = vmatpush1.msra.mxu0 0.0
        %1190 = vmatprep.subr.mxu0 0.0
        %1191 = vmatpush1.msra.mxu0 0.0
        %1192 = vmatprep.subr.mxu0 0.0
        %1193 = vmatpush1.msra.mxu0 0.0
        %1194 = vmatprep.subr.mxu0 0.0
        %1195 = vmatpush1.msra.mxu0 0.0
        %1196 = vmatprep.subr.mxu0 0.0
        %1197 = vmatpush1.msra.mxu0 0.0
        %1198 = vmatprep.subr.mxu0 0.0
        %1199 = vmatpush1.msra.mxu0 0.0
        %1200 = vmatprep.subr.mxu0 0.0
        %1201 = vmatpush1.msra.mxu0 0.0
        %1202 = vmatprep.subr.mxu0 0.0
        %1203 = vmatpush1.msra.mxu0 0.0
        %1204 = vmatprep.subr.mxu0 0.0
        %1205 = vmatpush1.msra.mxu0 0.0
        %1206 = vmatprep.mubr.f32.mxu0 0.0
        %1207 = vmatmul.mubr.f32.gmra.mrb[0].mxu0 %v1140
        %v1208 = vpop.f32.mrb[0].mxu0
        %v1209 = vadd.f32 0.0, %v1208
        %v1210 = vpop.f32.mrb[0].mxu0
        %1211 = vdwg.mxu0
        %v1212 = vrcp.pop %v1135
        %v1213 = vmul.f32 1.0, %v1212
        %v1214 = vmul.f32 %v1209, %v1213
        %1215 = vrot.lane.b32.xlu0 %v715, 104
        %v1216 = vpop.permute.xlu0 %1215
        %1217 = vrot.lane.b32.xlu0 %v718, 104
        %v1218 = vpop.permute.xlu0 %1217
        %v1219 = vsel %vm720, %v1216, 0
        %v1221 = vsel %vm720, %v1218, 0
        %1223 = vmatprep.subr.mxu0 0.0
        %1224 = vmatpush1.xpose.msra.mxu0 %v1221
        %1225 = vmatprep.subr.mxu0 0.0
        %1226 = vmatpush1.xpose.msra.mxu0 0.0
        %1227 = vmatprep.subr.mxu0 0.0
        %1228 = vmatpush1.xpose.msra.mxu0 0.0
        %1229 = vmatprep.subr.mxu0 0.0
        %1230 = vmatpush1.xpose.msra.mxu0 0.0
        %1231 = vmatprep.subr.mxu0 0.0
        %1232 = vmatpush1.xpose.msra.mxu0 0.0
        %1233 = vmatprep.subr.mxu0 0.0
        %1234 = vmatpush1.xpose.msra.mxu0 0.0
        %1235 = vmatprep.subr.mxu0 0.0
        %1236 = vmatpush1.xpose.msra.mxu0 0.0
        %1237 = vmatprep.subr.mxu0 0.0
        %1238 = vmatpush1.xpose.msra.mxu0 0.0
        %1239 = vmatprep.subr.mxu0 0.0
        %1240 = vmatpush1.xpose.msra.mxu0 0.0
        %1241 = vmatprep.subr.mxu0 0.0
        %1242 = vmatpush1.xpose.msra.mxu0 0.0
        %1243 = vmatprep.subr.mxu0 0.0
        %1244 = vmatpush1.xpose.msra.mxu0 0.0
        %1245 = vmatprep.subr.mxu0 0.0
        %1246 = vmatpush1.xpose.msra.mxu0 0.0
        %1247 = vmatprep.subr.mxu0 0.0
        %1248 = vmatpush1.xpose.msra.mxu0 0.0
        %1249 = vmatprep.subr.mxu0 0.0
        %1250 = vmatpush1.xpose.msra.mxu0 0.0
        %1251 = vmatprep.subr.mxu0 0.0
        %1252 = vmatpush1.xpose.msra.mxu0 0.0
        %1253 = vmatprep.subr.mxu0 0.0
        %1254 = vmatpush1.xpose.msra.mxu0 0.0
        %1255 = vmatprep.subr.mxu0 0.0
        %1256 = vmatpush1.xpose.msra.mxu0 0.0
        %1257 = vmatprep.subr.mxu0 0.0
        %1258 = vmatpush1.xpose.msra.mxu0 0.0
        %1259 = vmatprep.subr.mxu0 0.0
        %1260 = vmatpush1.xpose.msra.mxu0 0.0
        %1261 = vmatprep.subr.mxu0 0.0
        %1262 = vmatpush1.xpose.msra.mxu0 0.0
        %1263 = vmatprep.subr.mxu0 0.0
        %1264 = vmatpush1.xpose.msra.mxu0 0.0
        %1265 = vmatprep.subr.mxu0 0.0
        %1266 = vmatpush1.xpose.msra.mxu0 0.0
        %1267 = vmatprep.subr.mxu0 0.0
        %1268 = vmatpush1.xpose.msra.mxu0 0.0
        %1269 = vmatprep.subr.mxu0 0.0
        %1270 = vmatpush1.xpose.msra.mxu0 0.0
        %1271 = vmatprep.subr.mxu0 0.0
        %1272 = vmatpush1.xpose.msra.mxu0 0.0
        %1273 = vmatprep.subr.mxu0 0.0
        %1274 = vmatpush1.xpose.msra.mxu0 0.0
        %1275 = vmatprep.subr.mxu0 0.0
        %1276 = vmatpush1.xpose.msra.mxu0 0.0
        %1277 = vmatprep.subr.mxu0 0.0
        %1278 = vmatpush1.xpose.msra.mxu0 0.0
        %1279 = vmatprep.subr.mxu0 0.0
        %1280 = vmatpush1.xpose.msra.mxu0 0.0
        %1281 = vmatprep.subr.mxu0 0.0
        %1282 = vmatpush1.xpose.msra.mxu0 0.0
        %1283 = vmatprep.subr.mxu0 0.0
        %1284 = vmatpush1.xpose.msra.mxu0 0.0
        %1285 = vmatprep.subr.mxu0 0.0
        %1286 = vmatpush1.xpose.msra.mxu0 0.0
        %1287 = vmatprep.mubr.f32.mxu0 0.0
        %1288 = vmatmul.mubr.f32.gmra.mrb[0].mxu0 %v1219
        %v1289 = vpop.f32.mrb[0].mxu0
        %v1290 = vadd.f32 0.0, %v1289
        %v1291 = vpop.f32.mrb[0].mxu0
        %1292 = vdwg.mxu0
        %v1293 = vsel %vm720, %v1290, -inf
        %1294 = vmax.xlane.f32.xlu0 %v1293
        %v1295 = vpop.xlane.xlu0 %1294
        %v1296 = vsub.f32 %v1290, %v1295
        %v1297 = vmul.f32 %v1296, 1.442695
        %v1298 = vpow.pop %v1297
        %v1299 = vsel %vm720, %v1298, 0.0
        %1300 = vadd.xlane.f32.xlu0 %v1299
        %v1301 = vpop.xlane.xlu0 %1300
        %1302 = vrot.lane.b32.xlu0 %v719, 104
        %v1303 = vpop.permute.xlu0 %1302
        %v1306 = vsel %vm720, %v1298, 0
        %1308 = vmatprep.subr.mxu0 0.0
        %1309 = vmatpush1.msra.mxu0 %v1303
        %1310 = vmatprep.subr.mxu0 0.0
        %1311 = vmatpush1.msra.mxu0 0.0
        %1312 = vmatprep.subr.mxu0 0.0
        %1313 = vmatpush1.msra.mxu0 0.0
        %1314 = vmatprep.subr.mxu0 0.0
        %1315 = vmatpush1.msra.mxu0 0.0
        %1316 = vmatprep.subr.mxu0 0.0
        %1317 = vmatpush1.msra.mxu0 0.0
        %1318 = vmatprep.subr.mxu0 0.0
        %1319 = vmatpush1.msra.mxu0 0.0
        %1320 = vmatprep.subr.mxu0 0.0
        %1321 = vmatpush1.msra.mxu0 0.0
        %1322 = vmatprep.subr.mxu0 0.0
        %1323 = vmatpush1.msra.mxu0 0.0
        %1324 = vmatprep.subr.mxu0 0.0
        %1325 = vmatpush1.msra.mxu0 0.0
        %1326 = vmatprep.subr.mxu0 0.0
        %1327 = vmatpush1.msra.mxu0 0.0
        %1328 = vmatprep.subr.mxu0 0.0
        %1329 = vmatpush1.msra.mxu0 0.0
        %1330 = vmatprep.subr.mxu0 0.0
        %1331 = vmatpush1.msra.mxu0 0.0
        %1332 = vmatprep.subr.mxu0 0.0
        %1333 = vmatpush1.msra.mxu0 0.0
        %1334 = vmatprep.subr.mxu0 0.0
        %1335 = vmatpush1.msra.mxu0 0.0
        %1336 = vmatprep.subr.mxu0 0.0
        %1337 = vmatpush1.msra.mxu0 0.0
        %1338 = vmatprep.subr.mxu0 0.0
        %1339 = vmatpush1.msra.mxu0 0.0
        %1340 = vmatprep.subr.mxu0 0.0
        %1341 = vmatpush1.msra.mxu0 0.0
        %1342 = vmatprep.subr.mxu0 0.0
        %1343 = vmatpush1.msra.mxu0 0.0
        %1344 = vmatprep.subr.mxu0 0.0
        %1345 = vmatpush1.msra.mxu0 0.0
        %1346 = vmatprep.subr.mxu0 0.0
        %1347 = vmatpush1.msra.mxu0 0.0
        %1348 = vmatprep.subr.mxu0 0.0
        %1349 = vmatpush1.msra.mxu0 0.0
        %1350 = vmatprep.subr.mxu0 0.0
        %1351 = vmatpush1.msra.mxu0 0.0
        %1352 = vmatprep.subr.mxu0 0.0
        %1353 = vmatpush1.msra.mxu0 0.0
        %1354 = vmatprep.subr.mxu0 0.0
        %1355 = vmatpush1.msra.mxu0 0.0
        %1356 = vmatprep.subr.mxu0 0.0
        %1357 = vmatpush1.msra.mxu0 0.0
        %1358 = vmatprep.subr.mxu0 0.0
        %1359 = vmatpush1.msra.mxu0 0.0
        %1360 = vmatprep.subr.mxu0 0.0
        %1361 = vmatpush1.msra.mxu0 0.0
        %1362 = vmatprep.subr.mxu0 0.0
        %1363 = vmatpush1.msra.mxu0 0.0
        %1364 = vmatprep.subr.mxu0 0.0
        %1365 = vmatpush1.msra.mxu0 0.0
        %1366 = vmatprep.subr.mxu0 0.0
        %1367 = vmatpush1.msra.mxu0 0.0
        %1368 = vmatprep.subr.mxu0 0.0
        %1369 = vmatpush1.msra.mxu0 0.0
        %1370 = vmatprep.subr.mxu0 0.0
        %1371 = vmatpush1.msra.mxu0 0.0
        %1372 = vmatprep.mubr.f32.mxu0 0.0
        %1373 = vmatmul.mubr.f32.gmra.mrb[0].mxu0 %v1306
        %v1374 = vpop.f32.mrb[0].mxu0
        %v1375 = vadd.f32 0.0, %v1374
        %v1376 = vpop.f32.mrb[0].mxu0
        %1377 = vdwg.mxu0
        %v1378 = vrcp.pop %v1301
        %v1379 = vmul.f32 1.0, %v1378
        %v1380 = vmul.f32 %v1375, %v1379
        %1382 = vrot.lane.b32.xlu0 %v1048, 8
        %v1383 = vpop.permute.xlu0 %1382
        %1386 = vrot.lane.b32.xlu0 %v1214, 16
        %v1387 = vpop.permute.xlu0 %1386
        %1390 = vrot.lane.b32.xlu0 %v1380, 24
        %v1391 = vpop.permute.xlu0 %1390
        %v1393 = vsel %vm720, %v881, %v1383
        %vm1394 = vcmask 130048
        %v1395 = vsel %vm1394, %v1393, %v1387
        %vm1396 = vcmask 195584
        %v1397 = vsel %vm1396, %v1395, %v1391
        %v1398 = vld [vmem:[#allocation15] sm:$0xff]
        %v1399 = vld [vmem:[#allocation15 + $0x8] sm:$0xff]
        %v1400 = vld [vmem:[#allocation15 + $0x10] sm:$0xff]
        %v1401 = vld [vmem:[#allocation15 + $0x18] sm:$0xff]
        %v1403 = vsel %vm632, %v1397, 0
        %v1406 = vsel %vm632, %v1398, 0
        %v1409 = vsel %vm632, %v1399, 0
        %v1412 = vsel %vm632, %v1400, 0
        %v1415 = vsel %vm632, %v1401, 0
        %1417 = vmatprep.subr.mxu0 0.0
        %1418 = vmatpush1.xpose.msra.mxu0 %v1406
        %1419 = vmatprep.subr.mxu0 0.0
        %1420 = vmatpush1.xpose.msra.mxu0 %v1409
        %1421 = vmatprep.subr.mxu0 0.0
        %1422 = vmatpush1.xpose.msra.mxu0 %v1412
        %1423 = vmatprep.subr.mxu0 0.0
        %1424 = vmatpush1.xpose.msra.mxu0 %v1415
        %1425 = vmatprep.subr.mxu0 0.0
        %1426 = vmatpush1.xpose.msra.mxu0 0.0
        %1427 = vmatprep.subr.mxu0 0.0
        %1428 = vmatpush1.xpose.msra.mxu0 0.0
        %1429 = vmatprep.subr.mxu0 0.0
        %1430 = vmatpush1.xpose.msra.mxu0 0.0
        %1431 = vmatprep.subr.mxu0 0.0
        %1432 = vmatpush1.xpose.msra.mxu0 0.0
        %1433 = vmatprep.subr.mxu0 0.0
        %1434 = vmatpush1.xpose.msra.mxu0 0.0
        %1435 = vmatprep.subr.mxu0 0.0
        %1436 = vmatpush1.xpose.msra.mxu0 0.0
        %1437 = vmatprep.subr.mxu0 0.0
        %1438 = vmatpush1.xpose.msra.mxu0 0.0
        %1439 = vmatprep.subr.mxu0 0.0
        %1440 = vmatpush1.xpose.msra.mxu0 0.0
        %1441 = vmatprep.subr.mxu0 0.0
        %1442 = vmatpush1.xpose.msra.mxu0 0.0
        %1443 = vmatprep.subr.mxu0 0.0
        %1444 = vmatpush1.xpose.msra.mxu0 0.0
        %1445 = vmatprep.subr.mxu0 0.0
        %1446 = vmatpush1.xpose.msra.mxu0 0.0
        %1447 = vmatprep.subr.mxu0 0.0
        %1448 = vmatpush1.xpose.msra.mxu0 0.0
        %1449 = vmatprep.subr.mxu0 0.0
        %1450 = vmatpush1.xpose.msra.mxu0 0.0
        %1451 = vmatprep.subr.mxu0 0.0
        %1452 = vmatpush1.xpose.msra.mxu0 0.0
        %1453 = vmatprep.subr.mxu0 0.0
        %1454 = vmatpush1.xpose.msra.mxu0 0.0
        %1455 = vmatprep.subr.mxu0 0.0
        %1456 = vmatpush1.xpose.msra.mxu0 0.0
        %1457 = vmatprep.subr.mxu0 0.0
        %1458 = vmatpush1.xpose.msra.mxu0 0.0
        %1459 = vmatprep.subr.mxu0 0.0
        %1460 = vmatpush1.xpose.msra.mxu0 0.0
        %1461 = vmatprep.subr.mxu0 0.0
        %1462 = vmatpush1.xpose.msra.mxu0 0.0
        %1463 = vmatprep.subr.mxu0 0.0
        %1464 = vmatpush1.xpose.msra.mxu0 0.0
        %1465 = vmatprep.subr.mxu0 0.0
        %1466 = vmatpush1.xpose.msra.mxu0 0.0
        %1467 = vmatprep.subr.mxu0 0.0
        %1468 = vmatpush1.xpose.msra.mxu0 0.0
        %1469 = vmatprep.subr.mxu0 0.0
        %1470 = vmatpush1.xpose.msra.mxu0 0.0
        %1471 = vmatprep.subr.mxu0 0.0
        %1472 = vmatpush1.xpose.msra.mxu0 0.0
        %1473 = vmatprep.subr.mxu0 0.0
        %1474 = vmatpush1.xpose.msra.mxu0 0.0
        %1475 = vmatprep.subr.mxu0 0.0
        %1476 = vmatpush1.xpose.msra.mxu0 0.0
        %1477 = vmatprep.subr.mxu0 0.0
        %1478 = vmatpush1.xpose.msra.mxu0 0.0
        %1479 = vmatprep.subr.mxu0 0.0
        %1480 = vmatpush1.xpose.msra.mxu0 0.0
        %1481 = vmatprep.mubr.f32.mxu0 0.0
        %1482 = vmatmul.mubr.f32.gmra.mrb[0].mxu0 %v1403
        %v1483 = vpop.f32.mrb[0].mxu0
        %v1484 = vadd.f32 0.0, %v1483
        %v1485 = vpop.f32.mrb[0].mxu0
        %1486 = vdwg.mxu0
        %1487 = vst.msk [vmem:[%s439] sm:$0xff] %vm632, %v1484
        %s1488 = sand.u32 %s215, 1
        %s1489 = scalar_lea.sflag [#allocation6], %s1488
        %s1490 = sand.u32 %s215, 1
        %s1491 = smul.addr %s1490, 8
        %s1492 = scalar_lea.vmem [#allocation16], %s1491
        // Predicated region
        $region81: #{tpu_custom_call.1} parent=47 // pred_check
          %p1493 = pneg %p225
        $region82: #{tpu_custom_call.1} parent=47 // pred_check_branch
          %1495 = sbr.rel (%p1493) target = $region84
        $region83: #{tpu_custom_call.1} parent=47 // pred_region
          %s1497 = ssub.s32 128, 128
          %1498 = vsyncadd %s1489, %s1497
          %s1499 = sadd.s32 %s34, %s33
          %s1500 = smul.addr %s1499, 128
          %s1501 = scalar_lea.hbm %s7, %s1500
          %s1503 = sshll.u32 %s1492, 4
          %s1504 = int_to_ptr.vmem [resolvable:$true] %s1503
          %1506 = dma.vmem_to_hbm [thread:$0]  %s1504, 128, %s1501, %s1489
        $region84: #{tpu_custom_call.1} parent=47 // pred_fallthru
          _
      $region48: #{tpu_custom_call.1} parent=5 // pred_fallthru
        _
      %p1507 = scmp.le.s32.totalorder 2, %s24
      // Predicated region
      $region85: #{tpu_custom_call.1} parent=5 // pred_check
        %p1508 = pneg %p1507
      $region86: #{tpu_custom_call.1} parent=5 // pred_check_branch
        %1510 = sbr.rel (%p1508) target = $region88
      $region87: #{tpu_custom_call.1} parent=5 // pred_region
        %s1511 = ssub.s32 %s24, 2
        // Predicated region
        $region89: #{tpu_custom_call.1} parent=87 // pred_check
          %p1512 = pneg %p231
        $region90: #{tpu_custom_call.1} parent=87 // pred_check_branch
          %1514 = sbr.rel (%p1512) target = $region92
        $region91: #{tpu_custom_call.1} parent=87 // pred_region
          %s1515 = sand.u32 %s216, 1
          %s1516 = scalar_lea.sflag [#allocation6], %s1515
          %s1517 = sand.u32 %s216, 1
          %s1518 = smul.addr %s1517, 8
          %s1519 = scalar_lea.vmem [#allocation16], %s1518
          %1520 = dma.done %s1516, 128
        $region92: #{tpu_custom_call.1} parent=87 // pred_fallthru
          _
      $region88: #{tpu_custom_call.1} parent=5 // pred_fallthru
        _
    $region6: #{tpu_custom_call.1} parent=1 // loop_footer
      %s28 = sadd.s32 1, %s24
    $region7: #{tpu_custom_call.1} parent=1 // loop_footer_branch
      %23 = sbr.rel target = $region3
    $region8: #{tpu_custom_call.1} parent=1 // loop_exit
      _
    %1521 = vsyncpa [#allocation5], 1
    %s1522 = scalar_lea.sflag [#allocation5], 1
    %1523 = vsyncpa %s1522, 1
    %1524 = vsyncpa [#allocation8], 1
    %s1525 = scalar_lea.sflag [#allocation8], 1
    %1526 = vsyncpa %s1525, 1
    %1527 = vsyncpa [#allocation11], 1
    %1528 = vsyncpa [#allocation14], 1
    %1529 = vsyncpa [#allocation6], 1
    %s1530 = scalar_lea.sflag [#allocation6], 1
    %1531 = vsyncpa %s1530, 1

// kernel: tpu_custom_call.1
$region0: #{tpu_custom_call.1}
  #allocation0 [shape = 'u32[]', space=smem, size = 0x4, offset = 0x4, fixed_abs, tag = 'smem constant byte address 0x4 - core index']
  #allocation1 [shape = 'u32[144,128]{1,0:T(1,128)}', space=vmem, size = 0x12000, scoped, tag = 'internal scratch']
  #allocation2 [shape = 'f32[8,32]{1,0:T(8,128)}', space=vmem, size = 0x1000, scoped, tag = 'scratch operand']
  #allocation3 [shape = 'f32[8,32]{1,0:T(8,128)}', space=vmem, size = 0x1000, scoped, tag = 'scratch operand']
  %s0 = inlined_call_operand.hbm [shape: f32[2,8,32], index: 0, kind: input, shape index: {}]
  %s1 = inlined_call_operand.hbm [shape: f32[2,8,32], index: 1, kind: input, shape index: {}]
  %s2 = inlined_call_operand.hbm [shape: f32[2,8,32], index: 2, kind: input, shape index: {}]
  %s3 = inlined_call_operand.hbm [shape: f32[32,32], index: 3, kind: input, shape index: {}]
  %s4 = inlined_call_operand.hbm [shape: f32[32,32], index: 4, kind: input, shape index: {}]
  %s5 = inlined_call_operand.hbm [shape: f32[32,32], index: 5, kind: input, shape index: {}]
  %s6 = inlined_call_operand.hbm [shape: f32[32,32], index: 6, kind: input, shape index: {}]
  %s7 = inlined_call_operand.hbm [shape: f32[2,8,32], index: 7, kind: output, shape index: {}]
  %s8 = sld [smem:[#allocation0]]
  $region93: #{tpu_custom_call.1} parent=0
    _
  %s10 = ssub.s32 1, %s8
  %s11 = scalar_select 0, %s10, %s8
  $region1: #{tpu_custom_call.1} parent=0
    #allocation4 [shape = 'u8[8192]{0}', space=vmem, size = 0x2000, scoped, tag = 'input window, operand 0']
    #allocation5 [shape = 's32[2]{0}', space=sflag, size = 0x8, scoped, tag = 'scoped memory for tpu_custom_call.1']
    #allocation6 [shape = 's32[2]{0}', space=sflag, size = 0x8, scoped, tag = 'scoped memory for tpu_custom_call.1']
    #allocation7 [shape = 'u8[8192]{0}', space=vmem, size = 0x2000, scoped, tag = 'input window, operand 1']
    #allocation8 [shape = 's32[2]{0}', space=sflag, size = 0x8, scoped, tag = 'scoped memory for tpu_custom_call.1']
    #allocation9 [shape = 'u8[8192]{0}', space=vmem, size = 0x2000, scoped, tag = 'input window, operand 2']
    #allocation10 [shape = 'u8[16384]{0}', space=vmem, size = 0x4000, scoped, tag = 'input window, operand 3, single buffered']
    #allocation11 [shape = 's32[1]{0}', space=sflag, size = 0x4, scoped, tag = 'scoped memory for tpu_custom_call.1']
    #allocation12 [shape = 'u8[16384]{0}', space=vmem, size = 0x4000, scoped, tag = 'input window, operand 4, single buffered']
    #allocation13 [shape = 'u8[16384]{0}', space=vmem, size = 0x4000, scoped, tag = 'input window, operand 5, single buffered']
    #allocation14 [shape = 's32[1]{0}', space=sflag, size = 0x4, scoped, tag = 'scoped memory for tpu_custom_call.1']
    #allocation15 [shape = 'u8[16384]{0}', space=vmem, size = 0x4000, scoped, tag = 'input window, operand 6, single buffered']
    #allocation16 [shape = 'u8[8192]{0}', space=vmem, size = 0x2000, scoped, tag = 'output window, operand 0']
    %12 = vsyncpa [#allocation5], 0
    %s13 = scalar_lea.sflag [#allocation5], 1
    %14 = vsyncpa %s13, 0
    %15 = vsyncpa [#allocation8], 0
    %s16 = scalar_lea.sflag [#allocation8], 1
    %17 = vsyncpa %s16, 0
    %18 = vsyncpa [#allocation11], 0
    %19 = vsyncpa [#allocation14], 0
    %20 = vsyncpa [#allocation6], 0
    %s21 = scalar_lea.sflag [#allocation6], 1
    %22 = vsyncpa %s21, 0
    loop: start=0, step=1, limit=4
    $region2: #{tpu_custom_call.1} parent=1 // loop_pre_header
      _
    $region3: #{tpu_custom_call.1} parent=1 // loop_header
      %s24 = sphi 0, %s28
      %p25 = scmp.ge.s32.totalorder %s24, 4
      %s31 = sphi 0, %s43
      %s32 = sphi 0, %s39
      %s33 = sphi 0, %s31
      %s34 = sphi 0, %s32
      %s35 = sphi 0, %s33
      %s36 = sphi 0, %s34
      %s48 = sphi 0, %s50
      %s51 = sphi 0, %s48
      %s52 = sphi 0, %s51
      %s68 = sphi 0, %s52
      %s74 = sphi 0, %s76
      %s77 = sphi 0, %s74
      %s78 = sphi 0, %s77
      %s94 = sphi 0, %s78
      %s100 = sphi 0, %s102
      %s103 = sphi 0, %s100
      %s104 = sphi 0, %s103
      %s120 = sphi 0, %s104
      %s124 = sphi 0, %s124
      %s126 = sphi 0, %s124
      %s127 = sphi 0, %s126
      %s141 = sphi 0, %s127
      %s145 = sphi 0, %s145
      %s147 = sphi 0, %s145
      %s148 = sphi 0, %s147
      %s162 = sphi 0, %s148
      %s166 = sphi 0, %s166
      %s168 = sphi 0, %s166
      %s169 = sphi 0, %s168
      %s183 = sphi 0, %s169
      %s187 = sphi 0, %s187
      %s189 = sphi 0, %s187
      %s190 = sphi 0, %s189
      %s204 = sphi 0, %s190
      %s212 = sphi 0, %s214
      %s215 = sphi 0, %s212
      %s216 = sphi 0, %s215
      %s232 = sphi 0, %s216
    $region4: #{tpu_custom_call.1} parent=1 // loop_header_branch
      %27 = sbr.rel (%p25) target = $region8
    $region5: #{tpu_custom_call.1} parent=1 // loop_body
      %s29 = ssub.s32 %s24, 1
      %s30 = ssub.s32 %s24, 2
      %s37 = sadd.s32 1, %s32
      %p38 = scmp.ge.s32.totalorder %s37, 1
      %s39 = scalar_select %p38, 0, %s37
      %s40 = sadd.s32 1, %s31
      %s41 = scalar_select %p38, %s40, %s31
      %p42 = scmp.ge.s32.totalorder %s41, 2
      %s43 = scalar_select %p42, 0, %s41
      %s44 = ssub.s32 %s31, %s43
      %s45 = ssub.s32 %s32, %s39
      %s46 = sor.u32 %s44, %s45
      %p47 = scmp.eq.s32.totalorder %s46, 0
      %s49 = sadd.s32 %s48, 1
      %s50 = scalar_select %p47, %s48, %s49
      %p53 = pneg %p47
      %p54 = scmp.eq.s32.totalorder %s24, 1
      %p55 = por %p53, %p54
      %p56 = scmp.ne.s32.totalorder %s48, %s51
      %p57 = scmp.eq.s32.totalorder %s24, 0
      %p58 = por %p56, %p57
      %p59 = scmp.ne.s32.totalorder %s48, %s51
      %p60 = scmp.eq.s32.totalorder %s29, 1
      %p61 = por %p59, %p60
      %p62 = scmp.ne.s32.totalorder %s51, %s52
      %p63 = scmp.eq.s32.totalorder %s29, 0
      %p64 = por %p62, %p63
      %p65 = scmp.ne.s32.totalorder %s51, %s52
      %p66 = scmp.eq.s32.totalorder %s30, 1
      %p67 = por %p65, %p66
      %p69 = scmp.ne.s32.totalorder %s52, %s68
      %p70 = scmp.eq.s32.totalorder %s30, 0
      %p71 = por %p69, %p70
      %s72 = ssub.s32 %s31, %s43
      %p73 = scmp.eq.s32.totalorder %s72, 0
      %s75 = sadd.s32 %s74, 1
      %s76 = scalar_select %p73, %s74, %s75
      %p79 = pneg %p73
      %p80 = scmp.eq.s32.totalorder %s24, 1
      %p81 = por %p79, %p80
      %p82 = scmp.ne.s32.totalorder %s74, %s77
      %p83 = scmp.eq.s32.totalorder %s24, 0
      %p84 = por %p82, %p83
      %p85 = scmp.ne.s32.totalorder %s74, %s77
      %p86 = scmp.eq.s32.totalorder %s29, 1
      %p87 = por %p85, %p86
      %p88 = scmp.ne.s32.totalorder %s77, %s78
      %p89 = scmp.eq.s32.totalorder %s29, 0
      %p90 = por %p88, %p89
      %p91 = scmp.ne.s32.totalorder %s77, %s78
      %p92 = scmp.eq.s32.totalorder %s30, 1
      %p93 = por %p91, %p92
      %p95 = scmp.ne.s32.totalorder %s78, %s94
      %p96 = scmp.eq.s32.totalorder %s30, 0
      %p97 = por %p95, %p96
      %s98 = ssub.s32 %s31, %s43
      %p99 = scmp.eq.s32.totalorder %s98, 0
      %s101 = sadd.s32 %s100, 1
      %s102 = scalar_select %p99, %s100, %s101
      %p105 = pneg %p99
      %p106 = scmp.eq.s32.totalorder %s24, 1
      %p107 = por %p105, %p106
      %p108 = scmp.ne.s32.totalorder %s100, %s103
      %p109 = scmp.eq.s32.totalorder %s24, 0
      %p110 = por %p108, %p109
      %p111 = scmp.ne.s32.totalorder %s100, %s103
      %p112 = scmp.eq.s32.totalorder %s29, 1
      %p113 = por %p111, %p112
      %p114 = scmp.ne.s32.totalorder %s103, %s104
      %p115 = scmp.eq.s32.totalorder %s29, 0
      %p116 = por %p114, %p115
      %p117 = scmp.ne.s32.totalorder %s103, %s104
      %p118 = scmp.eq.s32.totalorder %s30, 1
      %p119 = por %p117, %p118
      %p121 = scmp.ne.s32.totalorder %s104, %s120
      %p122 = scmp.eq.s32.totalorder %s30, 0
      %p123 = por %p121, %p122
      %s125 = sadd.s32 %s124, 1
      %p128 = scmp.eq.s32.totalorder %s24, 1
      %p129 = scmp.ne.s32.totalorder %s124, %s126
      %p130 = scmp.eq.s32.totalorder %s24, 0
      %p131 = por %p129, %p130
      %p132 = scmp.ne.s32.totalorder %s124, %s126
      %p133 = scmp.eq.s32.totalorder %s29, 1
      %p134 = por %p132, %p133
      %p135 = scmp.ne.s32.totalorder %s126, %s127
      %p136 = scmp.eq.s32.totalorder %s29, 0
      %p137 = por %p135, %p136
      %p138 = scmp.ne.s32.totalorder %s126, %s127
      %p139 = scmp.eq.s32.totalorder %s30, 1
      %p140 = por %p138, %p139
      %p142 = scmp.ne.s32.totalorder %s127, %s141
      %p143 = scmp.eq.s32.totalorder %s30, 0
      %p144 = por %p142, %p143
      %s146 = sadd.s32 %s145, 1
      %p149 = scmp.eq.s32.totalorder %s24, 1
      %p150 = scmp.ne.s32.totalorder %s145, %s147
      %p151 = scmp.eq.s32.totalorder %s24, 0
      %p152 = por %p150, %p151
      %p153 = scmp.ne.s32.totalorder %s145, %s147
      %p154 = scmp.eq.s32.totalorder %s29, 1
      %p155 = por %p153, %p154
      %p156 = scmp.ne.s32.totalorder %s147, %s148
      %p157 = scmp.eq.s32.totalorder %s29, 0
      %p158 = por %p156, %p157
      %p159 = scmp.ne.s32.totalorder %s147, %s148
      %p160 = scmp.eq.s32.totalorder %s30, 1
      %p161 = por %p159, %p160
      %p163 = scmp.ne.s32.totalorder %s148, %s162
      %p164 = scmp.eq.s32.totalorder %s30, 0
      %p165 = por %p163, %p164
      %s167 = sadd.s32 %s166, 1
      %p170 = scmp.eq.s32.totalorder %s24, 1
      %p171 = scmp.ne.s32.totalorder %s166, %s168
      %p172 = scmp.eq.s32.totalorder %s24, 0
      %p173 = por %p171, %p172
      %p174 = scmp.ne.s32.totalorder %s166, %s168
      %p175 = scmp.eq.s32.totalorder %s29, 1
      %p176 = por %p174, %p175
      %p177 = scmp.ne.s32.totalorder %s168, %s169
      %p178 = scmp.eq.s32.totalorder %s29, 0
      %p179 = por %p177, %p178
      %p180 = scmp.ne.s32.totalorder %s168, %s169
      %p181 = scmp.eq.s32.totalorder %s30, 1
      %p182 = por %p180, %p181
      %p184 = scmp.ne.s32.totalorder %s169, %s183
      %p185 = scmp.eq.s32.totalorder %s30, 0
      %p186 = por %p184, %p185
      %s188 = sadd.s32 %s187, 1
      %p191 = scmp.eq.s32.totalorder %s24, 1
      %p192 = scmp.ne.s32.totalorder %s187, %s189
      %p193 = scmp.eq.s32.totalorder %s24, 0
      %p194 = por %p192, %p193
      %p195 = scmp.ne.s32.totalorder %s187, %s189
      %p196 = scmp.eq.s32.totalorder %s29, 1
      %p197 = por %p195, %p196
      %p198 = scmp.ne.s32.totalorder %s189, %s190
      %p199 = scmp.eq.s32.totalorder %s29, 0
      %p200 = por %p198, %p199
      %p201 = scmp.ne.s32.totalorder %s189, %s190
      %p202 = scmp.eq.s32.totalorder %s30, 1
      %p203 = por %p201, %p202
      %p205 = scmp.ne.s32.totalorder %s190, %s204
      %p206 = scmp.eq.s32.totalorder %s30, 0
      %p207 = por %p205, %p206
      %s208 = ssub.s32 %s31, %s43
      %s209 = ssub.s32 %s32, %s39
      %s210 = sor.u32 %s208, %s209
      %p211 = scmp.eq.s32.totalorder %s210, 0
      %s213 = sadd.s32 %s212, 1
      %s214 = scalar_select %p211, %s212, %s213
      %p217 = pneg %p211
      %p218 = scmp.eq.s32.totalorder %s24, 1
      %p219 = por %p217, %p218
      %p220 = scmp.ne.s32.totalorder %s212, %s215
      %p221 = scmp.eq.s32.totalorder %s24, 0
      %p222 = por %p220, %p221
      %p223 = scmp.ne.s32.totalorder %s212, %s215
      %p224 = scmp.eq.s32.totalorder %s29, 1
      %p225 = por %p223, %p224
      %p226 = scmp.ne.s32.totalorder %s215, %s216
      %p227 = scmp.eq.s32.totalorder %s29, 0
      %p228 = por %p226, %p227
      %p229 = scmp.ne.s32.totalorder %s215, %s216
      %p230 = scmp.eq.s32.totalorder %s30, 1
      %p231 = por %p229, %p230
      %p233 = scmp.ne.s32.totalorder %s216, %s232
      %p234 = scmp.eq.s32.totalorder %s30, 0
      %p235 = por %p233, %p234
      %p236 = scmp.le.s32.totalorder 1, %s24
      %p237 = scmp.lt.s32.totalorder %s24, 3
      %p238 = pnand %p236, %p237
      %p239 = pneg %p238
      // Predicated region
      $region9: #{tpu_custom_call.1} parent=5 // pred_check
        _
      $region10: #{tpu_custom_call.1} parent=5 // pred_check_branch
        %241 = sbr.rel (%p238) target = $region12
      $region11: #{tpu_custom_call.1} parent=5 // pred_region
        %s242 = ssub.s32 %s24, 1
        // Predicated region
        $region13: #{tpu_custom_call.1} parent=11 // pred_check
          %p243 = pneg %p137
        $region14: #{tpu_custom_call.1} parent=11 // pred_check_branch
          %245 = sbr.rel (%p243) target = $region16
        $region15: #{tpu_custom_call.1} parent=11 // pred_region
          %s247 = ssub.s32 512, 512
          %248 = vsyncadd [#allocation11], %s247
          %s249 = sshll.u32 [#allocation10], 4
          %s250 = int_to_ptr.vmem [resolvable:$true] %s249
          %255 = dma.hbm_to_vmem [thread:$0]  %s3, 512, %s250, [#allocation11], 128, 128, 8
        $region16: #{tpu_custom_call.1} parent=11 // pred_fallthru
          _
        // Predicated region
        $region17: #{tpu_custom_call.1} parent=11 // pred_check
          %p256 = pneg %p158
        $region18: #{tpu_custom_call.1} parent=11 // pred_check_branch
          %258 = sbr.rel (%p256) target = $region20
        $region19: #{tpu_custom_call.1} parent=11 // pred_region
          %s260 = ssub.s32 512, 512
          %261 = vsyncadd [#allocation11], %s260
          %s262 = sshll.u32 [#allocation12], 4
          %s263 = int_to_ptr.vmem [resolvable:$true] %s262
          %268 = dma.hbm_to_vmem [thread:$0]  %s4, 512, %s263, [#allocation11], 128, 128, 8
        $region20: #{tpu_custom_call.1} parent=11 // pred_fallthru
          _
        // Predicated region
        $region21: #{tpu_custom_call.1} parent=11 // pred_check
          %p269 = pneg %p179
        $region22: #{tpu_custom_call.1} parent=11 // pred_check_branch
          %271 = sbr.rel (%p269) target = $region24
        $region23: #{tpu_custom_call.1} parent=11 // pred_region
          %s273 = ssub.s32 512, 512
          %274 = vsyncadd [#allocation14], %s273
          %s275 = sshll.u32 [#allocation13], 4
          %s276 = int_to_ptr.vmem [resolvable:$true] %s275
          %281 = dma.hbm_to_vmem [thread:$0]  %s5, 512, %s276, [#allocation14], 128, 128, 8
        $region24: #{tpu_custom_call.1} parent=11 // pred_fallthru
          _
        // Predicated region
        $region25: #{tpu_custom_call.1} parent=11 // pred_check
          %p282 = pneg %p200
        $region26: #{tpu_custom_call.1} parent=11 // pred_check_branch
          %284 = sbr.rel (%p282) target = $region28
        $region27: #{tpu_custom_call.1} parent=11 // pred_region
          %s286 = ssub.s32 512, 512
          %287 = vsyncadd [#allocation14], %s286
          %s288 = sshll.u32 [#allocation15], 4
          %s289 = int_to_ptr.vmem [resolvable:$true] %s288
          %294 = dma.hbm_to_vmem [thread:$0]  %s6, 512, %s289, [#allocation14], 128, 128, 8
        $region28: #{tpu_custom_call.1} parent=11 // pred_fallthru
          _
      $region12: #{tpu_custom_call.1} parent=5 // pred_fallthru
        _
      %p295 = scmp.lt.s32.totalorder %s24, 2
      // Predicated region
      $region29: #{tpu_custom_call.1} parent=5 // pred_check
        %p296 = pneg %p295
      $region30: #{tpu_custom_call.1} parent=5 // pred_check_branch
        %298 = sbr.rel (%p296) target = $region32
      $region31: #{tpu_custom_call.1} parent=5 // pred_region
        // Predicated region
        $region33: #{tpu_custom_call.1} parent=31 // pred_check
          %p299 = pneg %p58
        $region34: #{tpu_custom_call.1} parent=31 // pred_check_branch
          %301 = sbr.rel (%p299) target = $region36
        $region35: #{tpu_custom_call.1} parent=31 // pred_region
          %s302 = sand.u32 %s48, 1
          %s303 = scalar_lea.sflag [#allocation5], %s302
          %s304 = sand.u32 %s48, 1
          %s305 = smul.addr %s304, 8
          %s306 = scalar_lea.vmem [#allocation4], %s305
          %s308 = ssub.s32 128, 128
          %309 = vsyncadd %s303, %s308
          %s310 = sadd.s32 %s32, %s31
          %s311 = smul.addr %s310, 128
          %s312 = scalar_lea.hbm %s0, %s311
          %s314 = sshll.u32 %s306, 4
          %s315 = int_to_ptr.vmem [resolvable:$true] %s314
          %317 = dma.hbm_to_vmem [thread:$0]  %s312, 128, %s315, %s303
        $region36: #{tpu_custom_call.1} parent=31 // pred_fallthru
          _
        // Predicated region
        $region37: #{tpu_custom_call.1} parent=31 // pred_check
          %p318 = pneg %p84
        $region38: #{tpu_custom_call.1} parent=31 // pred_check_branch
          %320 = sbr.rel (%p318) target = $region40
        $region39: #{tpu_custom_call.1} parent=31 // pred_region
          %s321 = sand.u32 %s24, 1
          %s322 = scalar_lea.sflag [#allocation8], %s321
          %s323 = sand.u32 %s74, 1
          %s324 = smul.addr %s323, 8
          %s325 = scalar_lea.vmem [#allocation7], %s324
          %s327 = ssub.s32 128, 128
          %328 = vsyncadd %s322, %s327
          %s329 = smul.addr %s31, 128
          %s330 = scalar_lea.hbm %s1, %s329
          %s332 = sshll.u32 %s325, 4
          %s333 = int_to_ptr.vmem [resolvable:$true] %s332
          %335 = dma.hbm_to_vmem [thread:$0]  %s330, 128, %s333, %s322
        $region40: #{tpu_custom_call.1} parent=31 // pred_fallthru
          _
        // Predicated region
        $region41: #{tpu_custom_call.1} parent=31 // pred_check
          %p336 = pneg %p110
        $region42: #{tpu_custom_call.1} parent=31 // pred_check_branch
          %338 = sbr.rel (%p336) target = $region44
        $region43: #{tpu_custom_call.1} parent=31 // pred_region
          %s339 = sand.u32 %s24, 1
          %s340 = scalar_lea.sflag [#allocation8], %s339
          %s341 = sand.u32 %s100, 1
          %s342 = smul.addr %s341, 8
          %s343 = scalar_lea.vmem [#allocation9], %s342
          %s345 = ssub.s32 128, 128
          %346 = vsyncadd %s340, %s345
          %s347 = smul.addr %s31, 128
          %s348 = scalar_lea.hbm %s2, %s347
          %s350 = sshll.u32 %s343, 4
          %s351 = int_to_ptr.vmem [resolvable:$true] %s350
          %353 = dma.hbm_to_vmem [thread:$0]  %s348, 128, %s351, %s340
        $region44: #{tpu_custom_call.1} parent=31 // pred_fallthru
          _
      $region32: #{tpu_custom_call.1} parent=5 // pred_fallthru
        _
      %p354 = scmp.le.s32.totalorder 1, %s24
      %p355 = scmp.lt.s32.totalorder %s24, 3
      %p356 = pnand %p354, %p355
      %p357 = pneg %p356
      // Predicated region
      $region45: #{tpu_custom_call.1} parent=5 // pred_check
        _
      $region46: #{tpu_custom_call.1} parent=5 // pred_check_branch
        %359 = sbr.rel (%p356) target = $region48
      $region47: #{tpu_custom_call.1} parent=5 // pred_region
        %s360 = ssub.s32 %s24, 1
        %s361 = sand.u32 %s51, 1
        %s362 = scalar_lea.sflag [#allocation5], %s361
        %s363 = sand.u32 %s51, 1
        %s364 = smul.addr %s363, 8
        %s365 = scalar_lea.vmem [#allocation4], %s364
        // Predicated region
        $region49: #{tpu_custom_call.1} parent=47 // pred_check
          %p366 = pneg %p64
        $region50: #{tpu_custom_call.1} parent=47 // pred_check_branch
          %368 = sbr.rel (%p366) target = $region52
        $region51: #{tpu_custom_call.1} parent=47 // pred_region
          %369 = dma.done %s362, 128
        $region52: #{tpu_custom_call.1} parent=47 // pred_fallthru
          _
        %s370 = sand.u32 %s29, 1
        %s371 = scalar_lea.sflag [#allocation8], %s370
        %s372 = sand.u32 %s77, 1
        %s373 = smul.addr %s372, 8
        %s374 = scalar_lea.vmem [#allocation7], %s373
        // Predicated region
        $region53: #{tpu_custom_call.1} parent=47 // pred_check
          %p375 = pneg %p90
        $region54: #{tpu_custom_call.1} parent=47 // pred_check_branch
          %377 = sbr.rel (%p375) target = $region56
        $region55: #{tpu_custom_call.1} parent=47 // pred_region
          %378 = dma.done %s371, 128
        $region56: #{tpu_custom_call.1} parent=47 // pred_fallthru
          _
        %s379 = sand.u32 %s29, 1
        %s380 = scalar_lea.sflag [#allocation8], %s379
        %s381 = sand.u32 %s103, 1
        %s382 = smul.addr %s381, 8
        %s383 = scalar_lea.vmem [#allocation9], %s382
        // Predicated region
        $region57: #{tpu_custom_call.1} parent=47 // pred_check
          %p384 = pneg %p116
        $region58: #{tpu_custom_call.1} parent=47 // pred_check_branch
          %386 = sbr.rel (%p384) target = $region60
        $region59: #{tpu_custom_call.1} parent=47 // pred_region
          %387 = dma.done %s380, 128
        $region60: #{tpu_custom_call.1} parent=47 // pred_fallthru
          _
        // Predicated region
        $region61: #{tpu_custom_call.1} parent=47 // pred_check
          %p388 = pneg %p137
        $region62: #{tpu_custom_call.1} parent=47 // pred_check_branch
          %390 = sbr.rel (%p388) target = $region64
        $region63: #{tpu_custom_call.1} parent=47 // pred_region
          %391 = dma.done [#allocation11], 512
        $region64: #{tpu_custom_call.1} parent=47 // pred_fallthru
          _
        // Predicated region
        $region65: #{tpu_custom_call.1} parent=47 // pred_check
          %p392 = pneg %p158
        $region66: #{tpu_custom_call.1} parent=47 // pred_check_branch
          %394 = sbr.rel (%p392) target = $region68
        $region67: #{tpu_custom_call.1} parent=47 // pred_region
          %395 = dma.done [#allocation11], 512
        $region68: #{tpu_custom_call.1} parent=47 // pred_fallthru
          _
        // Predicated region
        $region69: #{tpu_custom_call.1} parent=47 // pred_check
          %p396 = pneg %p179
        $region70: #{tpu_custom_call.1} parent=47 // pred_check_branch
          %398 = sbr.rel (%p396) target = $region72
        $region71: #{tpu_custom_call.1} parent=47 // pred_region
          %399 = dma.done [#allocation14], 512
        $region72: #{tpu_custom_call.1} parent=47 // pred_fallthru
          _
        // Predicated region
        $region73: #{tpu_custom_call.1} parent=47 // pred_check
          %p400 = pneg %p200
        $region74: #{tpu_custom_call.1} parent=47 // pred_check_branch
          %402 = sbr.rel (%p400) target = $region76
        $region75: #{tpu_custom_call.1} parent=47 // pred_region
          %403 = dma.done [#allocation14], 512
        $region76: #{tpu_custom_call.1} parent=47 // pred_fallthru
          _
        %s404 = sand.u32 %s51, 1
        %s405 = scalar_lea.sflag [#allocation5], %s404
        %s406 = sand.u32 %s51, 1
        %s407 = smul.addr %s406, 8
        %s408 = scalar_lea.vmem [#allocation4], %s407
        %p409 = pneg %p64
        %p410 = pneg %p61
        %s411 = sand.u32 %s29, 1
        %s412 = scalar_lea.sflag [#allocation8], %s411
        %s413 = sand.u32 %s77, 1
        %s414 = smul.addr %s413, 8
        %s415 = scalar_lea.vmem [#allocation7], %s414
        %p416 = pneg %p90
        %p417 = pneg %p87
        %s418 = sand.u32 %s29, 1
        %s419 = scalar_lea.sflag [#allocation8], %s418
        %s420 = sand.u32 %s103, 1
        %s421 = smul.addr %s420, 8
        %s422 = scalar_lea.vmem [#allocation9], %s421
        %p423 = pneg %p116
        %p424 = pneg %p113
        %p425 = pneg %p137
        %p426 = pneg %p134
        %p427 = pneg %p158
        %p428 = pneg %p155
        %p429 = pneg %p179
        %p430 = pneg %p176
        %p431 = pneg %p200
        %p432 = pneg %p197
        %p433 = pneg %p228
        %p434 = pneg %p225
        %s435 = sand.u32 %s215, 1
        %s436 = scalar_lea.sflag [#allocation6], %s435
        %s437 = sand.u32 %s215, 1
        %s438 = smul.addr %s437, 8
        %s439 = scalar_lea.vmem [#allocation16], %s438
        %p440 = scmp.eq.s32.totalorder %s34, 0
        // Predicated region
        $region77: #{tpu_custom_call.1} parent=47 // pred_check
          %p441 = pneg %p440
        $region78: #{tpu_custom_call.1} parent=47 // pred_check_branch
          %443 = sbr.rel (%p441) target = $region80
        $region79: #{tpu_custom_call.1} parent=47 // pred_region
          %v444 = vld [vmem:[%s374] sm:$0xff]
          %v445 = vld [vmem:[%s383] sm:$0xff]
          %v446 = vld [vmem:[#allocation12] sm:$0xff]
          %v447 = vld [vmem:[#allocation12 + $0x8] sm:$0xff]
          %v448 = vld [vmem:[#allocation12 + $0x10] sm:$0xff]
          %v449 = vld [vmem:[#allocation12 + $0x18] sm:$0xff]
          %vm450 = vcmask 261120
          %v452 = vsel %vm450, %v444, 0
          %v455 = vsel %vm450, %v446, 0
          %v458 = vsel %vm450, %v447, 0
          %v461 = vsel %vm450, %v448, 0
          %v464 = vsel %vm450, %v449, 0
          %466 = vmatprep.subr.mxu0 0.0
          %467 = vmatpush1.xpose.msra.mxu0 %v455
          %468 = vmatprep.subr.mxu0 0.0
          %469 = vmatpush1.xpose.msra.mxu0 %v458
          %470 = vmatprep.subr.mxu0 0.0
          %471 = vmatpush1.xpose.msra.mxu0 %v461
          %472 = vmatprep.subr.mxu0 0.0
          %473 = vmatpush1.xpose.msra.mxu0 %v464
          %474 = vmatprep.subr.mxu0 0.0
          %475 = vmatpush1.xpose.msra.mxu0 0.0
          %476 = vmatprep.subr.mxu0 0.0
          %477 = vmatpush1.xpose.msra.mxu0 0.0
          %478 = vmatprep.subr.mxu0 0.0
          %479 = vmatpush1.xpose.msra.mxu0 0.0
          %480 = vmatprep.subr.mxu0 0.0
          %481 = vmatpush1.xpose.msra.mxu0 0.0
          %482 = vmatprep.subr.mxu0 0.0
          %483 = vmatpush1.xpose.msra.mxu0 0.0
          %484 = vmatprep.subr.mxu0 0.0
          %485 = vmatpush1.xpose.msra.mxu0 0.0
          %486 = vmatprep.subr.mxu0 0.0
          %487 = vmatpush1.xpose.msra.mxu0 0.0
          %488 = vmatprep.subr.mxu0 0.0
          %489 = vmatpush1.xpose.msra.mxu0 0.0
          %490 = vmatprep.subr.mxu0 0.0
          %491 = vmatpush1.xpose.msra.mxu0 0.0
          %492 = vmatprep.subr.mxu0 0.0
          %493 = vmatpush1.xpose.msra.mxu0 0.0
          %494 = vmatprep.subr.mxu0 0.0
          %495 = vmatpush1.xpose.msra.mxu0 0.0
          %496 = vmatprep.subr.mxu0 0.0
          %497 = vmatpush1.xpose.msra.mxu0 0.0
          %498 = vmatprep.subr.mxu0 0.0
          %499 = vmatpush1.xpose.msra.mxu0 0.0
          %500 = vmatprep.subr.mxu0 0.0
          %501 = vmatpush1.xpose.msra.mxu0 0.0
          %502 = vmatprep.subr.mxu0 0.0
          %503 = vmatpush1.xpose.msra.mxu0 0.0
          %504 = vmatprep.subr.mxu0 0.0
          %505 = vmatpush1.xpose.msra.mxu0 0.0
          %506 = vmatprep.subr.mxu0 0.0
          %507 = vmatpush1.xpose.msra.mxu0 0.0
          %508 = vmatprep.subr.mxu0 0.0
          %509 = vmatpush1.xpose.msra.mxu0 0.0
          %510 = vmatprep.subr.mxu0 0.0
          %511 = vmatpush1.xpose.msra.mxu0 0.0
          %512 = vmatprep.subr.mxu0 0.0
          %513 = vmatpush1.xpose.msra.mxu0 0.0
          %514 = vmatprep.subr.mxu0 0.0
          %515 = vmatpush1.xpose.msra.mxu0 0.0
          %516 = vmatprep.subr.mxu0 0.0
          %517 = vmatpush1.xpose.msra.mxu0 0.0
          %518 = vmatprep.subr.mxu0 0.0
          %519 = vmatpush1.xpose.msra.mxu0 0.0
          %520 = vmatprep.subr.mxu0 0.0
          %521 = vmatpush1.xpose.msra.mxu0 0.0
          %522 = vmatprep.subr.mxu0 0.0
          %523 = vmatpush1.xpose.msra.mxu0 0.0
          %524 = vmatprep.subr.mxu0 0.0
          %525 = vmatpush1.xpose.msra.mxu0 0.0
          %526 = vmatprep.subr.mxu0 0.0
          %527 = vmatpush1.xpose.msra.mxu0 0.0
          %528 = vmatprep.subr.mxu0 0.0
          %529 = vmatpush1.xpose.msra.mxu0 0.0
          %530 = vmatprep.mubr.f32.mxu0 0.0
          %531 = vmatmul.mubr.f32.gmra.mrb[0].mxu0 %v452
          %v532 = vpop.f32.mrb[0].mxu0
          %v533 = vadd.f32 0.0, %v532
          %v534 = vpop.f32.mrb[0].mxu0
          %535 = vdwg.mxu0
          %536 = vst.msk [vmem:[#allocation2] sm:$0xff] %vm450, %v533
          %v537 = vld [vmem:[#allocation13] sm:$0xff]
          %v538 = vld [vmem:[#allocation13 + $0x8] sm:$0xff]
          %v539 = vld [vmem:[#allocation13 + $0x10] sm:$0xff]
          %v540 = vld [vmem:[#allocation13 + $0x18] sm:$0xff]
          %v542 = vsel %vm450, %v445, 0
          %v545 = vsel %vm450, %v537, 0
          %v548 = vsel %vm450, %v538, 0
          %v551 = vsel %vm450, %v539, 0
          %v554 = vsel %vm450, %v540, 0
          %556 = vmatprep.subr.mxu0 0.0
          %557 = vmatpush1.xpose.msra.mxu0 %v545
          %558 = vmatprep.subr.mxu0 0.0
          %559 = vmatpush1.xpose.msra.mxu0 %v548
          %560 = vmatprep.subr.mxu0 0.0
          %561 = vmatpush1.xpose.msra.mxu0 %v551
          %562 = vmatprep.subr.mxu0 0.0
          %563 = vmatpush1.xpose.msra.mxu0 %v554
          %564 = vmatprep.subr.mxu0 0.0
          %565 = vmatpush1.xpose.msra.mxu0 0.0
          %566 = vmatprep.subr.mxu0 0.0
          %567 = vmatpush1.xpose.msra.mxu0 0.0
          %568 = vmatprep.subr.mxu0 0.0
          %569 = vmatpush1.xpose.msra.mxu0 0.0
          %570 = vmatprep.subr.mxu0 0.0
          %571 = vmatpush1.xpose.msra.mxu0 0.0
          %572 = vmatprep.subr.mxu0 0.0
          %573 = vmatpush1.xpose.msra.mxu0 0.0
          %574 = vmatprep.subr.mxu0 0.0
          %575 = vmatpush1.xpose.msra.mxu0 0.0
          %576 = vmatprep.subr.mxu0 0.0
          %577 = vmatpush1.xpose.msra.mxu0 0.0
          %578 = vmatprep.subr.mxu0 0.0
          %579 = vmatpush1.xpose.msra.mxu0 0.0
          %580 = vmatprep.subr.mxu0 0.0
          %581 = vmatpush1.xpose.msra.mxu0 0.0
          %582 = vmatprep.subr.mxu0 0.0
          %583 = vmatpush1.xpose.msra.mxu0 0.0
          %584 = vmatprep.subr.mxu0 0.0
          %585 = vmatpush1.xpose.msra.mxu0 0.0
          %586 = vmatprep.subr.mxu0 0.0
          %587 = vmatpush1.xpose.msra.mxu0 0.0
          %588 = vmatprep.subr.mxu0 0.0
          %589 = vmatpush1.xpose.msra.mxu0 0.0
          %590 = vmatprep.subr.mxu0 0.0
          %591 = vmatpush1.xpose.msra.mxu0 0.0
          %592 = vmatprep.subr.mxu0 0.0
          %593 = vmatpush1.xpose.msra.mxu0 0.0
          %594 = vmatprep.subr.mxu0 0.0
          %595 = vmatpush1.xpose.msra.mxu0 0.0
          %596 = vmatprep.subr.mxu0 0.0
          %597 = vmatpush1.xpose.msra.mxu0 0.0
          %598 = vmatprep.subr.mxu0 0.0
          %599 = vmatpush1.xpose.msra.mxu0 0.0
          %600 = vmatprep.subr.mxu0 0.0
          %601 = vmatpush1.xpose.msra.mxu0 0.0
          %602 = vmatprep.subr.mxu0 0.0
          %603 = vmatpush1.xpose.msra.mxu0 0.0
          %604 = vmatprep.subr.mxu0 0.0
          %605 = vmatpush1.xpose.msra.mxu0 0.0
          %606 = vmatprep.subr.mxu0 0.0
          %607 = vmatpush1.xpose.msra.mxu0 0.0
          %608 = vmatprep.subr.mxu0 0.0
          %609 = vmatpush1.xpose.msra.mxu0 0.0
          %610 = vmatprep.subr.mxu0 0.0
          %611 = vmatpush1.xpose.msra.mxu0 0.0
          %612 = vmatprep.subr.mxu0 0.0
          %613 = vmatpush1.xpose.msra.mxu0 0.0
          %614 = vmatprep.subr.mxu0 0.0
          %615 = vmatpush1.xpose.msra.mxu0 0.0
          %616 = vmatprep.subr.mxu0 0.0
          %617 = vmatpush1.xpose.msra.mxu0 0.0
          %618 = vmatprep.subr.mxu0 0.0
          %619 = vmatpush1.xpose.msra.mxu0 0.0
          %620 = vmatprep.mubr.f32.mxu0 0.0
          %621 = vmatmul.mubr.f32.gmra.mrb[0].mxu0 %v542
          %v622 = vpop.f32.mrb[0].mxu0
          %v623 = vadd.f32 0.0, %v622
          %v624 = vpop.f32.mrb[0].mxu0
          %625 = vdwg.mxu0
          %626 = vst.msk [vmem:[#allocation3] sm:$0xff] %vm450, %v623
        $region80: #{tpu_custom_call.1} parent=47 // pred_fallthru
          _
        %v627 = vld [vmem:[%s365] sm:$0xff]
        %v628 = vld [vmem:[#allocation10] sm:$0xff]
        %v629 = vld [vmem:[#allocation10 + $0x8] sm:$0xff]
        %v630 = vld [vmem:[#allocation10 + $0x10] sm:$0xff]
        %v631 = vld [vmem:[#allocation10 + $0x18] sm:$0xff]
        %vm632 = vcmask 261120
        %v634 = vsel %vm632, %v627, 0
        %v637 = vsel %vm632, %v628, 0
        %v640 = vsel %vm632, %v629, 0
        %v643 = vsel %vm632, %v630, 0
        %v646 = vsel %vm632, %v631, 0
        %648 = vmatprep.subr.mxu0 0.0
        %649 = vmatpush1.xpose.msra.mxu0 %v637
        %650 = vmatprep.subr.mxu0 0.0
        %651 = vmatpush1.xpose.msra.mxu0 %v640
        %652 = vmatprep.subr.mxu0 0.0
        %653 = vmatpush1.xpose.msra.mxu0 %v643
        %654 = vmatprep.subr.mxu0 0.0
        %655 = vmatpush1.xpose.msra.mxu0 %v646
        %656 = vmatprep.subr.mxu0 0.0
        %657 = vmatpush1.xpose.msra.mxu0 0.0
        %658 = vmatprep.subr.mxu0 0.0
        %659 = vmatpush1.xpose.msra.mxu0 0.0
        %660 = vmatprep.subr.mxu0 0.0
        %661 = vmatpush1.xpose.msra.mxu0 0.0
        %662 = vmatprep.subr.mxu0 0.0
        %663 = vmatpush1.xpose.msra.mxu0 0.0
        %664 = vmatprep.subr.mxu0 0.0
        %665 = vmatpush1.xpose.msra.mxu0 0.0
        %666 = vmatprep.subr.mxu0 0.0
        %667 = vmatpush1.xpose.msra.mxu0 0.0
        %668 = vmatprep.subr.mxu0 0.0
        %669 = vmatpush1.xpose.msra.mxu0 0.0
        %670 = vmatprep.subr.mxu0 0.0
        %671 = vmatpush1.xpose.msra.mxu0 0.0
        %672 = vmatprep.subr.mxu0 0.0
        %673 = vmatpush1.xpose.msra.mxu0 0.0
        %674 = vmatprep.subr.mxu0 0.0
        %675 = vmatpush1.xpose.msra.mxu0 0.0
        %676 = vmatprep.subr.mxu0 0.0
        %677 = vmatpush1.xpose.msra.mxu0 0.0
        %678 = vmatprep.subr.mxu0 0.0
        %679 = vmatpush1.xpose.msra.mxu0 0.0
        %680 = vmatprep.subr.mxu0 0.0
        %681 = vmatpush1.xpose.msra.mxu0 0.0
        %682 = vmatprep.subr.mxu0 0.0
        %683 = vmatpush1.xpose.msra.mxu0 0.0
        %684 = vmatprep.subr.mxu0 0.0
        %685 = vmatpush1.xpose.msra.mxu0 0.0
        %686 = vmatprep.subr.mxu0 0.0
        %687 = vmatpush1.xpose.msra.mxu0 0.0
        %688 = vmatprep.subr.mxu0 0.0
        %689 = vmatpush1.xpose.msra.mxu0 0.0
        %690 = vmatprep.subr.mxu0 0.0
        %691 = vmatpush1.xpose.msra.mxu0 0.0
        %692 = vmatprep.subr.mxu0 0.0
        %693 = vmatpush1.xpose.msra.mxu0 0.0
        %694 = vmatprep.subr.mxu0 0.0
        %695 = vmatpush1.xpose.msra.mxu0 0.0
        %696 = vmatprep.subr.mxu0 0.0
        %697 = vmatpush1.xpose.msra.mxu0 0.0
        %698 = vmatprep.subr.mxu0 0.0
        %699 = vmatpush1.xpose.msra.mxu0 0.0
        %700 = vmatprep.subr.mxu0 0.0
        %701 = vmatpush1.xpose.msra.mxu0 0.0
        %702 = vmatprep.subr.mxu0 0.0
        %703 = vmatpush1.xpose.msra.mxu0 0.0
        %704 = vmatprep.subr.mxu0 0.0
        %705 = vmatpush1.xpose.msra.mxu0 0.0
        %706 = vmatprep.subr.mxu0 0.0
        %707 = vmatpush1.xpose.msra.mxu0 0.0
        %708 = vmatprep.subr.mxu0 0.0
        %709 = vmatpush1.xpose.msra.mxu0 0.0
        %710 = vmatprep.subr.mxu0 0.0
        %711 = vmatpush1.xpose.msra.mxu0 0.0
        %712 = vmatprep.mubr.f32.mxu0 0.0
        %713 = vmatmul.mubr.f32.gmra.mrb[0].mxu0 %v634
        %v714 = vpop.f32.mrb[0].mxu0
        %v715 = vadd.f32 0.0, %v714
        %v716 = vpop.f32.mrb[0].mxu0
        %717 = vdwg.mxu0
        %v718 = vld [vmem:[#allocation2] sm:$0xff]
        %v719 = vld [vmem:[#allocation3] sm:$0xff]
        %vm720 = vcmask 64512
        %v722 = vsel %vm720, %v715, 0
        %v725 = vsel %vm720, %v718, 0
        %727 = vmatprep.subr.mxu0 0.0
        %728 = vmatpush1.xpose.msra.mxu0 %v725
        %729 = vmatprep.subr.mxu0 0.0
        %730 = vmatpush1.xpose.msra.mxu0 0.0
        %731 = vmatprep.subr.mxu0 0.0
        %732 = vmatpush1.xpose.msra.mxu0 0.0
        %733 = vmatprep.subr.mxu0 0.0
        %734 = vmatpush1.xpose.msra.mxu0 0.0
        %735 = vmatprep.subr.mxu0 0.0
        %736 = vmatpush1.xpose.msra.mxu0 0.0
        %737 = vmatprep.subr.mxu0 0.0
        %738 = vmatpush1.xpose.msra.mxu0 0.0
        %739 = vmatprep.subr.mxu0 0.0
        %740 = vmatpush1.xpose.msra.mxu0 0.0
        %741 = vmatprep.subr.mxu0 0.0
        %742 = vmatpush1.xpose.msra.mxu0 0.0
        %743 = vmatprep.subr.mxu0 0.0
        %744 = vmatpush1.xpose.msra.mxu0 0.0
        %745 = vmatprep.subr.mxu0 0.0
        %746 = vmatpush1.xpose.msra.mxu0 0.0
        %747 = vmatprep.subr.mxu0 0.0
        %748 = vmatpush1.xpose.msra.mxu0 0.0
        %749 = vmatprep.subr.mxu0 0.0
        %750 = vmatpush1.xpose.msra.mxu0 0.0
        %751 = vmatprep.subr.mxu0 0.0
        %752 = vmatpush1.xpose.msra.mxu0 0.0
        %753 = vmatprep.subr.mxu0 0.0
        %754 = vmatpush1.xpose.msra.mxu0 0.0
        %755 = vmatprep.subr.mxu0 0.0
        %756 = vmatpush1.xpose.msra.mxu0 0.0
        %757 = vmatprep.subr.mxu0 0.0
        %758 = vmatpush1.xpose.msra.mxu0 0.0
        %759 = vmatprep.subr.mxu0 0.0
        %760 = vmatpush1.xpose.msra.mxu0 0.0
        %761 = vmatprep.subr.mxu0 0.0
        %762 = vmatpush1.xpose.msra.mxu0 0.0
        %763 = vmatprep.subr.mxu0 0.0
        %764 = vmatpush1.xpose.msra.mxu0 0.0
        %765 = vmatprep.subr.mxu0 0.0
        %766 = vmatpush1.xpose.msra.mxu0 0.0
        %767 = vmatprep.subr.mxu0 0.0
        %768 = vmatpush1.xpose.msra.mxu0 0.0
        %769 = vmatprep.subr.mxu0 0.0
        %770 = vmatpush1.xpose.msra.mxu0 0.0
        %771 = vmatprep.subr.mxu0 0.0
        %772 = vmatpush1.xpose.msra.mxu0 0.0
        %773 = vmatprep.subr.mxu0 0.0
        %774 = vmatpush1.xpose.msra.mxu0 0.0
        %775 = vmatprep.subr.mxu0 0.0
        %776 = vmatpush1.xpose.msra.mxu0 0.0
        %777 = vmatprep.subr.mxu0 0.0
        %778 = vmatpush1.xpose.msra.mxu0 0.0
        %779 = vmatprep.subr.mxu0 0.0
        %780 = vmatpush1.xpose.msra.mxu0 0.0
        %781 = vmatprep.subr.mxu0 0.0
        %782 = vmatpush1.xpose.msra.mxu0 0.0
        %783 = vmatprep.subr.mxu0 0.0
        %784 = vmatpush1.xpose.msra.mxu0 0.0
        %785 = vmatprep.subr.mxu0 0.0
        %786 = vmatpush1.xpose.msra.mxu0 0.0
        %787 = vmatprep.subr.mxu0 0.0
        %788 = vmatpush1.xpose.msra.mxu0 0.0
        %789 = vmatprep.subr.mxu0 0.0
        %790 = vmatpush1.xpose.msra.mxu0 0.0
        %791 = vmatprep.mubr.f32.mxu0 0.0
        %792 = vmatmul.mubr.f32.gmra.mrb[0].mxu0 %v722
        %v793 = vpop.f32.mrb[0].mxu0
        %v794 = vadd.f32 0.0, %v793
        %v795 = vpop.f32.mrb[0].mxu0
        %796 = vdwg.mxu0
        %v797 = vsel %vm720, %v794, -inf
        %798 = vmax.xlane.f32.xlu0 %v797
        %v799 = vpop.xlane.xlu0 %798
        %v800 = vsub.f32 %v794, %v799
        %v801 = vmul.f32 %v800, 1.442695
        %v802 = vpow.pop %v801
        %v803 = vsel %vm720, %v802, 0.0
        %804 = vadd.xlane.f32.xlu0 %v803
        %v805 = vpop.xlane.xlu0 %804
        %v807 = vsel %vm720, %v802, 0
        %809 = vmatprep.subr.mxu0 0.0
        %810 = vmatpush1.msra.mxu0 %v719
        %811 = vmatprep.subr.mxu0 0.0
        %812 = vmatpush1.msra.mxu0 0.0
        %813 = vmatprep.subr.mxu0 0.0
        %814 = vmatpush1.msra.mxu0 0.0
        %815 = vmatprep.subr.mxu0 0.0
        %816 = vmatpush1.msra.mxu0 0.0
        %817 = vmatprep.subr.mxu0 0.0
        %818 = vmatpush1.msra.mxu0 0.0
        %819 = vmatprep.subr.mxu0 0.0
        %820 = vmatpush1.msra.mxu0 0.0
        %821 = vmatprep.subr.mxu0 0.0
        %822 = vmatpush1.msra.mxu0 0.0
        %823 = vmatprep.subr.mxu0 0.0
        %824 = vmatpush1.msra.mxu0 0.0
        %825 = vmatprep.subr.mxu0 0.0
        %826 = vmatpush1.msra.mxu0 0.0
        %827 = vmatprep.subr.mxu0 0.0
        %828 = vmatpush1.msra.mxu0 0.0
        %829 = vmatprep.subr.mxu0 0.0
        %830 = vmatpush1.msra.mxu0 0.0
        %831 = vmatprep.subr.mxu0 0.0
        %832 = vmatpush1.msra.mxu0 0.0
        %833 = vmatprep.subr.mxu0 0.0
        %834 = vmatpush1.msra.mxu0 0.0
        %835 = vmatprep.subr.mxu0 0.0
        %836 = vmatpush1.msra.mxu0 0.0
        %837 = vmatprep.subr.mxu0 0.0
        %838 = vmatpush1.msra.mxu0 0.0
        %839 = vmatprep.subr.mxu0 0.0
        %840 = vmatpush1.msra.mxu0 0.0
        %841 = vmatprep.subr.mxu0 0.0
        %842 = vmatpush1.msra.mxu0 0.0
        %843 = vmatprep.subr.mxu0 0.0
        %844 = vmatpush1.msra.mxu0 0.0
        %845 = vmatprep.subr.mxu0 0.0
        %846 = vmatpush1.msra.mxu0 0.0
        %847 = vmatprep.subr.mxu0 0.0
        %848 = vmatpush1.msra.mxu0 0.0
        %849 = vmatprep.subr.mxu0 0.0
        %850 = vmatpush1.msra.mxu0 0.0
        %851 = vmatprep.subr.mxu0 0.0
        %852 = vmatpush1.msra.mxu0 0.0
        %853 = vmatprep.subr.mxu0 0.0
        %854 = vmatpush1.msra.mxu0 0.0
        %855 = vmatprep.subr.mxu0 0.0
        %856 = vmatpush1.msra.mxu0 0.0
        %857 = vmatprep.subr.mxu0 0.0
        %858 = vmatpush1.msra.mxu0 0.0
        %859 = vmatprep.subr.mxu0 0.0
        %860 = vmatpush1.msra.mxu0 0.0
        %861 = vmatprep.subr.mxu0 0.0
        %862 = vmatpush1.msra.mxu0 0.0
        %863 = vmatprep.subr.mxu0 0.0
        %864 = vmatpush1.msra.mxu0 0.0
        %865 = vmatprep.subr.mxu0 0.0
        %866 = vmatpush1.msra.mxu0 0.0
        %867 = vmatprep.subr.mxu0 0.0
        %868 = vmatpush1.msra.mxu0 0.0
        %869 = vmatprep.subr.mxu0 0.0
        %870 = vmatpush1.msra.mxu0 0.0
        %871 = vmatprep.subr.mxu0 0.0
        %872 = vmatpush1.msra.mxu0 0.0
        %873 = vmatprep.mubr.f32.mxu0 0.0
        %874 = vmatmul.mubr.f32.gmra.mrb[0].mxu0 %v807
        %v875 = vpop.f32.mrb[0].mxu0
        %v876 = vadd.f32 0.0, %v875
        %v877 = vpop.f32.mrb[0].mxu0
        %878 = vdwg.mxu0
        %v879 = vrcp.pop %v805
        %v880 = vmul.f32 1.0, %v879
        %v881 = vmul.f32 %v876, %v880
        %882 = vrot.lane.b32.xlu0 %v715, 120
        %v883 = vpop.permute.xlu0 %882
        %884 = vrot.lane.b32.xlu0 %v718, 120
        %v885 = vpop.permute.xlu0 %884
        %v886 = vsel %vm720, %v883, 0
        %v888 = vsel %vm720, %v885, 0
        %890 = vmatprep.subr.mxu0 0.0
        %891 = vmatpush1.xpose.msra.mxu0 %v888
        %892 = vmatprep.subr.mxu0 0.0
        %893 = vmatpush1.xpose.msra.mxu0 0.0
        %894 = vmatprep.subr.mxu0 0.0
        %895 = vmatpush1.xpose.msra.mxu0 0.0
        %896 = vmatprep.subr.mxu0 0.0
        %897 = vmatpush1.xpose.msra.mxu0 0.0
        %898 = vmatprep.subr.mxu0 0.0
        %899 = vmatpush1.xpose.msra.mxu0 0.0
        %900 = vmatprep.subr.mxu0 0.0
        %901 = vmatpush1.xpose.msra.mxu0 0.0
        %902 = vmatprep.subr.mxu0 0.0
        %903 = vmatpush1.xpose.msra.mxu0 0.0
        %904 = vmatprep.subr.mxu0 0.0
        %905 = vmatpush1.xpose.msra.mxu0 0.0
        %906 = vmatprep.subr.mxu0 0.0
        %907 = vmatpush1.xpose.msra.mxu0 0.0
        %908 = vmatprep.subr.mxu0 0.0
        %909 = vmatpush1.xpose.msra.mxu0 0.0
        %910 = vmatprep.subr.mxu0 0.0
        %911 = vmatpush1.xpose.msra.mxu0 0.0
        %912 = vmatprep.subr.mxu0 0.0
        %913 = vmatpush1.xpose.msra.mxu0 0.0
        %914 = vmatprep.subr.mxu0 0.0
        %915 = vmatpush1.xpose.msra.mxu0 0.0
        %916 = vmatprep.subr.mxu0 0.0
        %917 = vmatpush1.xpose.msra.mxu0 0.0
        %918 = vmatprep.subr.mxu0 0.0
        %919 = vmatpush1.xpose.msra.mxu0 0.0
        %920 = vmatprep.subr.mxu0 0.0
        %921 = vmatpush1.xpose.msra.mxu0 0.0
        %922 = vmatprep.subr.mxu0 0.0
        %923 = vmatpush1.xpose.msra.mxu0 0.0
        %924 = vmatprep.subr.mxu0 0.0
        %925 = vmatpush1.xpose.msra.mxu0 0.0
        %926 = vmatprep.subr.mxu0 0.0
        %927 = vmatpush1.xpose.msra.mxu0 0.0
        %928 = vmatprep.subr.mxu0 0.0
        %929 = vmatpush1.xpose.msra.mxu0 0.0
        %930 = vmatprep.subr.mxu0 0.0
        %931 = vmatpush1.xpose.msra.mxu0 0.0
        %932 = vmatprep.subr.mxu0 0.0
        %933 = vmatpush1.xpose.msra.mxu0 0.0
        %934 = vmatprep.subr.mxu0 0.0
        %935 = vmatpush1.xpose.msra.mxu0 0.0
        %936 = vmatprep.subr.mxu0 0.0
        %937 = vmatpush1.xpose.msra.mxu0 0.0
        %938 = vmatprep.subr.mxu0 0.0
        %939 = vmatpush1.xpose.msra.mxu0 0.0
        %940 = vmatprep.subr.mxu0 0.0
        %941 = vmatpush1.xpose.msra.mxu0 0.0
        %942 = vmatprep.subr.mxu0 0.0
        %943 = vmatpush1.xpose.msra.mxu0 0.0
        %944 = vmatprep.subr.mxu0 0.0
        %945 = vmatpush1.xpose.msra.mxu0 0.0
        %946 = vmatprep.subr.mxu0 0.0
        %947 = vmatpush1.xpose.msra.mxu0 0.0
        %948 = vmatprep.subr.mxu0 0.0
        %949 = vmatpush1.xpose.msra.mxu0 0.0
        %950 = vmatprep.subr.mxu0 0.0
        %951 = vmatpush1.xpose.msra.mxu0 0.0
        %952 = vmatprep.subr.mxu0 0.0
        %953 = vmatpush1.xpose.msra.mxu0 0.0
        %954 = vmatprep.mubr.f32.mxu0 0.0
        %955 = vmatmul.mubr.f32.gmra.mrb[0].mxu0 %v886
        %v956 = vpop.f32.mrb[0].mxu0
        %v957 = vadd.f32 0.0, %v956
        %v958 = vpop.f32.mrb[0].mxu0
        %959 = vdwg.mxu0
        %v960 = vsel %vm720, %v957, -inf
        %961 = vmax.xlane.f32.xlu0 %v960
        %v962 = vpop.xlane.xlu0 %961
        %v963 = vsub.f32 %v957, %v962
        %v964 = vmul.f32 %v963, 1.442695
        %v965 = vpow.pop %v964
        %v966 = vsel %vm720, %v965, 0.0
        %967 = vadd.xlane.f32.xlu0 %v966
        %v968 = vpop.xlane.xlu0 %967
        %970 = vrot.lane.b32.xlu0 %v719, 120
        %v971 = vpop.permute.xlu0 %970
        %v974 = vsel %vm720, %v965, 0
        %976 = vmatprep.subr.mxu0 0.0
        %977 = vmatpush1.msra.mxu0 %v971
        %978 = vmatprep.subr.mxu0 0.0
        %979 = vmatpush1.msra.mxu0 0.0
        %980 = vmatprep.subr.mxu0 0.0
        %981 = vmatpush1.msra.mxu0 0.0
        %982 = vmatprep.subr.mxu0 0.0
        %983 = vmatpush1.msra.mxu0 0.0
        %984 = vmatprep.subr.mxu0 0.0
        %985 = vmatpush1.msra.mxu0 0.0
        %986 = vmatprep.subr.mxu0 0.0
        %987 = vmatpush1.msra.mxu0 0.0
        %988 = vmatprep.subr.mxu0 0.0
        %989 = vmatpush1.msra.mxu0 0.0
        %990 = vmatprep.subr.mxu0 0.0
        %991 = vmatpush1.msra.mxu0 0.0
        %992 = vmatprep.subr.mxu0 0.0
        %993 = vmatpush1.msra.mxu0 0.0
        %994 = vmatprep.subr.mxu0 0.0
        %995 = vmatpush1.msra.mxu0 0.0
        %996 = vmatprep.subr.mxu0 0.0
        %997 = vmatpush1.msra.mxu0 0.0
        %998 = vmatprep.subr.mxu0 0.0
        %999 = vmatpush1.msra.mxu0 0.0
        %1000 = vmatprep.subr.mxu0 0.0
        %1001 = vmatpush1.msra.mxu0 0.0
        %1002 = vmatprep.subr.mxu0 0.0
        %1003 = vmatpush1.msra.mxu0 0.0
        %1004 = vmatprep.subr.mxu0 0.0
        %1005 = vmatpush1.msra.mxu0 0.0
        %1006 = vmatprep.subr.mxu0 0.0
        %1007 = vmatpush1.msra.mxu0 0.0
        %1008 = vmatprep.subr.mxu0 0.0
        %1009 = vmatpush1.msra.mxu0 0.0
        %1010 = vmatprep.subr.mxu0 0.0
        %1011 = vmatpush1.msra.mxu0 0.0
        %1012 = vmatprep.subr.mxu0 0.0
        %1013 = vmatpush1.msra.mxu0 0.0
        %1014 = vmatprep.subr.mxu0 0.0
        %1015 = vmatpush1.msra.mxu0 0.0
        %1016 = vmatprep.subr.mxu0 0.0
        %1017 = vmatpush1.msra.mxu0 0.0
        %1018 = vmatprep.subr.mxu0 0.0
        %1019 = vmatpush1.msra.mxu0 0.0
        %1020 = vmatprep.subr.mxu0 0.0
        %1021 = vmatpush1.msra.mxu0 0.0
        %1022 = vmatprep.subr.mxu0 0.0
        %1023 = vmatpush1.msra.mxu0 0.0
        %1024 = vmatprep.subr.mxu0 0.0
        %1025 = vmatpush1.msra.mxu0 0.0
        %1026 = vmatprep.subr.mxu0 0.0
        %1027 = vmatpush1.msra.mxu0 0.0
        %1028 = vmatprep.subr.mxu0 0.0
        %1029 = vmatpush1.msra.mxu0 0.0
        %1030 = vmatprep.subr.mxu0 0.0
        %1031 = vmatpush1.msra.mxu0 0.0
        %1032 = vmatprep.subr.mxu0 0.0
        %1033 = vmatpush1.msra.mxu0 0.0
        %1034 = vmatprep.subr.mxu0 0.0
        %1035 = vmatpush1.msra.mxu0 0.0
        %1036 = vmatprep.subr.mxu0 0.0
        %1037 = vmatpush1.msra.mxu0 0.0
        %1038 = vmatprep.subr.mxu0 0.0
        %1039 = vmatpush1.msra.mxu0 0.0
        %1040 = vmatprep.mubr.f32.mxu0 0.0
        %1041 = vmatmul.mubr.f32.gmra.mrb[0].mxu0 %v974
        %v1042 = vpop.f32.mrb[0].mxu0
        %v1043 = vadd.f32 0.0, %v1042
        %v1044 = vpop.f32.mrb[0].mxu0
        %1045 = vdwg.mxu0
        %v1046 = vrcp.pop %v968
        %v1047 = vmul.f32 1.0, %v1046
        %v1048 = vmul.f32 %v1043, %v1047
        %1049 = vrot.lane.b32.xlu0 %v715, 112
        %v1050 = vpop.permute.xlu0 %1049
        %1051 = vrot.lane.b32.xlu0 %v718, 112
        %v1052 = vpop.permute.xlu0 %1051
        %v1053 = vsel %vm720, %v1050, 0
        %v1055 = vsel %vm720, %v1052, 0
        %1057 = vmatprep.subr.mxu0 0.0
        %1058 = vmatpush1.xpose.msra.mxu0 %v1055
        %1059 = vmatprep.subr.mxu0 0.0
        %1060 = vmatpush1.xpose.msra.mxu0 0.0
        %1061 = vmatprep.subr.mxu0 0.0
        %1062 = vmatpush1.xpose.msra.mxu0 0.0
        %1063 = vmatprep.subr.mxu0 0.0
        %1064 = vmatpush1.xpose.msra.mxu0 0.0
        %1065 = vmatprep.subr.mxu0 0.0
        %1066 = vmatpush1.xpose.msra.mxu0 0.0
        %1067 = vmatprep.subr.mxu0 0.0
        %1068 = vmatpush1.xpose.msra.mxu0 0.0
        %1069 = vmatprep.subr.mxu0 0.0
        %1070 = vmatpush1.xpose.msra.mxu0 0.0
        %1071 = vmatprep.subr.mxu0 0.0
        %1072 = vmatpush1.xpose.msra.mxu0 0.0
        %1073 = vmatprep.subr.mxu0 0.0
        %1074 = vmatpush1.xpose.msra.mxu0 0.0
        %1075 = vmatprep.subr.mxu0 0.0
        %1076 = vmatpush1.xpose.msra.mxu0 0.0
        %1077 = vmatprep.subr.mxu0 0.0
        %1078 = vmatpush1.xpose.msra.mxu0 0.0
        %1079 = vmatprep.subr.mxu0 0.0
        %1080 = vmatpush1.xpose.msra.mxu0 0.0
        %1081 = vmatprep.subr.mxu0 0.0
        %1082 = vmatpush1.xpose.msra.mxu0 0.0
        %1083 = vmatprep.subr.mxu0 0.0
        %1084 = vmatpush1.xpose.msra.mxu0 0.0
        %1085 = vmatprep.subr.mxu0 0.0
        %1086 = vmatpush1.xpose.msra.mxu0 0.0
        %1087 = vmatprep.subr.mxu0 0.0
        %1088 = vmatpush1.xpose.msra.mxu0 0.0
        %1089 = vmatprep.subr.mxu0 0.0
        %1090 = vmatpush1.xpose.msra.mxu0 0.0
        %1091 = vmatprep.subr.mxu0 0.0
        %1092 = vmatpush1.xpose.msra.mxu0 0.0
        %1093 = vmatprep.subr.mxu0 0.0
        %1094 = vmatpush1.xpose.msra.mxu0 0.0
        %1095 = vmatprep.subr.mxu0 0.0
        %1096 = vmatpush1.xpose.msra.mxu0 0.0
        %1097 = vmatprep.subr.mxu0 0.0
        %1098 = vmatpush1.xpose.msra.mxu0 0.0
        %1099 = vmatprep.subr.mxu0 0.0
        %1100 = vmatpush1.xpose.msra.mxu0 0.0
        %1101 = vmatprep.subr.mxu0 0.0
        %1102 = vmatpush1.xpose.msra.mxu0 0.0
        %1103 = vmatprep.subr.mxu0 0.0
        %1104 = vmatpush1.xpose.msra.mxu0 0.0
        %1105 = vmatprep.subr.mxu0 0.0
        %1106 = vmatpush1.xpose.msra.mxu0 0.0
        %1107 = vmatprep.subr.mxu0 0.0
        %1108 = vmatpush1.xpose.msra.mxu0 0.0
        %1109 = vmatprep.subr.mxu0 0.0
        %1110 = vmatpush1.xpose.msra.mxu0 0.0
        %1111 = vmatprep.subr.mxu0 0.0
        %1112 = vmatpush1.xpose.msra.mxu0 0.0
        %1113 = vmatprep.subr.mxu0 0.0
        %1114 = vmatpush1.xpose.msra.mxu0 0.0
        %1115 = vmatprep.subr.mxu0 0.0
        %1116 = vmatpush1.xpose.msra.mxu0 0.0
        %1117 = vmatprep.subr.mxu0 0.0
        %1118 = vmatpush1.xpose.msra.mxu0 0.0
        %1119 = vmatprep.subr.mxu0 0.0
        %1120 = vmatpush1.xpose.msra.mxu0 0.0
        %1121 = vmatprep.mubr.f32.mxu0 0.0
        %1122 = vmatmul.mubr.f32.gmra.mrb[0].mxu0 %v1053
        %v1123 = vpop.f32.mrb[0].mxu0
        %v1124 = vadd.f32 0.0, %v1123
        %v1125 = vpop.f32.mrb[0].mxu0
        %1126 = vdwg.mxu0
        %v1127 = vsel %vm720, %v1124, -inf
        %1128 = vmax.xlane.f32.xlu0 %v1127
        %v1129 = vpop.xlane.xlu0 %1128
        %v1130 = vsub.f32 %v1124, %v1129
        %v1131 = vmul.f32 %v1130, 1.442695
        %v1132 = vpow.pop %v1131
        %v1133 = vsel %vm720, %v1132, 0.0
        %1134 = vadd.xlane.f32.xlu0 %v1133
        %v1135 = vpop.xlane.xlu0 %1134
        %1136 = vrot.lane.b32.xlu0 %v719, 112
        %v1137 = vpop.permute.xlu0 %1136
        %v1140 = vsel %vm720, %v1132, 0
        %1142 = vmatprep.subr.mxu0 0.0
        %1143 = vmatpush1.msra.mxu0 %v1137
        %1144 = vmatprep.subr.mxu0 0.0
        %1145 = vmatpush1.msra.mxu0 0.0
        %1146 = vmatprep.subr.mxu0 0.0
        %1147 = vmatpush1.msra.mxu0 0.0
        %1148 = vmatprep.subr.mxu0 0.0
        %1149 = vmatpush1.msra.mxu0 0.0
        %1150 = vmatprep.subr.mxu0 0.0
        %1151 = vmatpush1.msra.mxu0 0.0
        %1152 = vmatprep.subr.mxu0 0.0
        %1153 = vmatpush1.msra.mxu0 0.0
        %1154 = vmatprep.subr.mxu0 0.0
        %1155 = vmatpush1.msra.mxu0 0.0
        %1156 = vmatprep.subr.mxu0 0.0
        %1157 = vmatpush1.msra.mxu0 0.0
        %1158 = vmatprep.subr.mxu0 0.0
        %1159 = vmatpush1.msra.mxu0 0.0
        %1160 = vmatprep.subr.mxu0 0.0
        %1161 = vmatpush1.msra.mxu0 0.0
        %1162 = vmatprep.subr.mxu0 0.0
        %1163 = vmatpush1.msra.mxu0 0.0
        %1164 = vmatprep.subr.mxu0 0.0
        %1165 = vmatpush1.msra.mxu0 0.0
        %1166 = vmatprep.subr.mxu0 0.0
        %1167 = vmatpush1.msra.mxu0 0.0
        %1168 = vmatprep.subr.mxu0 0.0
        %1169 = vmatpush1.msra.mxu0 0.0
        %1170 = vmatprep.subr.mxu0 0.0
        %1171 = vmatpush1.msra.mxu0 0.0
        %1172 = vmatprep.subr.mxu0 0.0
        %1173 = vmatpush1.msra.mxu0 0.0
        %1174 = vmatprep.subr.mxu0 0.0
        %1175 = vmatpush1.msra.mxu0 0.0
        %1176 = vmatprep.subr.mxu0 0.0
        %1177 = vmatpush1.msra.mxu0 0.0
        %1178 = vmatprep.subr.mxu0 0.0
        %1179 = vmatpush1.msra.mxu0 0.0
        %1180 = vmatprep.subr.mxu0 0.0
        %1181 = vmatpush1.msra.mxu0 0.0
        %1182 = vmatprep.subr.mxu0 0.0
        %1183 = vmatpush1.msra.mxu0 0.0
        %1184 = vmatprep.subr.mxu0 0.0
        %1185 = vmatpush1.msra.mxu0 0.0
        %1186 = vmatprep.subr.mxu0 0.0
        %1187 = vmatpush1.msra.mxu0 0.0
        %1188 = vmatprep.subr.mxu0 0.0
        %1189 = vmatpush1.msra.mxu0 0.0
        %1190 = vmatprep.subr.mxu0 0.0
        %1191 = vmatpush1.msra.mxu0 0.0
        %1192 = vmatprep.subr.mxu0 0.0
        %1193 = vmatpush1.msra.mxu0 0.0
        %1194 = vmatprep.subr.mxu0 0.0
        %1195 = vmatpush1.msra.mxu0 0.0
        %1196 = vmatprep.subr.mxu0 0.0
        %1197 = vmatpush1.msra.mxu0 0.0
        %1198 = vmatprep.subr.mxu0 0.0
        %1199 = vmatpush1.msra.mxu0 0.0
        %1200 = vmatprep.subr.mxu0 0.0
        %1201 = vmatpush1.msra.mxu0 0.0
        %1202 = vmatprep.subr.mxu0 0.0
        %1203 = vmatpush1.msra.mxu0 0.0
        %1204 = vmatprep.subr.mxu0 0.0
        %1205 = vmatpush1.msra.mxu0 0.0
        %1206 = vmatprep.mubr.f32.mxu0 0.0
        %1207 = vmatmul.mubr.f32.gmra.mrb[0].mxu0 %v1140
        %v1208 = vpop.f32.mrb[0].mxu0
        %v1209 = vadd.f32 0.0, %v1208
        %v1210 = vpop.f32.mrb[0].mxu0
        %1211 = vdwg.mxu0
        %v1212 = vrcp.pop %v1135
        %v1213 = vmul.f32 1.0, %v1212
        %v1214 = vmul.f32 %v1209, %v1213
        %1215 = vrot.lane.b32.xlu0 %v715, 104
        %v1216 = vpop.permute.xlu0 %1215
        %1217 = vrot.lane.b32.xlu0 %v718, 104
        %v1218 = vpop.permute.xlu0 %1217
        %v1219 = vsel %vm720, %v1216, 0
        %v1221 = vsel %vm720, %v1218, 0
        %1223 = vmatprep.subr.mxu0 0.0
        %1224 = vmatpush1.xpose.msra.mxu0 %v1221
        %1225 = vmatprep.subr.mxu0 0.0
        %1226 = vmatpush1.xpose.msra.mxu0 0.0
        %1227 = vmatprep.subr.mxu0 0.0
        %1228 = vmatpush1.xpose.msra.mxu0 0.0
        %1229 = vmatprep.subr.mxu0 0.0
        %1230 = vmatpush1.xpose.msra.mxu0 0.0
        %1231 = vmatprep.subr.mxu0 0.0
        %1232 = vmatpush1.xpose.msra.mxu0 0.0
        %1233 = vmatprep.subr.mxu0 0.0
        %1234 = vmatpush1.xpose.msra.mxu0 0.0
        %1235 = vmatprep.subr.mxu0 0.0
        %1236 = vmatpush1.xpose.msra.mxu0 0.0
        %1237 = vmatprep.subr.mxu0 0.0
        %1238 = vmatpush1.xpose.msra.mxu0 0.0
        %1239 = vmatprep.subr.mxu0 0.0
        %1240 = vmatpush1.xpose.msra.mxu0 0.0
        %1241 = vmatprep.subr.mxu0 0.0
        %1242 = vmatpush1.xpose.msra.mxu0 0.0
        %1243 = vmatprep.subr.mxu0 0.0
        %1244 = vmatpush1.xpose.msra.mxu0 0.0
        %1245 = vmatprep.subr.mxu0 0.0
        %1246 = vmatpush1.xpose.msra.mxu0 0.0
        %1247 = vmatprep.subr.mxu0 0.0
        %1248 = vmatpush1.xpose.msra.mxu0 0.0
        %1249 = vmatprep.subr.mxu0 0.0
        %1250 = vmatpush1.xpose.msra.mxu0 0.0
        %1251 = vmatprep.subr.mxu0 0.0
        %1252 = vmatpush1.xpose.msra.mxu0 0.0
        %1253 = vmatprep.subr.mxu0 0.0
        %1254 = vmatpush1.xpose.msra.mxu0 0.0
        %1255 = vmatprep.subr.mxu0 0.0
        %1256 = vmatpush1.xpose.msra.mxu0 0.0
        %1257 = vmatprep.subr.mxu0 0.0
        %1258 = vmatpush1.xpose.msra.mxu0 0.0
        %1259 = vmatprep.subr.mxu0 0.0
        %1260 = vmatpush1.xpose.msra.mxu0 0.0
        %1261 = vmatprep.subr.mxu0 0.0
        %1262 = vmatpush1.xpose.msra.mxu0 0.0
        %1263 = vmatprep.subr.mxu0 0.0
        %1264 = vmatpush1.xpose.msra.mxu0 0.0
        %1265 = vmatprep.subr.mxu0 0.0
        %1266 = vmatpush1.xpose.msra.mxu0 0.0
        %1267 = vmatprep.subr.mxu0 0.0
        %1268 = vmatpush1.xpose.msra.mxu0 0.0
        %1269 = vmatprep.subr.mxu0 0.0
        %1270 = vmatpush1.xpose.msra.mxu0 0.0
        %1271 = vmatprep.subr.mxu0 0.0
        %1272 = vmatpush1.xpose.msra.mxu0 0.0
        %1273 = vmatprep.subr.mxu0 0.0
        %1274 = vmatpush1.xpose.msra.mxu0 0.0
        %1275 = vmatprep.subr.mxu0 0.0
        %1276 = vmatpush1.xpose.msra.mxu0 0.0
        %1277 = vmatprep.subr.mxu0 0.0
        %1278 = vmatpush1.xpose.msra.mxu0 0.0
        %1279 = vmatprep.subr.mxu0 0.0
        %1280 = vmatpush1.xpose.msra.mxu0 0.0
        %1281 = vmatprep.subr.mxu0 0.0
        %1282 = vmatpush1.xpose.msra.mxu0 0.0
        %1283 = vmatprep.subr.mxu0 0.0
        %1284 = vmatpush1.xpose.msra.mxu0 0.0
        %1285 = vmatprep.subr.mxu0 0.0
        %1286 = vmatpush1.xpose.msra.mxu0 0.0
        %1287 = vmatprep.mubr.f32.mxu0 0.0
        %1288 = vmatmul.mubr.f32.gmra.mrb[0].mxu0 %v1219
        %v1289 = vpop.f32.mrb[0].mxu0
        %v1290 = vadd.f32 0.0, %v1289
        %v1291 = vpop.f32.mrb[0].mxu0
        %1292 = vdwg.mxu0
        %v1293 = vsel %vm720, %v1290, -inf
        %1294 = vmax.xlane.f32.xlu0 %v1293
        %v1295 = vpop.xlane.xlu0 %1294
        %v1296 = vsub.f32 %v1290, %v1295
        %v1297 = vmul.f32 %v1296, 1.442695
        %v1298 = vpow.pop %v1297
        %v1299 = vsel %vm720, %v1298, 0.0
        %1300 = vadd.xlane.f32.xlu0 %v1299
        %v1301 = vpop.xlane.xlu0 %1300
        %1302 = vrot.lane.b32.xlu0 %v719, 104
        %v1303 = vpop.permute.xlu0 %1302
        %v1306 = vsel %vm720, %v1298, 0
        %1308 = vmatprep.subr.mxu0 0.0
        %1309 = vmatpush1.msra.mxu0 %v1303
        %1310 = vmatprep.subr.mxu0 0.0
        %1311 = vmatpush1.msra.mxu0 0.0
        %1312 = vmatprep.subr.mxu0 0.0
        %1313 = vmatpush1.msra.mxu0 0.0
        %1314 = vmatprep.subr.mxu0 0.0
        %1315 = vmatpush1.msra.mxu0 0.0
        %1316 = vmatprep.subr.mxu0 0.0
        %1317 = vmatpush1.msra.mxu0 0.0
        %1318 = vmatprep.subr.mxu0 0.0
        %1319 = vmatpush1.msra.mxu0 0.0
        %1320 = vmatprep.subr.mxu0 0.0
        %1321 = vmatpush1.msra.mxu0 0.0
        %1322 = vmatprep.subr.mxu0 0.0
        %1323 = vmatpush1.msra.mxu0 0.0
        %1324 = vmatprep.subr.mxu0 0.0
        %1325 = vmatpush1.msra.mxu0 0.0
        %1326 = vmatprep.subr.mxu0 0.0
        %1327 = vmatpush1.msra.mxu0 0.0
        %1328 = vmatprep.subr.mxu0 0.0
        %1329 = vmatpush1.msra.mxu0 0.0
        %1330 = vmatprep.subr.mxu0 0.0
        %1331 = vmatpush1.msra.mxu0 0.0
        %1332 = vmatprep.subr.mxu0 0.0
        %1333 = vmatpush1.msra.mxu0 0.0
        %1334 = vmatprep.subr.mxu0 0.0
        %1335 = vmatpush1.msra.mxu0 0.0
        %1336 = vmatprep.subr.mxu0 0.0
        %1337 = vmatpush1.msra.mxu0 0.0
        %1338 = vmatprep.subr.mxu0 0.0
        %1339 = vmatpush1.msra.mxu0 0.0
        %1340 = vmatprep.subr.mxu0 0.0
        %1341 = vmatpush1.msra.mxu0 0.0
        %1342 = vmatprep.subr.mxu0 0.0
        %1343 = vmatpush1.msra.mxu0 0.0
        %1344 = vmatprep.subr.mxu0 0.0
        %1345 = vmatpush1.msra.mxu0 0.0
        %1346 = vmatprep.subr.mxu0 0.0
        %1347 = vmatpush1.msra.mxu0 0.0
        %1348 = vmatprep.subr.mxu0 0.0
        %1349 = vmatpush1.msra.mxu0 0.0
        %1350 = vmatprep.subr.mxu0 0.0
        %1351 = vmatpush1.msra.mxu0 0.0
        %1352 = vmatprep.subr.mxu0 0.0
        %1353 = vmatpush1.msra.mxu0 0.0
        %1354 = vmatprep.subr.mxu0 0.0
        %1355 = vmatpush1.msra.mxu0 0.0
        %1356 = vmatprep.subr.mxu0 0.0
        %1357 = vmatpush1.msra.mxu0 0.0
        %1358 = vmatprep.subr.mxu0 0.0
        %1359 = vmatpush1.msra.mxu0 0.0
        %1360 = vmatprep.subr.mxu0 0.0
        %1361 = vmatpush1.msra.mxu0 0.0
        %1362 = vmatprep.subr.mxu0 0.0
        %1363 = vmatpush1.msra.mxu0 0.0
        %1364 = vmatprep.subr.mxu0 0.0
        %1365 = vmatpush1.msra.mxu0 0.0
        %1366 = vmatprep.subr.mxu0 0.0
        %1367 = vmatpush1.msra.mxu0 0.0
        %1368 = vmatprep.subr.mxu0 0.0
        %1369 = vmatpush1.msra.mxu0 0.0
        %1370 = vmatprep.subr.mxu0 0.0
        %1371 = vmatpush1.msra.mxu0 0.0
        %1372 = vmatprep.mubr.f32.mxu0 0.0
        %1373 = vmatmul.mubr.f32.gmra.mrb[0].mxu0 %v1306
        %v1374 = vpop.f32.mrb[0].mxu0
        %v1375 = vadd.f32 0.0, %v1374
        %v1376 = vpop.f32.mrb[0].mxu0
        %1377 = vdwg.mxu0
        %v1378 = vrcp.pop %v1301
        %v1379 = vmul.f32 1.0, %v1378
        %v1380 = vmul.f32 %v1375, %v1379
        %1382 = vrot.lane.b32.xlu0 %v1048, 8
        %v1383 = vpop.permute.xlu0 %1382
        %1386 = vrot.lane.b32.xlu0 %v1214, 16
        %v1387 = vpop.permute.xlu0 %1386
        %1390 = vrot.lane.b32.xlu0 %v1380, 24
        %v1391 = vpop.permute.xlu0 %1390
        %v1393 = vsel %vm720, %v881, %v1383
        %vm1394 = vcmask 130048
        %v1395 = vsel %vm1394, %v1393, %v1387
        %vm1396 = vcmask 195584
        %v1397 = vsel %vm1396, %v1395, %v1391
        %v1398 = vld [vmem:[#allocation15] sm:$0xff]
        %v1399 = vld [vmem:[#allocation15 + $0x8] sm:$0xff]
        %v1400 = vld [vmem:[#allocation15 + $0x10] sm:$0xff]
        %v1401 = vld [vmem:[#allocation15 + $0x18] sm:$0xff]
        %v1403 = vsel %vm632, %v1397, 0
        %v1406 = vsel %vm632, %v1398, 0
        %v1409 = vsel %vm632, %v1399, 0
        %v1412 = vsel %vm632, %v1400, 0
        %v1415 = vsel %vm632, %v1401, 0
        %1417 = vmatprep.subr.mxu0 0.0
        %1418 = vmatpush1.xpose.msra.mxu0 %v1406
        %1419 = vmatprep.subr.mxu0 0.0
        %1420 = vmatpush1.xpose.msra.mxu0 %v1409
        %1421 = vmatprep.subr.mxu0 0.0
        %1422 = vmatpush1.xpose.msra.mxu0 %v1412
        %1423 = vmatprep.subr.mxu0 0.0
        %1424 = vmatpush1.xpose.msra.mxu0 %v1415
        %1425 = vmatprep.subr.mxu0 0.0
        %1426 = vmatpush1.xpose.msra.mxu0 0.0
        %1427 = vmatprep.subr.mxu0 0.0
        %1428 = vmatpush1.xpose.msra.mxu0 0.0
        %1429 = vmatprep.subr.mxu0 0.0
        %1430 = vmatpush1.xpose.msra.mxu0 0.0
        %1431 = vmatprep.subr.mxu0 0.0
        %1432 = vmatpush1.xpose.msra.mxu0 0.0
        %1433 = vmatprep.subr.mxu0 0.0
        %1434 = vmatpush1.xpose.msra.mxu0 0.0
        %1435 = vmatprep.subr.mxu0 0.0
        %1436 = vmatpush1.xpose.msra.mxu0 0.0
        %1437 = vmatprep.subr.mxu0 0.0
        %1438 = vmatpush1.xpose.msra.mxu0 0.0
        %1439 = vmatprep.subr.mxu0 0.0
        %1440 = vmatpush1.xpose.msra.mxu0 0.0
        %1441 = vmatprep.subr.mxu0 0.0
        %1442 = vmatpush1.xpose.msra.mxu0 0.0
        %1443 = vmatprep.subr.mxu0 0.0
        %1444 = vmatpush1.xpose.msra.mxu0 0.0
        %1445 = vmatprep.subr.mxu0 0.0
        %1446 = vmatpush1.xpose.msra.mxu0 0.0
        %1447 = vmatprep.subr.mxu0 0.0
        %1448 = vmatpush1.xpose.msra.mxu0 0.0
        %1449 = vmatprep.subr.mxu0 0.0
        %1450 = vmatpush1.xpose.msra.mxu0 0.0
        %1451 = vmatprep.subr.mxu0 0.0
        %1452 = vmatpush1.xpose.msra.mxu0 0.0
        %1453 = vmatprep.subr.mxu0 0.0
        %1454 = vmatpush1.xpose.msra.mxu0 0.0
        %1455 = vmatprep.subr.mxu0 0.0
        %1456 = vmatpush1.xpose.msra.mxu0 0.0
        %1457 = vmatprep.subr.mxu0 0.0
        %1458 = vmatpush1.xpose.msra.mxu0 0.0
        %1459 = vmatprep.subr.mxu0 0.0
        %1460 = vmatpush1.xpose.msra.mxu0 0.0
        %1461 = vmatprep.subr.mxu0 0.0
        %1462 = vmatpush1.xpose.msra.mxu0 0.0
        %1463 = vmatprep.subr.mxu0 0.0
        %1464 = vmatpush1.xpose.msra.mxu0 0.0
        %1465 = vmatprep.subr.mxu0 0.0
        %1466 = vmatpush1.xpose.msra.mxu0 0.0
        %1467 = vmatprep.subr.mxu0 0.0
        %1468 = vmatpush1.xpose.msra.mxu0 0.0
        %1469 = vmatprep.subr.mxu0 0.0
        %1470 = vmatpush1.xpose.msra.mxu0 0.0
        %1471 = vmatprep.subr.mxu0 0.0
        %1472 = vmatpush1.xpose.msra.mxu0 0.0
        %1473 = vmatprep.subr.mxu0 0.0
        %1474 = vmatpush1.xpose.msra.mxu0 0.0
        %1475 = vmatprep.subr.mxu0 0.0
        %1476 = vmatpush1.xpose.msra.mxu0 0.0
        %1477 = vmatprep.subr.mxu0 0.0
        %1478 = vmatpush1.xpose.msra.mxu0 0.0
        %1479 = vmatprep.subr.mxu0 0.0
        %1480 = vmatpush1.xpose.msra.mxu0 0.0
        %1481 = vmatprep.mubr.f32.mxu0 0.0
        %1482 = vmatmul.mubr.f32.gmra.mrb[0].mxu0 %v1403
        %v1483 = vpop.f32.mrb[0].mxu0
        %v1484 = vadd.f32 0.0, %v1483
        %v1485 = vpop.f32.mrb[0].mxu0
        %1486 = vdwg.mxu0
        %1487 = vst.msk [vmem:[%s439] sm:$0xff] %vm632, %v1484
        %s1488 = sand.u32 %s215, 1
        %s1489 = scalar_lea.sflag [#allocation6], %s1488
        %s1490 = sand.u32 %s215, 1
        %s1491 = smul.addr %s1490, 8
        %s1492 = scalar_lea.vmem [#allocation16], %s1491
        // Predicated region
        $region81: #{tpu_custom_call.1} parent=47 // pred_check
          %p1493 = pneg %p225
        $region82: #{tpu_custom_call.1} parent=47 // pred_check_branch
          %1495 = sbr.rel (%p1493) target = $region84
        $region83: #{tpu_custom_call.1} parent=47 // pred_region
          %s1497 = ssub.s32 128, 128
          %1498 = vsyncadd %s1489, %s1497
          %s1499 = sadd.s32 %s34, %s33
          %s1500 = smul.addr %s1499, 128
          %s1501 = scalar_lea.hbm %s7, %s1500
          %s1503 = sshll.u32 %s1492, 4
          %s1504 = int_to_ptr.vmem [resolvable:$true] %s1503
          %1506 = dma.vmem_to_hbm [thread:$0]  %s1504, 128, %s1501, %s1489
        $region84: #{tpu_custom_call.1} parent=47 // pred_fallthru
          _
      $region48: #{tpu_custom_call.1} parent=5 // pred_fallthru
        _
      %p1507 = scmp.le.s32.totalorder 2, %s24
      // Predicated region
      $region85: #{tpu_custom_call.1} parent=5 // pred_check
        %p1508 = pneg %p1507
      $region86: #{tpu_custom_call.1} parent=5 // pred_check_branch
        %1510 = sbr.rel (%p1508) target = $region88
      $region87: #{tpu_custom_call.1} parent=5 // pred_region
        %s1511 = ssub.s32 %s24, 2
        // Predicated region
        $region89: #{tpu_custom_call.1} parent=87 // pred_check
          %p1512 = pneg %p231
        $region90: #{tpu_custom_call.1} parent=87 // pred_check_branch
          %1514 = sbr.rel (%p1512) target = $region92
        $region91: #{tpu_custom_call.1} parent=87 // pred_region
          %s1515 = sand.u32 %s216, 1
          %s1516 = scalar_lea.sflag [#allocation6], %s1515
          %s1517 = sand.u32 %s216, 1
          %s1518 = smul.addr %s1517, 8
          %s1519 = scalar_lea.vmem [#allocation16], %s1518
          %1520 = dma.done %s1516, 128
        $region92: #{tpu_custom_call.1} parent=87 // pred_fallthru
          _
      $region88: #{tpu_custom_call.1} parent=5 // pred_fallthru
        _
    $region6: #{tpu_custom_call.1} parent=1 // loop_footer
      %s28 = sadd.s32 1, %s24
    $region7: #{tpu_custom_call.1} parent=1 // loop_footer_branch
      %23 = sbr.rel target = $region3
    $region8: #{tpu_custom_call.1} parent=1 // loop_exit
      _
    %1521 = vsyncpa [#allocation5], 1
    %s1522 = scalar_lea.sflag [#allocation5], 1
    %1523 = vsyncpa %s1522, 1
    %1524 = vsyncpa [#allocation8], 1
    %s1525 = scalar_lea.sflag [#allocation8], 1
    %1526 = vsyncpa %s1525, 1
    %1527 = vsyncpa [#allocation11], 1
    %1528 = vsyncpa [#allocation14], 1
    %1529 = vsyncpa [#allocation6], 1
    %s1530 = scalar_lea.sflag [#allocation6], 1
    %1531 = vsyncpa %s1530, 1

</llo_original>
